<compile_context>
chip_gen: v6e
topology: v6e:2x2x1
jax: 0.10.0
libtpu: 0.0.40
codegen_flags: <defaults>
</compile_context>

<pallas_src>
import functools

import numpy as np
import jax
import jax.numpy as jnp
from jax.experimental import pallas as pl
from jax.experimental.pallas import tpu as pltpu

# ----------------------------- configuration --------------------------------
IN_CHANNELS = 8
HIDDEN_CHANNELS = 16
OUT_CHANNELS = 8
NUM_LAYERS = 2          # -> [in->hidden, hidden->out]
NUM_LEVELS = 3
LEVEL_DIM = 8
DROPOUT = 0.0           # eval mode / p=0 -> projective_dropout is identity
N_NODES = 8             # nodes per graph
N_EDGES = 16            # edges per graph
NUM_GRAPHS = 32         # batch of graphs per forward call
GRAPHS_PER_TILE = 16    # graphs per grid step -> 16*8 = 128 node rows / tile
EPS = 1e-15


# ----------------------------- in-kernel helpers -----------------------------
def _l2_normalize_rows(x):
    """Row-wise projective (L2) normalization (reconstructed uhg.normalize)."""
    sq = jnp.sum(x * x, axis=-1, keepdims=True)
    return x * jax.lax.rsqrt(jnp.maximum(sq, EPS))


def _group_cr_sq(rows_f32, sel_ref):
    """Squared-distance cross-ratio R = (d13^2*d24^2)/(d14^2*d23^2) per graph.

    sel_ref holds 4 constant [T, T] selection matrices; every row of a graph's
    8-row block computes the same node-pair difference, so the result [T, 1]
    already carries each graph's R broadcast to all of its node rows.  No
    sublane shuffles / rolls needed; sqrt-free (CR = sqrt(R) is never formed).
    TODO(synk): exact ProjectiveUHG.cross_ratio unavailable; distance-ratio
    reconstruction, same as the previous (accepted) version.
    """
    def sqd(k):
        d = jnp.dot(sel_ref[k], rows_f32, preferred_element_type=jnp.float32)
        return jnp.sum(d * d, axis=-1, keepdims=True)          # [T, 1]
    s13, s24, s14, s23 = sqd(0), sqd(1), sqd(2), sqd(3)
    return (s13 * s24) / (s14 * s23 + EPS)                      # [T, 1]


# ------------------------------- fused kernel --------------------------------
def fused_gnn_kernel(x_ref, as_ref, ap_ref, ac_ref, sel_ref, *refs,
                     fouts, has_cr):
    """Whole (batched) ProjectiveHierarchicalGNN forward for one batch tile.

    Per layer the refs come in pairs:
      wfeat_ref : [in_feat, 4*fout] bf16  rows of [W_self|W_neigh|W_par|W_chd]
      lvlbias   : [T, 4*fout] f32         onehot @ (LE@W_lvl) (+bias, self blk)
    The homogeneous coordinate is constant 1 wherever the reference uses it,
    so it is tracked implicitly and never materialized.
    """
    f32 = jnp.float32
    bf16 = jnp.bfloat16
    o_ref = refs[-1]
    layer_refs = refs[:-1]
    num_layers = len(fouts)

    x_raw = x_ref[...]                       # [T, IN] f32 (raw, un-normalized)
    a_same = as_ref[0]                       # [T, T] bf16 (block-diag per graph)
    a_par = ap_ref[0]
    a_chd = ac_ref[0]

    if has_cr:
        r_init = _group_cr_sq(x_raw, sel_ref)          # per-graph, on raw input

    # x.size(-1) == in_channels -> projective normalize (homog coord -> 1).
    feat = _l2_normalize_rows(x_raw)

    for i in range(num_layers):
        wf_ref, lb_ref = layer_refs[2 * i], layer_refs[2 * i + 1]
        fout = fouts[i]

        # One MXU push for the feature transform of all 4 weight blocks;
        # level-encoding + bias arrive as a precomputed additive table.
        hw_feat = jnp.dot(feat.astype(bf16), wf_ref[...],
                          preferred_element_type=f32)          # [T, 4*fout]

        if i > 0 and has_cr:
            # Cross-ratio rescale of the layer input, folded into the matmul
            # result: scale*(feat@W) == (scale*feat)@W.  Keeps the serial
            # EUP/XLU chain off the MXU critical path.
            r_cur = _group_cr_sq(feat, sel_ref)
            valid = (jnp.logical_not(jnp.isnan(r_cur))
                     & jnp.logical_not(jnp.isnan(r_init))
                     & (r_cur != 0.0))
            safe = jnp.where(valid, r_cur, 1.0)
            # scale = sqrt(|CR_i/CR_c|) = (R_i/R_c)^(1/4): two rsqrts only.
            scale = jnp.where(valid,
                              jax.lax.rsqrt(jax.lax.rsqrt(r_init / safe)), 1.0)
            hw_feat = hw_feat * scale        # uhg.scale: features only

        hw = hw_feat + lb_ref[...]           # + level encoding (+bias, self blk)

        # Self message + three block-diagonal adjacency matmuls (no concat).
        out = hw[:, 0 * fout:1 * fout]
        out = out + jnp.dot(a_same, hw[:, 1 * fout:2 * fout].astype(bf16),
                            preferred_element_type=f32)
        out = out + jnp.dot(a_par, hw[:, 2 * fout:3 * fout].astype(bf16),
                            preferred_element_type=f32)
        out = out + jnp.dot(a_chd, hw[:, 3 * fout:4 * fout].astype(bf16),
                            preferred_element_type=f32)
        out = _l2_normalize_rows(out)        # TODO(synk): reconstructed layer norm

        if i < num_layers - 1:
            # append homog "1" (implicit), ReLU + normalize features
            feat = _l2_normalize_rows(jnp.maximum(out, 0.0))
            # projective_dropout: identity (eval mode / dropout == 0.0)
        else:
            feat = out                       # homog "1" appended implicitly

    # Final: strip (implicit) homogeneous coord and normalize features.
    o_ref[...] = _l2_normalize_rows(feat)


# ------------------------------ Pallas wrapper --------------------------------
def gnn_forward(x_flat, a_same, a_par, a_chd, sel, layer_args, *,
                n_nodes, graphs_per_tile, fouts):
    """Jitted forward: ONLY the pallas_call (all preprocessing is hoisted)."""
    total_nodes, in_feat = x_flat.shape
    t = graphs_per_tile * n_nodes
    num_tiles = total_nodes // t
    has_cr = n_nodes > 3

    flat_layers = []
    layer_specs = []
    for (w_feat, lvlbias) in layer_args:
        flat_layers += [w_feat, lvlbias]
        layer_specs += [
            pl.BlockSpec(w_feat.shape, lambda i: (0, 0)),
            pl.BlockSpec((t, lvlbias.shape[1]), lambda i: (i, 0)),
        ]

    kern = functools.partial(fused_gnn_kernel, fouts=tuple(fouts),
                             has_cr=has_cr)
    return pl.pallas_call(
        kern,
        out_shape=jax.ShapeDtypeStruct((total_nodes, fouts[-1]), jnp.float32),
        grid=(num_tiles,),
        in_specs=[
            pl.BlockSpec((t, in_feat), lambda i: (i, 0)),          # x (raw)
            pl.BlockSpec((1, t, t), lambda i: (i, 0, 0)),          # A_same
            pl.BlockSpec((1, t, t), lambda i: (i, 0, 0)),          # A_parent
            pl.BlockSpec((1, t, t), lambda i: (i, 0, 0)),          # A_child
            pl.BlockSpec((4, t, t), lambda i: (0, 0, 0)),          # CR selectors
            *layer_specs,
        ],
        out_specs=pl.BlockSpec((t, fouts[-1]), lambda i: (i, 0)),
        compiler_params=pltpu.CompilerParams(
            dimension_semantics=("parallel",)),                    # v7x: 2 TCs
    )(x_flat, a_same, a_par, a_chd, sel, *flat_layers)


# ----------------------- one-time (hoisted) preprocessing ---------------------
def build_graph_arrays(edge_index, node_levels, n_nodes, graphs_per_tile):
    """edge_index: [B, 2, E], node_levels: [B, N].

    Returns block-diagonal, per-tile adjacencies [nt, T, T] (bf16) split by
    level relation and the flattened one-hot level matrix [B*N, L] (f32).
    Dense, degree-normalized adjacency — reconstructed aggregation semantics.
    """
    B = edge_index.shape[0]
    assert B % graphs_per_tile == 0
    src = edge_index[:, 0, :]
    dst = edge_index[:, 1, :]
    lvl_s = jnp.take_along_axis(node_levels, src, axis=1)
    lvl_d = jnp.take_along_axis(node_levels, dst, axis=1)

    def adj(mask):
        def one(d, s, m):
            vals = jnp.where(m, 1.0, 0.0).astype(jnp.float32)
            a = jnp.zeros((n_nodes, n_nodes), jnp.float32).at[d, s].add(vals)
            deg = jnp.clip(jnp.sum(a, axis=1, keepdims=True), 1.0, None)
            return a / deg
        return jax.vmap(one)(dst, src, mask)                      # [B, N, N]

    def block_diag(a):                                            # -> [nt, T, T]
        nt = B // graphs_per_tile
        a = a.reshape(nt, graphs_per_tile, n_nodes, n_nodes)
        eye = jnp.eye(graphs_per_tile, dtype=a.dtype)
        out = jnp.einsum('tgij,gh->tgihj', a, eye)
        t = graphs_per_tile * n_nodes
        return out.reshape(nt, t, t).astype(jnp.bfloat16)

    a_same = block_diag(adj(lvl_s == lvl_d))
    a_par = block_diag(adj(lvl_s < lvl_d))
    a_chd = block_diag(adj(lvl_s > lvl_d))

    onehot = jax.nn.one_hot(node_levels, NUM_LEVELS, dtype=jnp.float32)
    onehot_flat = onehot.reshape(B * n_nodes, NUM_LEVELS)
    return a_same, a_par, a_chd, onehot_flat


def build_selection(graphs_per_tile, n_nodes):
    """Constant +/-1 selectors for the 4 node-pair differences (rows 0..3) of
    every graph in a tile, broadcast to all of that graph's node rows."""
    t = graphs_per_tile * n_nodes
    sel = np.zeros((4, t, t), np.float32)
    if n_nodes > 3:
        pairs = ((0, 2), (1, 3), (0, 3), (1, 2))
        for g in range(graphs_per_tile):
            base = g * n_nodes
            for k, (p, q) in enumerate(pairs):
                sel[k, base:base + n_nodes, base + p] = 1.0
                sel[k, base:base + n_nodes, base + q] = -1.0
    return jnp.asarray(sel)


def fuse_layer_params(params, onehot_flat):
    """Fold [W_self|W_neigh|W_parent|W_child] feature rows into one bf16 slab
    and pre-apply level encoding + bias into a per-node additive table."""
    fused = []
    for p in params:
        fout = p["w_self"].shape[1]
        in_feat = p["w_self"].shape[0] - LEVEL_DIM
        w_cat = jnp.concatenate(
            [p["w_self"], p["w_neigh"], p["w_parent"], p["w_child"]], axis=1)
        w_feat = w_cat[:in_feat, :].astype(jnp.bfloat16)          # [Fin, 4f]
        w_lvl = jnp.dot(p["level_encoding"], w_cat[in_feat:, :])  # [L, 4f]
        lvlbias = jnp.dot(onehot_flat, w_lvl)                     # [B*N, 4f]
        lvlbias = lvlbias.at[:, :fout].add(p["bias"][0])          # bias: self blk
        fused.append((w_feat, lvlbias.astype(jnp.float32)))
    return fused


# ------------------------------ parameter init --------------------------------
def init_layer_params(key, in_features, out_features, num_levels, level_dim):
    k_le, k_s, k_n, k_p, k_c, k_b = jax.random.split(key, 6)
    fan_in = in_features + level_dim
    bound = jnp.sqrt(6.0 / (fan_in + out_features))

    def glorot(k):
        return jax.random.uniform(k, (fan_in, out_features), jnp.float32,
                                  -bound, bound)

    return {
        "level_encoding": 0.1 * jax.random.normal(
            k_le, (num_levels, level_dim), jnp.float32),
        "w_self": glorot(k_s),
        "w_neigh": glorot(k_n),
        "w_parent": glorot(k_p),
        "w_child": glorot(k_c),
        "bias": jax.random.uniform(
            k_b, (1, out_features), jnp.float32,
            -1.0 / jnp.sqrt(fan_in), 1.0 / jnp.sqrt(fan_in)),
    }


def init_model_params(key):
    dims = [(IN_CHANNELS, HIDDEN_CHANNELS)]
    dims += [(HIDDEN_CHANNELS, HIDDEN_CHANNELS)] * (NUM_LAYERS - 2)
    dims += [(HIDDEN_CHANNELS, OUT_CHANNELS)]
    keys = jax.random.split(key, len(dims))
    return [init_layer_params(k, i, o, NUM_LEVELS, LEVEL_DIM)
            for k, (i, o) in zip(keys, dims)]


# ----------------------------------- main -------------------------------------
if __name__ == "__main__":
    key = jax.random.PRNGKey(0)
    kx, ke1, ke2, kl, kp = jax.random.split(key, 5)

    B = NUM_GRAPHS
    x = jax.random.normal(kx, (B, N_NODES, IN_CHANNELS), jnp.float32)
    src = jax.random.randint(ke1, (B, N_EDGES), 0, N_NODES)
    dst = jax.random.randint(ke2, (B, N_EDGES), 0, N_NODES)
    edge_index = jnp.stack([src, dst], axis=1).astype(jnp.int32)   # [B, 2, E]
    node_levels = jax.random.randint(
        kl, (B, N_NODES), 0, NUM_LEVELS).astype(jnp.int32)

    params = init_model_params(kp)

    # One-time preprocessing, hoisted out of the jitted forward.
    a_same, a_par, a_chd, onehot_flat = build_graph_arrays(
        edge_index, node_levels, N_NODES, GRAPHS_PER_TILE)
    sel = build_selection(GRAPHS_PER_TILE, N_NODES)
    layer_args = fuse_layer_params(params, onehot_flat)
    fouts = tuple(p["w_self"].shape[1] for p in params)

    x_flat = x.reshape(B * N_NODES, IN_CHANNELS)

    fwd = jax.jit(functools.partial(
        gnn_forward, n_nodes=N_NODES, graphs_per_tile=GRAPHS_PER_TILE,
        fouts=fouts))
    out_flat = jax.block_until_ready(
        fwd(x_flat, a_same, a_par, a_chd, sel, layer_args))
    out = out_flat.reshape(B, N_NODES, OUT_CHANNELS)

    assert out.shape == (B, N_NODES, OUT_CHANNELS), out.shape
    assert bool(jnp.all(jnp.isfinite(out))), "non-finite output"
    print("KERNEL_OK")
</pallas_src>

<mosaic_0001>
module attributes {stable_mosaic.version = 11 : i64} {
  func.func @fused_gnn_kernel(%arg0: i32, %arg1: memref<128x8xf32, #tpu.memory_space<vmem>>, %arg2: memref<1x128x128xbf16, #tpu.memory_space<vmem>>, %arg3: memref<1x128x128xbf16, #tpu.memory_space<vmem>>, %arg4: memref<1x128x128xbf16, #tpu.memory_space<vmem>>, %arg5: memref<4x128x128xf32, #tpu.memory_space<vmem>>, %arg6: memref<8x64xbf16, #tpu.memory_space<vmem>>, %arg7: memref<128x64xf32, #tpu.memory_space<vmem>>, %arg8: memref<16x32xbf16, #tpu.memory_space<vmem>>, %arg9: memref<128x32xf32, #tpu.memory_space<vmem>>, %arg10: memref<128x8xf32, #tpu.memory_space<vmem>>) attributes {dimension_semantics = [#tpu.dimension_semantics<parallel>], iteration_bounds = array<i64: 2>, scalar_prefetch = 0 : i64, scratch_operands = 0 : i64, tpu.core_type = #tpu.core_type<tc>, window_params = [{transform_indices = @transform_0, window_bounds = array<i64: 128, 8>}, {transform_indices = @transform_1, window_bounds = array<i64: 1, 128, 128>}, {transform_indices = @transform_2, window_bounds = array<i64: 1, 128, 128>}, {transform_indices = @transform_3, window_bounds = array<i64: 1, 128, 128>}, {pipeline_mode = #tpu.pipeline_mode<synchronous>, transform_indices = @transform_4, window_bounds = array<i64: 4, 128, 128>}, {pipeline_mode = #tpu.pipeline_mode<synchronous>, transform_indices = @transform_5, window_bounds = array<i64: 8, 64>}, {transform_indices = @transform_6, window_bounds = array<i64: 128, 64>}, {pipeline_mode = #tpu.pipeline_mode<synchronous>, transform_indices = @transform_7, window_bounds = array<i64: 16, 32>}, {transform_indices = @transform_8, window_bounds = array<i64: 128, 32>}, {transform_indices = @transform_9, window_bounds = array<i64: 128, 8>}]} {
    %c0 = arith.constant 0 : index
    %c0_0 = arith.constant 0 : index
    %0 = vector.load %arg1[%c0, %c0_0] : memref<128x8xf32, #tpu.memory_space<vmem>>, vector<128x8xf32>
    %c0_1 = arith.constant 0 : index
    %c0_2 = arith.constant 0 : index
    %c0_3 = arith.constant 0 : index
    %1 = vector.load %arg2[%c0_1, %c0_2, %c0_3] : memref<1x128x128xbf16, #tpu.memory_space<vmem>>, vector<1x128x128xbf16>
    %2 = vector.shape_cast %1 : vector<1x128x128xbf16> to vector<128x128xbf16>
    %c0_4 = arith.constant 0 : index
    %c0_5 = arith.constant 0 : index
    %c0_6 = arith.constant 0 : index
    %3 = vector.load %arg3[%c0_4, %c0_5, %c0_6] : memref<1x128x128xbf16, #tpu.memory_space<vmem>>, vector<1x128x128xbf16>
    %4 = vector.shape_cast %3 : vector<1x128x128xbf16> to vector<128x128xbf16>
    %c0_7 = arith.constant 0 : index
    %c0_8 = arith.constant 0 : index
    %c0_9 = arith.constant 0 : index
    %5 = vector.load %arg4[%c0_7, %c0_8, %c0_9] : memref<1x128x128xbf16, #tpu.memory_space<vmem>>, vector<1x128x128xbf16>
    %6 = vector.shape_cast %5 : vector<1x128x128xbf16> to vector<128x128xbf16>
    %c0_10 = arith.constant 0 : index
    %c0_11 = arith.constant 0 : index
    %c0_12 = arith.constant 0 : index
    %7 = vector.load %arg5[%c0_10, %c0_11, %c0_12] : memref<4x128x128xf32, #tpu.memory_space<vmem>>, vector<1x128x128xf32>
    %8 = vector.shape_cast %7 : vector<1x128x128xf32> to vector<128x128xf32>
    %cst = arith.constant dense<0.000000e+00> : vector<128x8xf32>
    %9 = tpu.matmul %8, %0, %cst {dimension_numbers = #tpu.dot_dimension_numbers<[1], [0], [0], [1], [0, 0, 1, 1], [], []>} : vector<128x128xf32>, vector<128x8xf32>, vector<128x8xf32> -> vector<128x8xf32>
    %10 = arith.mulf %9, %9 : vector<128x8xf32>
    %cst_13 = arith.constant dense<0.000000e+00> : vector<128xf32>
    %11 = vector.multi_reduction <add>, %10, %cst_13 [1] : vector<128x8xf32> to vector<128xf32>
    %12 = vector.shape_cast %11 : vector<128xf32> to vector<128x1xf32>
    %c1 = arith.constant 1 : index
    %c0_14 = arith.constant 0 : index
    %c0_15 = arith.constant 0 : index
    %13 = vector.load %arg5[%c1, %c0_14, %c0_15] : memref<4x128x128xf32, #tpu.memory_space<vmem>>, vector<1x128x128xf32>
    %14 = vector.shape_cast %13 : vector<1x128x128xf32> to vector<128x128xf32>
    %cst_16 = arith.constant dense<0.000000e+00> : vector<128x8xf32>
    %15 = tpu.matmul %14, %0, %cst_16 {dimension_numbers = #tpu.dot_dimension_numbers<[1], [0], [0], [1], [0, 0, 1, 1], [], []>} : vector<128x128xf32>, vector<128x8xf32>, vector<128x8xf32> -> vector<128x8xf32>
    %16 = arith.mulf %15, %15 : vector<128x8xf32>
    %cst_17 = arith.constant dense<0.000000e+00> : vector<128xf32>
    %17 = vector.multi_reduction <add>, %16, %cst_17 [1] : vector<128x8xf32> to vector<128xf32>
    %18 = vector.shape_cast %17 : vector<128xf32> to vector<128x1xf32>
    %c2 = arith.constant 2 : index
    %c0_18 = arith.constant 0 : index
    %c0_19 = arith.constant 0 : index
    %19 = vector.load %arg5[%c2, %c0_18, %c0_19] : memref<4x128x128xf32, #tpu.memory_space<vmem>>, vector<1x128x128xf32>
    %20 = vector.shape_cast %19 : vector<1x128x128xf32> to vector<128x128xf32>
    %cst_20 = arith.constant dense<0.000000e+00> : vector<128x8xf32>
    %21 = tpu.matmul %20, %0, %cst_20 {dimension_numbers = #tpu.dot_dimension_numbers<[1], [0], [0], [1], [0, 0, 1, 1], [], []>} : vector<128x128xf32>, vector<128x8xf32>, vector<128x8xf32> -> vector<128x8xf32>
    %22 = arith.mulf %21, %21 : vector<128x8xf32>
    %cst_21 = arith.constant dense<0.000000e+00> : vector<128xf32>
    %23 = vector.multi_reduction <add>, %22, %cst_21 [1] : vector<128x8xf32> to vector<128xf32>
    %24 = vector.shape_cast %23 : vector<128xf32> to vector<128x1xf32>
    %c3 = arith.constant 3 : index
    %c0_22 = arith.constant 0 : index
    %c0_23 = arith.constant 0 : index
    %25 = vector.load %arg5[%c3, %c0_22, %c0_23] : memref<4x128x128xf32, #tpu.memory_space<vmem>>, vector<1x128x128xf32>
    %26 = vector.shape_cast %25 : vector<1x128x128xf32> to vector<128x128xf32>
    %cst_24 = arith.constant dense<0.000000e+00> : vector<128x8xf32>
    %27 = tpu.matmul %26, %0, %cst_24 {dimension_numbers = #tpu.dot_dimension_numbers<[1], [0], [0], [1], [0, 0, 1, 1], [], []>} : vector<128x128xf32>, vector<128x8xf32>, vector<128x8xf32> -> vector<128x8xf32>
    %28 = arith.mulf %27, %27 : vector<128x8xf32>
    %cst_25 = arith.constant dense<0.000000e+00> : vector<128xf32>
    %29 = vector.multi_reduction <add>, %28, %cst_25 [1] : vector<128x8xf32> to vector<128xf32>
    %30 = vector.shape_cast %29 : vector<128xf32> to vector<128x1xf32>
    %31 = arith.mulf %12, %18 : vector<128x1xf32>
    %32 = arith.mulf %24, %30 : vector<128x1xf32>
    %cst_26 = arith.constant 1.000000e-15 : f32
    %33 = vector.broadcast %cst_26 : f32 to vector<128x1xf32>
    %34 = arith.addf %32, %33 : vector<128x1xf32>
    %35 = arith.divf %31, %34 : vector<128x1xf32>
    %36 = arith.mulf %0, %0 : vector<128x8xf32>
    %cst_27 = arith.constant dense<0.000000e+00> : vector<128xf32>
    %37 = vector.multi_reduction <add>, %36, %cst_27 [1] : vector<128x8xf32> to vector<128xf32>
    %38 = vector.shape_cast %37 : vector<128xf32> to vector<128x1xf32>
    %cst_28 = arith.constant 1.000000e-15 : f32
    %39 = vector.broadcast %cst_28 : f32 to vector<128x1xf32>
    %40 = arith.maximumf %38, %39 : vector<128x1xf32>
    %41 = math.rsqrt %40 : vector<128x1xf32>
    %42 = vector.broadcast %41 : vector<128x1xf32> to vector<128x8xf32>
    %43 = arith.mulf %0, %42 : vector<128x8xf32>
    %44 = arith.truncf %43 : vector<128x8xf32> to vector<128x8xbf16>
    %c0_29 = arith.constant 0 : index
    %c0_30 = arith.constant 0 : index
    %45 = vector.load %arg6[%c0_29, %c0_30] : memref<8x64xbf16, #tpu.memory_space<vmem>>, vector<8x64xbf16>
    %cst_31 = arith.constant dense<0.000000e+00> : vector<128x64xf32>
    %46 = tpu.matmul %44, %45, %cst_31 {dimension_numbers = #tpu.dot_dimension_numbers<[1], [0], [0], [1], [0, 0, 1, 1], [], []>} : vector<128x8xbf16>, vector<8x64xbf16>, vector<128x64xf32> -> vector<128x64xf32>
    %c0_32 = arith.constant 0 : index
    %c0_33 = arith.constant 0 : index
    %47 = vector.load %arg7[%c0_32, %c0_33] : memref<128x64xf32, #tpu.memory_space<vmem>>, vector<128x64xf32>
    %48 = arith.addf %46, %47 : vector<128x64xf32>
    %49 = vector.extract_strided_slice %48 {offsets = [0, 0], sizes = [128, 16], strides = [1, 1]} : vector<128x64xf32> to vector<128x16xf32>
    %50 = vector.extract_strided_slice %48 {offsets = [0, 16], sizes = [128, 16], strides = [1, 1]} : vector<128x64xf32> to vector<128x16xf32>
    %51 = arith.truncf %50 : vector<128x16xf32> to vector<128x16xbf16>
    %cst_34 = arith.constant dense<0.000000e+00> : vector<128x16xf32>
    %52 = tpu.matmul %2, %51, %cst_34 {dimension_numbers = #tpu.dot_dimension_numbers<[1], [0], [0], [1], [0, 0, 1, 1], [], []>} : vector<128x128xbf16>, vector<128x16xbf16>, vector<128x16xf32> -> vector<128x16xf32>
    %53 = arith.addf %49, %52 : vector<128x16xf32>
    %54 = vector.extract_strided_slice %48 {offsets = [0, 32], sizes = [128, 16], strides = [1, 1]} : vector<128x64xf32> to vector<128x16xf32>
    %55 = arith.truncf %54 : vector<128x16xf32> to vector<128x16xbf16>
    %cst_35 = arith.constant dense<0.000000e+00> : vector<128x16xf32>
    %56 = tpu.matmul %4, %55, %cst_35 {dimension_numbers = #tpu.dot_dimension_numbers<[1], [0], [0], [1], [0, 0, 1, 1], [], []>} : vector<128x128xbf16>, vector<128x16xbf16>, vector<128x16xf32> -> vector<128x16xf32>
    %57 = arith.addf %53, %56 : vector<128x16xf32>
    %58 = vector.extract_strided_slice %48 {offsets = [0, 48], sizes = [128, 16], strides = [1, 1]} : vector<128x64xf32> to vector<128x16xf32>
    %59 = arith.truncf %58 : vector<128x16xf32> to vector<128x16xbf16>
    %cst_36 = arith.constant dense<0.000000e+00> : vector<128x16xf32>
    %60 = tpu.matmul %6, %59, %cst_36 {dimension_numbers = #tpu.dot_dimension_numbers<[1], [0], [0], [1], [0, 0, 1, 1], [], []>} : vector<128x128xbf16>, vector<128x16xbf16>, vector<128x16xf32> -> vector<128x16xf32>
    %61 = arith.addf %57, %60 : vector<128x16xf32>
    %62 = arith.mulf %61, %61 : vector<128x16xf32>
    %cst_37 = arith.constant dense<0.000000e+00> : vector<128xf32>
    %63 = vector.multi_reduction <add>, %62, %cst_37 [1] : vector<128x16xf32> to vector<128xf32>
    %64 = vector.shape_cast %63 : vector<128xf32> to vector<128x1xf32>
    %cst_38 = arith.constant 1.000000e-15 : f32
    %65 = vector.broadcast %cst_38 : f32 to vector<128x1xf32>
    %66 = arith.maximumf %64, %65 : vector<128x1xf32>
    %67 = math.rsqrt %66 : vector<128x1xf32>
    %68 = vector.broadcast %67 : vector<128x1xf32> to vector<128x16xf32>
    %69 = arith.mulf %61, %68 : vector<128x16xf32>
    %cst_39 = arith.constant 0.000000e+00 : f32
    %70 = vector.broadcast %cst_39 : f32 to vector<128x16xf32>
    %71 = arith.maximumf %69, %70 : vector<128x16xf32>
    %72 = arith.mulf %71, %71 : vector<128x16xf32>
    %cst_40 = arith.constant dense<0.000000e+00> : vector<128xf32>
    %73 = vector.multi_reduction <add>, %72, %cst_40 [1] : vector<128x16xf32> to vector<128xf32>
    %74 = vector.shape_cast %73 : vector<128xf32> to vector<128x1xf32>
    %cst_41 = arith.constant 1.000000e-15 : f32
    %75 = vector.broadcast %cst_41 : f32 to vector<128x1xf32>
    %76 = arith.maximumf %74, %75 : vector<128x1xf32>
    %77 = math.rsqrt %76 : vector<128x1xf32>
    %78 = vector.broadcast %77 : vector<128x1xf32> to vector<128x16xf32>
    %79 = arith.mulf %71, %78 : vector<128x16xf32>
    %80 = arith.truncf %79 : vector<128x16xf32> to vector<128x16xbf16>
    %c0_42 = arith.constant 0 : index
    %c0_43 = arith.constant 0 : index
    %81 = vector.load %arg8[%c0_42, %c0_43] : memref<16x32xbf16, #tpu.memory_space<vmem>>, vector<16x32xbf16>
    %cst_44 = arith.constant dense<0.000000e+00> : vector<128x32xf32>
    %82 = tpu.matmul %80, %81, %cst_44 {dimension_numbers = #tpu.dot_dimension_numbers<[1], [0], [0], [1], [0, 0, 1, 1], [], []>} : vector<128x16xbf16>, vector<16x32xbf16>, vector<128x32xf32> -> vector<128x32xf32>
    %c0_45 = arith.constant 0 : index
    %c0_46 = arith.constant 0 : index
    %c0_47 = arith.constant 0 : index
    %83 = vector.load %arg5[%c0_45, %c0_46, %c0_47] : memref<4x128x128xf32, #tpu.memory_space<vmem>>, vector<1x128x128xf32>
    %84 = vector.shape_cast %83 : vector<1x128x128xf32> to vector<128x128xf32>
    %cst_48 = arith.constant dense<0.000000e+00> : vector<128x16xf32>
    %85 = tpu.matmul %84, %79, %cst_48 {dimension_numbers = #tpu.dot_dimension_numbers<[1], [0], [0], [1], [0, 0, 1, 1], [], []>} : vector<128x128xf32>, vector<128x16xf32>, vector<128x16xf32> -> vector<128x16xf32>
    %86 = arith.mulf %85, %85 : vector<128x16xf32>
    %cst_49 = arith.constant dense<0.000000e+00> : vector<128xf32>
    %87 = vector.multi_reduction <add>, %86, %cst_49 [1] : vector<128x16xf32> to vector<128xf32>
    %88 = vector.shape_cast %87 : vector<128xf32> to vector<128x1xf32>
    %c1_50 = arith.constant 1 : index
    %c0_51 = arith.constant 0 : index
    %c0_52 = arith.constant 0 : index
    %89 = vector.load %arg5[%c1_50, %c0_51, %c0_52] : memref<4x128x128xf32, #tpu.memory_space<vmem>>, vector<1x128x128xf32>
    %90 = vector.shape_cast %89 : vector<1x128x128xf32> to vector<128x128xf32>
    %cst_53 = arith.constant dense<0.000000e+00> : vector<128x16xf32>
    %91 = tpu.matmul %90, %79, %cst_53 {dimension_numbers = #tpu.dot_dimension_numbers<[1], [0], [0], [1], [0, 0, 1, 1], [], []>} : vector<128x128xf32>, vector<128x16xf32>, vector<128x16xf32> -> vector<128x16xf32>
    %92 = arith.mulf %91, %91 : vector<128x16xf32>
    %cst_54 = arith.constant dense<0.000000e+00> : vector<128xf32>
    %93 = vector.multi_reduction <add>, %92, %cst_54 [1] : vector<128x16xf32> to vector<128xf32>
    %94 = vector.shape_cast %93 : vector<128xf32> to vector<128x1xf32>
    %c2_55 = arith.constant 2 : index
    %c0_56 = arith.constant 0 : index
    %c0_57 = arith.constant 0 : index
    %95 = vector.load %arg5[%c2_55, %c0_56, %c0_57] : memref<4x128x128xf32, #tpu.memory_space<vmem>>, vector<1x128x128xf32>
    %96 = vector.shape_cast %95 : vector<1x128x128xf32> to vector<128x128xf32>
    %cst_58 = arith.constant dense<0.000000e+00> : vector<128x16xf32>
    %97 = tpu.matmul %96, %79, %cst_58 {dimension_numbers = #tpu.dot_dimension_numbers<[1], [0], [0], [1], [0, 0, 1, 1], [], []>} : vector<128x128xf32>, vector<128x16xf32>, vector<128x16xf32> -> vector<128x16xf32>
    %98 = arith.mulf %97, %97 : vector<128x16xf32>
    %cst_59 = arith.constant dense<0.000000e+00> : vector<128xf32>
    %99 = vector.multi_reduction <add>, %98, %cst_59 [1] : vector<128x16xf32> to vector<128xf32>
    %100 = vector.shape_cast %99 : vector<128xf32> to vector<128x1xf32>
    %c3_60 = arith.constant 3 : index
    %c0_61 = arith.constant 0 : index
    %c0_62 = arith.constant 0 : index
    %101 = vector.load %arg5[%c3_60, %c0_61, %c0_62] : memref<4x128x128xf32, #tpu.memory_space<vmem>>, vector<1x128x128xf32>
    %102 = vector.shape_cast %101 : vector<1x128x128xf32> to vector<128x128xf32>
    %cst_63 = arith.constant dense<0.000000e+00> : vector<128x16xf32>
    %103 = tpu.matmul %102, %79, %cst_63 {dimension_numbers = #tpu.dot_dimension_numbers<[1], [0], [0], [1], [0, 0, 1, 1], [], []>} : vector<128x128xf32>, vector<128x16xf32>, vector<128x16xf32> -> vector<128x16xf32>
    %104 = arith.mulf %103, %103 : vector<128x16xf32>
    %cst_64 = arith.constant dense<0.000000e+00> : vector<128xf32>
    %105 = vector.multi_reduction <add>, %104, %cst_64 [1] : vector<128x16xf32> to vector<128xf32>
    %106 = vector.shape_cast %105 : vector<128xf32> to vector<128x1xf32>
    %107 = arith.mulf %88, %94 : vector<128x1xf32>
    %108 = arith.mulf %100, %106 : vector<128x1xf32>
    %cst_65 = arith.constant 1.000000e-15 : f32
    %109 = vector.broadcast %cst_65 : f32 to vector<128x1xf32>
    %110 = arith.addf %108, %109 : vector<128x1xf32>
    %111 = arith.divf %107, %110 : vector<128x1xf32>
    %112 = arith.cmpf one, %111, %111 : vector<128x1xf32>
    %cst_66 = arith.constant dense<true> : vector<128x1xi1>
    %113 = arith.xori %112, %cst_66 : vector<128x1xi1>
    %114 = arith.cmpf one, %35, %35 : vector<128x1xf32>
    %cst_67 = arith.constant dense<true> : vector<128x1xi1>
    %115 = arith.xori %114, %cst_67 : vector<128x1xi1>
    %116 = arith.andi %113, %115 : vector<128x1xi1>
    %cst_68 = arith.constant 0.000000e+00 : f32
    %117 = vector.broadcast %cst_68 : f32 to vector<128x1xf32>
    %118 = arith.cmpf one, %111, %117 : vector<128x1xf32>
    %119 = arith.andi %116, %118 : vector<128x1xi1>
    %cst_69 = arith.constant 1.000000e+00 : f32
    %120 = vector.broadcast %cst_69 : f32 to vector<128x1xf32>
    %121 = arith.select %119, %111, %120 : vector<128x1xi1>, vector<128x1xf32>
    %122 = arith.divf %35, %121 : vector<128x1xf32>
    %123 = math.rsqrt %122 : vector<128x1xf32>
    %124 = math.rsqrt %123 : vector<128x1xf32>
    %cst_70 = arith.constant 1.000000e+00 : f32
    %125 = vector.broadcast %cst_70 : f32 to vector<128x1xf32>
    %126 = arith.select %119, %124, %125 : vector<128x1xi1>, vector<128x1xf32>
    %127 = vector.broadcast %126 : vector<128x1xf32> to vector<128x32xf32>
    %128 = arith.mulf %82, %127 : vector<128x32xf32>
    %c0_71 = arith.constant 0 : index
    %c0_72 = arith.constant 0 : index
    %129 = vector.load %arg9[%c0_71, %c0_72] : memref<128x32xf32, #tpu.memory_space<vmem>>, vector<128x32xf32>
    %130 = arith.addf %128, %129 : vector<128x32xf32>
    %131 = vector.extract_strided_slice %130 {offsets = [0, 0], sizes = [128, 8], strides = [1, 1]} : vector<128x32xf32> to vector<128x8xf32>
    %132 = vector.extract_strided_slice %130 {offsets = [0, 8], sizes = [128, 8], strides = [1, 1]} : vector<128x32xf32> to vector<128x8xf32>
    %133 = arith.truncf %132 : vector<128x8xf32> to vector<128x8xbf16>
    %cst_73 = arith.constant dense<0.000000e+00> : vector<128x8xf32>
    %134 = tpu.matmul %2, %133, %cst_73 {dimension_numbers = #tpu.dot_dimension_numbers<[1], [0], [0], [1], [0, 0, 1, 1], [], []>} : vector<128x128xbf16>, vector<128x8xbf16>, vector<128x8xf32> -> vector<128x8xf32>
    %135 = arith.addf %131, %134 : vector<128x8xf32>
    %136 = vector.extract_strided_slice %130 {offsets = [0, 16], sizes = [128, 8], strides = [1, 1]} : vector<128x32xf32> to vector<128x8xf32>
    %137 = arith.truncf %136 : vector<128x8xf32> to vector<128x8xbf16>
    %cst_74 = arith.constant dense<0.000000e+00> : vector<128x8xf32>
    %138 = tpu.matmul %4, %137, %cst_74 {dimension_numbers = #tpu.dot_dimension_numbers<[1], [0], [0], [1], [0, 0, 1, 1], [], []>} : vector<128x128xbf16>, vector<128x8xbf16>, vector<128x8xf32> -> vector<128x8xf32>
    %139 = arith.addf %135, %138 : vector<128x8xf32>
    %140 = vector.extract_strided_slice %130 {offsets = [0, 24], sizes = [128, 8], strides = [1, 1]} : vector<128x32xf32> to vector<128x8xf32>
    %141 = arith.truncf %140 : vector<128x8xf32> to vector<128x8xbf16>
    %cst_75 = arith.constant dense<0.000000e+00> : vector<128x8xf32>
    %142 = tpu.matmul %6, %141, %cst_75 {dimension_numbers = #tpu.dot_dimension_numbers<[1], [0], [0], [1], [0, 0, 1, 1], [], []>} : vector<128x128xbf16>, vector<128x8xbf16>, vector<128x8xf32> -> vector<128x8xf32>
    %143 = arith.addf %139, %142 : vector<128x8xf32>
    %144 = arith.mulf %143, %143 : vector<128x8xf32>
    %cst_76 = arith.constant dense<0.000000e+00> : vector<128xf32>
    %145 = vector.multi_reduction <add>, %144, %cst_76 [1] : vector<128x8xf32> to vector<128xf32>
    %146 = vector.shape_cast %145 : vector<128xf32> to vector<128x1xf32>
    %cst_77 = arith.constant 1.000000e-15 : f32
    %147 = vector.broadcast %cst_77 : f32 to vector<128x1xf32>
    %148 = arith.maximumf %146, %147 : vector<128x1xf32>
    %149 = math.rsqrt %148 : vector<128x1xf32>
    %150 = vector.broadcast %149 : vector<128x1xf32> to vector<128x8xf32>
    %151 = arith.mulf %143, %150 : vector<128x8xf32>
    %152 = arith.mulf %151, %151 : vector<128x8xf32>
    %cst_78 = arith.constant dense<0.000000e+00> : vector<128xf32>
    %153 = vector.multi_reduction <add>, %152, %cst_78 [1] : vector<128x8xf32> to vector<128xf32>
    %154 = vector.shape_cast %153 : vector<128xf32> to vector<128x1xf32>
    %cst_79 = arith.constant 1.000000e-15 : f32
    %155 = vector.broadcast %cst_79 : f32 to vector<128x1xf32>
    %156 = arith.maximumf %154, %155 : vector<128x1xf32>
    %157 = math.rsqrt %156 : vector<128x1xf32>
    %158 = vector.broadcast %157 : vector<128x1xf32> to vector<128x8xf32>
    %159 = arith.mulf %151, %158 : vector<128x8xf32>
    %c0_80 = arith.constant 0 : index
    %c0_81 = arith.constant 0 : index
    %160 = vector.load %arg10[%c0_80, %c0_81] : memref<128x8xf32, #tpu.memory_space<vmem>>, vector<128x8xf32>
    tpu.vector_store %arg10[%c0_80, %c0_81], %159 {strides = array<i32>} : memref<128x8xf32, #tpu.memory_space<vmem>>, vector<128x8xf32>,
    return
  }
  func.func @transform_0(%arg0: i32) -> (i32, i32) {
    %c0_i32 = arith.constant 0 : i32
    %c0_i32_0 = arith.constant 0 : i32
    return %arg0, %c0_i32 : i32, i32
  }
  func.func @transform_1(%arg0: i32) -> (i32, i32, i32) {
    %c0_i32 = arith.constant 0 : i32
    %c0_i32_0 = arith.constant 0 : i32
    %c0_i32_1 = arith.constant 0 : i32
    return %arg0, %c0_i32, %c0_i32_0 : i32, i32, i32
  }
  func.func @transform_2(%arg0: i32) -> (i32, i32, i32) {
    %c0_i32 = arith.constant 0 : i32
    %c0_i32_0 = arith.constant 0 : i32
    %c0_i32_1 = arith.constant 0 : i32
    return %arg0, %c0_i32, %c0_i32_0 : i32, i32, i32
  }
  func.func @transform_3(%arg0: i32) -> (i32, i32, i32) {
    %c0_i32 = arith.constant 0 : i32
    %c0_i32_0 = arith.constant 0 : i32
    %c0_i32_1 = arith.constant 0 : i32
    return %arg0, %c0_i32, %c0_i32_0 : i32, i32, i32
  }
  func.func @transform_4(%arg0: i32) -> (i32, i32, i32) {
    %c0_i32 = arith.constant 0 : i32
    %c0_i32_0 = arith.constant 0 : i32
    %c0_i32_1 = arith.constant 0 : i32
    %c0_i32_2 = arith.constant 0 : i32
    return %c0_i32, %c0_i32_0, %c0_i32_1 : i32, i32, i32
  }
  func.func @transform_5(%arg0: i32) -> (i32, i32) {
    %c0_i32 = arith.constant 0 : i32
    %c0_i32_0 = arith.constant 0 : i32
    %c0_i32_1 = arith.constant 0 : i32
    return %c0_i32, %c0_i32_0 : i32, i32
  }
  func.func @transform_6(%arg0: i32) -> (i32, i32) {
    %c0_i32 = arith.constant 0 : i32
    %c0_i32_0 = arith.constant 0 : i32
    return %arg0, %c0_i32 : i32, i32
  }
  func.func @transform_7(%arg0: i32) -> (i32, i32) {
    %c0_i32 = arith.constant 0 : i32
    %c0_i32_0 = arith.constant 0 : i32
    %c0_i32_1 = arith.constant 0 : i32
    return %c0_i32, %c0_i32_0 : i32, i32
  }
  func.func @transform_8(%arg0: i32) -> (i32, i32) {
    %c0_i32 = arith.constant 0 : i32
    %c0_i32_0 = arith.constant 0 : i32
    return %arg0, %c0_i32 : i32, i32
  }
  func.func @transform_9(%arg0: i32) -> (i32, i32) {
    %c0_i32 = arith.constant 0 : i32
    %c0_i32_0 = arith.constant 0 : i32
    return %arg0, %c0_i32 : i32, i32
  }
}

</mosaic_0001>

<llo_original>
// kernel: gnn_forward.1
$region0: #{gnn_forward.1}
  #allocation0 [shape = 'u32[]', space=smem, size = 0x4, offset = 0x4, fixed_abs, tag = 'smem constant byte address 0x4 - core index']
  #allocation1 [shape = 'u32[144,128]{1,0:T(1,128)}', space=vmem, size = 0x12000, scoped, tag = 'internal scratch']
  %s0 = inlined_call_operand.vmem [shape: f32[256,8], index: 0, kind: input, shape index: {}]
  %s1 = inlined_call_operand.vmem [shape: bf16[2,128,128], index: 1, kind: input, shape index: {}]
  %s2 = inlined_call_operand.vmem [shape: bf16[2,128,128], index: 2, kind: input, shape index: {}]
  %s3 = inlined_call_operand.hbm [shape: bf16[2,128,128], index: 3, kind: input, shape index: {}]
  %s4 = inlined_call_operand.vmem [shape: f32[4,128,128], index: 4, kind: input, shape index: {}]
  %s5 = inlined_call_operand.vmem [shape: bf16[8,64], index: 5, kind: input, shape index: {}]
  %s6 = inlined_call_operand.vmem [shape: f32[256,64], index: 6, kind: input, shape index: {}]
  %s7 = inlined_call_operand.vmem [shape: bf16[16,32], index: 7, kind: input, shape index: {}]
  %s8 = inlined_call_operand.vmem [shape: f32[256,32], index: 8, kind: input, shape index: {}]
  %s9 = inlined_call_operand.vmem [shape: f32[256,8], index: 9, kind: output, shape index: {}]
  %s10 = sld [smem:[#allocation0]]
  $region73: #{gnn_forward.1} parent=0
    _
  %s12 = ssub.s32 1, %s10
  %s13 = scalar_select 0, %s12, %s10
  $region1: #{gnn_forward.1} parent=0
    #allocation2 [shape = 'u8[65536]{0}', space=vmem, size = 0x10000, scoped, tag = 'input window, operand 3']
    #allocation3 [shape = 's32[2]{0}', space=sflag, size = 0x8, scoped, tag = 'scoped memory for gnn_forward.1']
    %14 = vsyncpa [#allocation3], 0
    %s15 = scalar_lea.sflag [#allocation3], 1
    %16 = vsyncpa %s15, 0
    loop: start=0, step=1, limit=4
    $region2: #{gnn_forward.1} parent=1 // loop_pre_header
      _
    $region3: #{gnn_forward.1} parent=1 // loop_header
      %s18 = sphi 0, %s22
      %p19 = scmp.ge.s32.totalorder %s18, 4
      %s28 = sphi 0, %s30
      %s31 = sphi 0, %s28
      %s32 = sphi 0, %s31
      %s48 = sphi 0, %s32
      %s54 = sphi 0, %s56
      %s57 = sphi 0, %s54
      %s58 = sphi 0, %s57
      %s74 = sphi 0, %s58
      %s80 = sphi 0, %s82
      %s83 = sphi 0, %s80
      %s84 = sphi 0, %s83
      %s100 = sphi 0, %s84
      %s106 = sphi 0, %s108
      %s109 = sphi 0, %s106
      %s110 = sphi 0, %s109
      %s126 = sphi 0, %s110
      %s130 = sphi 0, %s130
      %s132 = sphi 0, %s130
      %s133 = sphi 0, %s132
      %s147 = sphi 0, %s133
      %s151 = sphi 0, %s151
      %s153 = sphi 0, %s151
      %s154 = sphi 0, %s153
      %s168 = sphi 0, %s154
      %s174 = sphi 0, %s176
      %s177 = sphi 0, %s174
      %s178 = sphi 0, %s177
      %s194 = sphi 0, %s178
      %s198 = sphi 0, %s198
      %s200 = sphi 0, %s198
      %s201 = sphi 0, %s200
      %s215 = sphi 0, %s201
      %s221 = sphi 0, %s223
      %s224 = sphi 0, %s221
      %s225 = sphi 0, %s224
      %s241 = sphi 0, %s225
      %s247 = sphi 0, %s249
      %s250 = sphi 0, %s247
      %s251 = sphi 0, %s250
      %s267 = sphi 0, %s251
    $region4: #{gnn_forward.1} parent=1 // loop_header_branch
      %21 = sbr.rel (%p19) target = $region8
    $region5: #{gnn_forward.1} parent=1 // loop_body
      %s23 = ssub.s32 %s18, 1
      %s24 = ssub.s32 %s18, 2
      %s25 = sadd.s32 %s18, 1
      %s26 = ssub.s32 %s18, %s25
      %p27 = scmp.eq.s32.totalorder %s26, 0
      %s29 = sadd.s32 %s28, 1
      %s30 = scalar_select %p27, %s28, %s29
      %p33 = pneg %p27
      %p34 = scmp.eq.s32.totalorder %s18, 1
      %p35 = por %p33, %p34
      %p36 = scmp.ne.s32.totalorder %s28, %s31
      %p37 = scmp.eq.s32.totalorder %s18, 0
      %p38 = por %p36, %p37
      %p39 = scmp.ne.s32.totalorder %s28, %s31
      %p40 = scmp.eq.s32.totalorder %s23, 1
      %p41 = por %p39, %p40
      %p42 = scmp.ne.s32.totalorder %s31, %s32
      %p43 = scmp.eq.s32.totalorder %s23, 0
      %p44 = por %p42, %p43
      %p45 = scmp.ne.s32.totalorder %s31, %s32
      %p46 = scmp.eq.s32.totalorder %s24, 1
      %p47 = por %p45, %p46
      %p49 = scmp.ne.s32.totalorder %s32, %s48
      %p50 = scmp.eq.s32.totalorder %s24, 0
      %p51 = por %p49, %p50
      %s52 = ssub.s32 %s18, %s25
      %p53 = scmp.eq.s32.totalorder %s52, 0
      %s55 = sadd.s32 %s54, 1
      %s56 = scalar_select %p53, %s54, %s55
      %p59 = pneg %p53
      %p60 = scmp.eq.s32.totalorder %s18, 1
      %p61 = por %p59, %p60
      %p62 = scmp.ne.s32.totalorder %s54, %s57
      %p63 = scmp.eq.s32.totalorder %s18, 0
      %p64 = por %p62, %p63
      %p65 = scmp.ne.s32.totalorder %s54, %s57
      %p66 = scmp.eq.s32.totalorder %s23, 1
      %p67 = por %p65, %p66
      %p68 = scmp.ne.s32.totalorder %s57, %s58
      %p69 = scmp.eq.s32.totalorder %s23, 0
      %p70 = por %p68, %p69
      %p71 = scmp.ne.s32.totalorder %s57, %s58
      %p72 = scmp.eq.s32.totalorder %s24, 1
      %p73 = por %p71, %p72
      %p75 = scmp.ne.s32.totalorder %s58, %s74
      %p76 = scmp.eq.s32.totalorder %s24, 0
      %p77 = por %p75, %p76
      %s78 = ssub.s32 %s18, %s25
      %p79 = scmp.eq.s32.totalorder %s78, 0
      %s81 = sadd.s32 %s80, 1
      %s82 = scalar_select %p79, %s80, %s81
      %p85 = pneg %p79
      %p86 = scmp.eq.s32.totalorder %s18, 1
      %p87 = por %p85, %p86
      %p88 = scmp.ne.s32.totalorder %s80, %s83
      %p89 = scmp.eq.s32.totalorder %s18, 0
      %p90 = por %p88, %p89
      %p91 = scmp.ne.s32.totalorder %s80, %s83
      %p92 = scmp.eq.s32.totalorder %s23, 1
      %p93 = por %p91, %p92
      %p94 = scmp.ne.s32.totalorder %s83, %s84
      %p95 = scmp.eq.s32.totalorder %s23, 0
      %p96 = por %p94, %p95
      %p97 = scmp.ne.s32.totalorder %s83, %s84
      %p98 = scmp.eq.s32.totalorder %s24, 1
      %p99 = por %p97, %p98
      %p101 = scmp.ne.s32.totalorder %s84, %s100
      %p102 = scmp.eq.s32.totalorder %s24, 0
      %p103 = por %p101, %p102
      %s104 = ssub.s32 %s18, %s25
      %p105 = scmp.eq.s32.totalorder %s104, 0
      %s107 = sadd.s32 %s106, 1
      %s108 = scalar_select %p105, %s106, %s107
      %p111 = pneg %p105
      %p112 = scmp.eq.s32.totalorder %s18, 1
      %p113 = por %p111, %p112
      %p114 = scmp.ne.s32.totalorder %s106, %s109
      %p115 = scmp.eq.s32.totalorder %s18, 0
      %p116 = por %p114, %p115
      %p117 = scmp.ne.s32.totalorder %s106, %s109
      %p118 = scmp.eq.s32.totalorder %s23, 1
      %p119 = por %p117, %p118
      %p120 = scmp.ne.s32.totalorder %s109, %s110
      %p121 = scmp.eq.s32.totalorder %s23, 0
      %p122 = por %p120, %p121
      %p123 = scmp.ne.s32.totalorder %s109, %s110
      %p124 = scmp.eq.s32.totalorder %s24, 1
      %p125 = por %p123, %p124
      %p127 = scmp.ne.s32.totalorder %s110, %s126
      %p128 = scmp.eq.s32.totalorder %s24, 0
      %p129 = por %p127, %p128
      %s131 = sadd.s32 %s130, 1
      %p134 = scmp.eq.s32.totalorder %s18, 1
      %p135 = scmp.ne.s32.totalorder %s130, %s132
      %p136 = scmp.eq.s32.totalorder %s18, 0
      %p137 = por %p135, %p136
      %p138 = scmp.ne.s32.totalorder %s130, %s132
      %p139 = scmp.eq.s32.totalorder %s23, 1
      %p140 = por %p138, %p139
      %p141 = scmp.ne.s32.totalorder %s132, %s133
      %p142 = scmp.eq.s32.totalorder %s23, 0
      %p143 = por %p141, %p142
      %p144 = scmp.ne.s32.totalorder %s132, %s133
      %p145 = scmp.eq.s32.totalorder %s24, 1
      %p146 = por %p144, %p145
      %p148 = scmp.ne.s32.totalorder %s133, %s147
      %p149 = scmp.eq.s32.totalorder %s24, 0
      %p150 = por %p148, %p149
      %s152 = sadd.s32 %s151, 1
      %p155 = scmp.eq.s32.totalorder %s18, 1
      %p156 = scmp.ne.s32.totalorder %s151, %s153
      %p157 = scmp.eq.s32.totalorder %s18, 0
      %p158 = por %p156, %p157
      %p159 = scmp.ne.s32.totalorder %s151, %s153
      %p160 = scmp.eq.s32.totalorder %s23, 1
      %p161 = por %p159, %p160
      %p162 = scmp.ne.s32.totalorder %s153, %s154
      %p163 = scmp.eq.s32.totalorder %s23, 0
      %p164 = por %p162, %p163
      %p165 = scmp.ne.s32.totalorder %s153, %s154
      %p166 = scmp.eq.s32.totalorder %s24, 1
      %p167 = por %p165, %p166
      %p169 = scmp.ne.s32.totalorder %s154, %s168
      %p170 = scmp.eq.s32.totalorder %s24, 0
      %p171 = por %p169, %p170
      %s172 = ssub.s32 %s18, %s25
      %p173 = scmp.eq.s32.totalorder %s172, 0
      %s175 = sadd.s32 %s174, 1
      %s176 = scalar_select %p173, %s174, %s175
      %p179 = pneg %p173
      %p180 = scmp.eq.s32.totalorder %s18, 1
      %p181 = por %p179, %p180
      %p182 = scmp.ne.s32.totalorder %s174, %s177
      %p183 = scmp.eq.s32.totalorder %s18, 0
      %p184 = por %p182, %p183
      %p185 = scmp.ne.s32.totalorder %s174, %s177
      %p186 = scmp.eq.s32.totalorder %s23, 1
      %p187 = por %p185, %p186
      %p188 = scmp.ne.s32.totalorder %s177, %s178
      %p189 = scmp.eq.s32.totalorder %s23, 0
      %p190 = por %p188, %p189
      %p191 = scmp.ne.s32.totalorder %s177, %s178
      %p192 = scmp.eq.s32.totalorder %s24, 1
      %p193 = por %p191, %p192
      %p195 = scmp.ne.s32.totalorder %s178, %s194
      %p196 = scmp.eq.s32.totalorder %s24, 0
      %p197 = por %p195, %p196
      %s199 = sadd.s32 %s198, 1
      %p202 = scmp.eq.s32.totalorder %s18, 1
      %p203 = scmp.ne.s32.totalorder %s198, %s200
      %p204 = scmp.eq.s32.totalorder %s18, 0
      %p205 = por %p203, %p204
      %p206 = scmp.ne.s32.totalorder %s198, %s200
      %p207 = scmp.eq.s32.totalorder %s23, 1
      %p208 = por %p206, %p207
      %p209 = scmp.ne.s32.totalorder %s200, %s201
      %p210 = scmp.eq.s32.totalorder %s23, 0
      %p211 = por %p209, %p210
      %p212 = scmp.ne.s32.totalorder %s200, %s201
      %p213 = scmp.eq.s32.totalorder %s24, 1
      %p214 = por %p212, %p213
      %p216 = scmp.ne.s32.totalorder %s201, %s215
      %p217 = scmp.eq.s32.totalorder %s24, 0
      %p218 = por %p216, %p217
      %s219 = ssub.s32 %s18, %s25
      %p220 = scmp.eq.s32.totalorder %s219, 0
      %s222 = sadd.s32 %s221, 1
      %s223 = scalar_select %p220, %s221, %s222
      %p226 = pneg %p220
      %p227 = scmp.eq.s32.totalorder %s18, 1
      %p228 = por %p226, %p227
      %p229 = scmp.ne.s32.totalorder %s221, %s224
      %p230 = scmp.eq.s32.totalorder %s18, 0
      %p231 = por %p229, %p230
      %p232 = scmp.ne.s32.totalorder %s221, %s224
      %p233 = scmp.eq.s32.totalorder %s23, 1
      %p234 = por %p232, %p233
      %p235 = scmp.ne.s32.totalorder %s224, %s225
      %p236 = scmp.eq.s32.totalorder %s23, 0
      %p237 = por %p235, %p236
      %p238 = scmp.ne.s32.totalorder %s224, %s225
      %p239 = scmp.eq.s32.totalorder %s24, 1
      %p240 = por %p238, %p239
      %p242 = scmp.ne.s32.totalorder %s225, %s241
      %p243 = scmp.eq.s32.totalorder %s24, 0
      %p244 = por %p242, %p243
      %s245 = ssub.s32 %s18, %s25
      %p246 = scmp.eq.s32.totalorder %s245, 0
      %s248 = sadd.s32 %s247, 1
      %s249 = scalar_select %p246, %s247, %s248
      %p252 = pneg %p246
      %p253 = scmp.eq.s32.totalorder %s18, 1
      %p254 = por %p252, %p253
      %p255 = scmp.ne.s32.totalorder %s247, %s250
      %p256 = scmp.eq.s32.totalorder %s18, 0
      %p257 = por %p255, %p256
      %p258 = scmp.ne.s32.totalorder %s247, %s250
      %p259 = scmp.eq.s32.totalorder %s23, 1
      %p260 = por %p258, %p259
      %p261 = scmp.ne.s32.totalorder %s250, %s251
      %p262 = scmp.eq.s32.totalorder %s23, 0
      %p263 = por %p261, %p262
      %p264 = scmp.ne.s32.totalorder %s250, %s251
      %p265 = scmp.eq.s32.totalorder %s24, 1
      %p266 = por %p264, %p265
      %p268 = scmp.ne.s32.totalorder %s251, %s267
      %p269 = scmp.eq.s32.totalorder %s24, 0
      %p270 = por %p268, %p269
      %p271 = scmp.le.s32.totalorder 1, %s18
      %p272 = scmp.lt.s32.totalorder %s18, 3
      %p273 = pnand %p271, %p272
      %p274 = pneg %p273
      // Predicated region
      $region9: #{gnn_forward.1} parent=5 // pred_check
        _
      $region10: #{gnn_forward.1} parent=5 // pred_check_branch
        %276 = sbr.rel (%p273) target = $region12
      $region11: #{gnn_forward.1} parent=5 // pred_region
        %s277 = ssub.s32 %s18, 1
        // Predicated region
        $region13: #{gnn_forward.1} parent=11 // pred_check
          %p278 = pneg %p143
        $region14: #{gnn_forward.1} parent=11 // pred_check_branch
          %280 = sbr.rel (%p278) target = $region16
        $region15: #{gnn_forward.1} parent=11 // pred_region
          _
        $region16: #{gnn_forward.1} parent=11 // pred_fallthru
          _
        // Predicated region
        $region17: #{gnn_forward.1} parent=11 // pred_check
          %p281 = pneg %p164
        $region18: #{gnn_forward.1} parent=11 // pred_check_branch
          %283 = sbr.rel (%p281) target = $region20
        $region19: #{gnn_forward.1} parent=11 // pred_region
          _
        $region20: #{gnn_forward.1} parent=11 // pred_fallthru
          _
        // Predicated region
        $region21: #{gnn_forward.1} parent=11 // pred_check
          %p284 = pneg %p211
        $region22: #{gnn_forward.1} parent=11 // pred_check_branch
          %286 = sbr.rel (%p284) target = $region24
        $region23: #{gnn_forward.1} parent=11 // pred_region
          _
        $region24: #{gnn_forward.1} parent=11 // pred_fallthru
          _
      $region12: #{gnn_forward.1} parent=5 // pred_fallthru
        _
      %p287 = scmp.lt.s32.totalorder %s18, 2
      // Predicated region
      $region25: #{gnn_forward.1} parent=5 // pred_check
        %p288 = pneg %p287
      $region26: #{gnn_forward.1} parent=5 // pred_check_branch
        %290 = sbr.rel (%p288) target = $region28
      $region27: #{gnn_forward.1} parent=5 // pred_region
        // Predicated region
        $region29: #{gnn_forward.1} parent=27 // pred_check
          %p291 = pneg %p38
        $region30: #{gnn_forward.1} parent=27 // pred_check_branch
          %293 = sbr.rel (%p291) target = $region32
        $region31: #{gnn_forward.1} parent=27 // pred_region
          %s294 = smul.u32 16, %s18
          %p295 = scmp.lt.s32.totalorder %s294, 31
          %s296 = scalar_select %p295, %s294, 31
          %s297 = smul.addr %s296, 8
          %s298 = scalar_lea.vmem %s0, %s297
          %s299 = smul.u32 16, %s18
        $region32: #{gnn_forward.1} parent=27 // pred_fallthru
          _
        // Predicated region
        $region33: #{gnn_forward.1} parent=27 // pred_check
          %p300 = pneg %p64
        $region34: #{gnn_forward.1} parent=27 // pred_check_branch
          %302 = sbr.rel (%p300) target = $region36
        $region35: #{gnn_forward.1} parent=27 // pred_region
          %p303 = scmp.lt.s32.totalorder %s18, 1
          %s304 = scalar_select %p303, %s18, 1
          %s305 = smul.addr %s304, 16
          %s306 = smul.addr %s305, 4
          %s307 = scalar_lea.vmem %s1, %s306
        $region36: #{gnn_forward.1} parent=27 // pred_fallthru
          _
        // Predicated region
        $region37: #{gnn_forward.1} parent=27 // pred_check
          %p308 = pneg %p90
        $region38: #{gnn_forward.1} parent=27 // pred_check_branch
          %310 = sbr.rel (%p308) target = $region40
        $region39: #{gnn_forward.1} parent=27 // pred_region
          %p311 = scmp.lt.s32.totalorder %s18, 1
          %s312 = scalar_select %p311, %s18, 1
          %s313 = smul.addr %s312, 16
          %s314 = smul.addr %s313, 4
          %s315 = scalar_lea.vmem %s2, %s314
        $region40: #{gnn_forward.1} parent=27 // pred_fallthru
          _
        // Predicated region
        $region41: #{gnn_forward.1} parent=27 // pred_check
          %p316 = pneg %p116
        $region42: #{gnn_forward.1} parent=27 // pred_check_branch
          %318 = sbr.rel (%p316) target = $region44
        $region43: #{gnn_forward.1} parent=27 // pred_region
          %s319 = sand.u32 %s106, 1
          %s320 = scalar_lea.sflag [#allocation3], %s319
          %s321 = sand.u32 %s106, 1
          %s322 = smul.addr %s321, 64
          %s323 = scalar_lea.vmem [#allocation2], %s322
          %s325 = ssub.s32 1024, 1024
          %326 = vsyncadd %s320, %s325
          %s327 = smul.addr %s18, 16
          %s328 = smul.addr %s327, 64
          %s329 = scalar_lea.hbm %s3, %s328
          %s330 = sshll.u32 %s323, 4
          %s331 = int_to_ptr.vmem [resolvable:$true] %s330
          %336 = dma.hbm_to_vmem [thread:$0]  %s329, 1024, %s331, %s320, 64, 64, 4
        $region44: #{gnn_forward.1} parent=27 // pred_fallthru
          _
        // Predicated region
        $region45: #{gnn_forward.1} parent=27 // pred_check
          %p337 = pneg %p184
        $region46: #{gnn_forward.1} parent=27 // pred_check_branch
          %339 = sbr.rel (%p337) target = $region48
        $region47: #{gnn_forward.1} parent=27 // pred_region
          %s340 = smul.u32 16, %s18
          %p341 = scmp.lt.s32.totalorder %s340, 31
          %s342 = scalar_select %p341, %s340, 31
          %s343 = smul.addr %s342, 8
          %s344 = scalar_lea.vmem %s6, %s343
          %s345 = smul.u32 16, %s18
        $region48: #{gnn_forward.1} parent=27 // pred_fallthru
          _
        // Predicated region
        $region49: #{gnn_forward.1} parent=27 // pred_check
          %p346 = pneg %p231
        $region50: #{gnn_forward.1} parent=27 // pred_check_branch
          %348 = sbr.rel (%p346) target = $region52
        $region51: #{gnn_forward.1} parent=27 // pred_region
          %s349 = smul.u32 16, %s18
          %p350 = scmp.lt.s32.totalorder %s349, 31
          %s351 = scalar_select %p350, %s349, 31
          %s352 = smul.addr %s351, 8
          %s353 = scalar_lea.vmem %s8, %s352
          %s354 = smul.u32 16, %s18
        $region52: #{gnn_forward.1} parent=27 // pred_fallthru
          _
      $region28: #{gnn_forward.1} parent=5 // pred_fallthru
        _
      %p355 = scmp.le.s32.totalorder 1, %s18
      %p356 = scmp.lt.s32.totalorder %s18, 3
      %p357 = pnand %p355, %p356
      %p358 = pneg %p357
      // Predicated region
      $region53: #{gnn_forward.1} parent=5 // pred_check
        _
      $region54: #{gnn_forward.1} parent=5 // pred_check_branch
        %360 = sbr.rel (%p357) target = $region56
      $region55: #{gnn_forward.1} parent=5 // pred_region
        %s361 = ssub.s32 %s18, 1
        %s362 = sand.u32 %s109, 1
        %s363 = scalar_lea.sflag [#allocation3], %s362
        %s364 = sand.u32 %s109, 1
        %s365 = smul.addr %s364, 64
        %s366 = scalar_lea.vmem [#allocation2], %s365
        // Predicated region
        $region57: #{gnn_forward.1} parent=55 // pred_check
          %p367 = pneg %p122
        $region58: #{gnn_forward.1} parent=55 // pred_check_branch
          %369 = sbr.rel (%p367) target = $region60
        $region59: #{gnn_forward.1} parent=55 // pred_region
          %370 = dma.done %s363, 1024
        $region60: #{gnn_forward.1} parent=55 // pred_fallthru
          _
        %s371 = smul.u32 16, %s23
        %p372 = scmp.lt.s32.totalorder %s371, 31
        %s373 = scalar_select %p372, %s371, 31
        %s374 = smul.addr %s373, 8
        %s375 = scalar_lea.vmem %s0, %s374
        %p376 = pneg %p44
        %p377 = pneg %p41
        %p378 = scmp.lt.s32.totalorder %s23, 1
        %s379 = scalar_select %p378, %s23, 1
        %s380 = smul.addr %s379, 16
        %s381 = smul.addr %s380, 4
        %s382 = scalar_lea.vmem %s1, %s381
        %p383 = pneg %p70
        %p384 = pneg %p67
        %p385 = scmp.lt.s32.totalorder %s23, 1
        %s386 = scalar_select %p385, %s23, 1
        %s387 = smul.addr %s386, 16
        %s388 = smul.addr %s387, 4
        %s389 = scalar_lea.vmem %s2, %s388
        %p390 = pneg %p96
        %p391 = pneg %p93
        %s392 = sand.u32 %s109, 1
        %s393 = scalar_lea.sflag [#allocation3], %s392
        %s394 = sand.u32 %s109, 1
        %s395 = smul.addr %s394, 64
        %s396 = scalar_lea.vmem [#allocation2], %s395
        %p397 = pneg %p122
        %p398 = pneg %p119
        %p399 = pneg %p143
        %p400 = pneg %p140
        %p401 = pneg %p164
        %p402 = pneg %p161
        %s403 = smul.u32 16, %s23
        %p404 = scmp.lt.s32.totalorder %s403, 31
        %s405 = scalar_select %p404, %s403, 31
        %s406 = smul.addr %s405, 8
        %s407 = scalar_lea.vmem %s6, %s406
        %p408 = pneg %p190
        %p409 = pneg %p187
        %p410 = pneg %p211
        %p411 = pneg %p208
        %s412 = smul.u32 16, %s23
        %p413 = scmp.lt.s32.totalorder %s412, 31
        %s414 = scalar_select %p413, %s412, 31
        %s415 = smul.addr %s414, 8
        %s416 = scalar_lea.vmem %s8, %s415
        %p417 = pneg %p237
        %p418 = pneg %p234
        %p419 = pneg %p263
        %p420 = pneg %p260
        %s421 = smul.u32 16, %s23
        %p422 = scmp.lt.s32.totalorder %s421, 31
        %s423 = scalar_select %p422, %s421, 31
        %s424 = smul.addr %s423, 8
        %s425 = scalar_lea.vmem %s9, %s424
        %s426 = smul.u32 16, %s23
        %p427 = scmp.lt.s32.totalorder %s426, 31
        %s428 = scalar_select %p427, %s426, 31
        %s429 = smul.addr %s428, 8
        %s430 = scalar_lea.vmem %s0, %s429
        %s431 = smul.u32 16, %s23
        %p432 = scmp.lt.s32.totalorder %s23, 1
        %s433 = scalar_select %p432, %s23, 1
        %s434 = smul.addr %s433, 16
        %s435 = smul.addr %s434, 4
        %s436 = scalar_lea.vmem %s1, %s435
        %p437 = scmp.lt.s32.totalorder %s23, 1
        %s438 = scalar_select %p437, %s23, 1
        %s439 = smul.addr %s438, 16
        %s440 = smul.addr %s439, 4
        %s441 = scalar_lea.vmem %s2, %s440
        %s442 = smul.u32 16, %s23
        %p443 = scmp.lt.s32.totalorder %s442, 31
        %s444 = scalar_select %p443, %s442, 31
        %s445 = smul.addr %s444, 8
        %s446 = scalar_lea.vmem %s6, %s445
        %s447 = smul.u32 16, %s23
        %s448 = smul.u32 16, %s23
        %p449 = scmp.lt.s32.totalorder %s448, 31
        %s450 = scalar_select %p449, %s448, 31
        %s451 = smul.addr %s450, 8
        %s452 = scalar_lea.vmem %s8, %s451
        %s453 = smul.u32 16, %s23
        %s454 = smul.u32 16, %s23
        %p455 = scmp.lt.s32.totalorder %s454, 31
        %s456 = scalar_select %p455, %s454, 31
        %s457 = smul.addr %s456, 8
        %s458 = scalar_lea.vmem %s9, %s457
        %s459 = smul.u32 16, %s23
        %v461 = vld [vmem:[%s430] sm:$0xff]
        %v462 = vld [vmem:[%s430 + $0x8] sm:$0xff]
        %v463 = vld [vmem:[%s430 + $0x10] sm:$0xff]
        %v464 = vld [vmem:[%s430 + $0x18] sm:$0xff]
        %v465 = vld [vmem:[%s430 + $0x20] sm:$0xff]
        %v466 = vld [vmem:[%s430 + $0x28] sm:$0xff]
        %v467 = vld [vmem:[%s430 + $0x30] sm:$0xff]
        %v468 = vld [vmem:[%s430 + $0x38] sm:$0xff]
        %v469 = vld [vmem:[%s430 + $0x40] sm:$0xff]
        %v470 = vld [vmem:[%s430 + $0x48] sm:$0xff]
        %v471 = vld [vmem:[%s430 + $0x50] sm:$0xff]
        %v472 = vld [vmem:[%s430 + $0x58] sm:$0xff]
        %v473 = vld [vmem:[%s430 + $0x60] sm:$0xff]
        %v474 = vld [vmem:[%s430 + $0x68] sm:$0xff]
        %v475 = vld [vmem:[%s430 + $0x70] sm:$0xff]
        %v476 = vld [vmem:[%s430 + $0x78] sm:$0xff]
        %v477 = vld [vmem:[%s436] sm:$0xf]
        %v478 = vld [vmem:[%s436 + $0x4] sm:$0xf]
        %v479 = vld [vmem:[%s436 + $0x8] sm:$0xf]
        %v480 = vld [vmem:[%s436 + $0xc] sm:$0xf]
        %v481 = vld [vmem:[%s436 + $0x10] sm:$0xf]
        %v482 = vld [vmem:[%s436 + $0x14] sm:$0xf]
        %v483 = vld [vmem:[%s436 + $0x18] sm:$0xf]
        %v484 = vld [vmem:[%s436 + $0x1c] sm:$0xf]
        %v485 = vld [vmem:[%s436 + $0x20] sm:$0xf]
        %v486 = vld [vmem:[%s436 + $0x24] sm:$0xf]
        %v487 = vld [vmem:[%s436 + $0x28] sm:$0xf]
        %v488 = vld [vmem:[%s436 + $0x2c] sm:$0xf]
        %v489 = vld [vmem:[%s436 + $0x30] sm:$0xf]
        %v490 = vld [vmem:[%s436 + $0x34] sm:$0xf]
        %v491 = vld [vmem:[%s436 + $0x38] sm:$0xf]
        %v492 = vld [vmem:[%s436 + $0x3c] sm:$0xf]
        %v493 = vld [vmem:[%s441] sm:$0xf]
        %v494 = vld [vmem:[%s441 + $0x4] sm:$0xf]
        %v495 = vld [vmem:[%s441 + $0x8] sm:$0xf]
        %v496 = vld [vmem:[%s441 + $0xc] sm:$0xf]
        %v497 = vld [vmem:[%s441 + $0x10] sm:$0xf]
        %v498 = vld [vmem:[%s441 + $0x14] sm:$0xf]
        %v499 = vld [vmem:[%s441 + $0x18] sm:$0xf]
        %v500 = vld [vmem:[%s441 + $0x1c] sm:$0xf]
        %v501 = vld [vmem:[%s441 + $0x20] sm:$0xf]
        %v502 = vld [vmem:[%s441 + $0x24] sm:$0xf]
        %v503 = vld [vmem:[%s441 + $0x28] sm:$0xf]
        %v504 = vld [vmem:[%s441 + $0x2c] sm:$0xf]
        %v505 = vld [vmem:[%s441 + $0x30] sm:$0xf]
        %v506 = vld [vmem:[%s441 + $0x34] sm:$0xf]
        %v507 = vld [vmem:[%s441 + $0x38] sm:$0xf]
        %v508 = vld [vmem:[%s441 + $0x3c] sm:$0xf]
        %v509 = vld [vmem:[%s366] sm:$0xf]
        %v510 = vld [vmem:[%s366 + $0x4] sm:$0xf]
        %v511 = vld [vmem:[%s366 + $0x8] sm:$0xf]
        %v512 = vld [vmem:[%s366 + $0xc] sm:$0xf]
        %v513 = vld [vmem:[%s366 + $0x10] sm:$0xf]
        %v514 = vld [vmem:[%s366 + $0x14] sm:$0xf]
        %v515 = vld [vmem:[%s366 + $0x18] sm:$0xf]
        %v516 = vld [vmem:[%s366 + $0x1c] sm:$0xf]
        %v517 = vld [vmem:[%s366 + $0x20] sm:$0xf]
        %v518 = vld [vmem:[%s366 + $0x24] sm:$0xf]
        %v519 = vld [vmem:[%s366 + $0x28] sm:$0xf]
        %v520 = vld [vmem:[%s366 + $0x2c] sm:$0xf]
        %v521 = vld [vmem:[%s366 + $0x30] sm:$0xf]
        %v522 = vld [vmem:[%s366 + $0x34] sm:$0xf]
        %v523 = vld [vmem:[%s366 + $0x38] sm:$0xf]
        %v524 = vld [vmem:[%s366 + $0x3c] sm:$0xf]
        %v525 = vld [vmem:[%s4] sm:$0xff]
        %v526 = vld [vmem:[%s4 + $0x8] sm:$0xff]
        %v527 = vld [vmem:[%s4 + $0x10] sm:$0xff]
        %v528 = vld [vmem:[%s4 + $0x18] sm:$0xff]
        %v529 = vld [vmem:[%s4 + $0x20] sm:$0xff]
        %v530 = vld [vmem:[%s4 + $0x28] sm:$0xff]
        %v531 = vld [vmem:[%s4 + $0x30] sm:$0xff]
        %v532 = vld [vmem:[%s4 + $0x38] sm:$0xff]
        %v533 = vld [vmem:[%s4 + $0x40] sm:$0xff]
        %v534 = vld [vmem:[%s4 + $0x48] sm:$0xff]
        %v535 = vld [vmem:[%s4 + $0x50] sm:$0xff]
        %v536 = vld [vmem:[%s4 + $0x58] sm:$0xff]
        %v537 = vld [vmem:[%s4 + $0x60] sm:$0xff]
        %v538 = vld [vmem:[%s4 + $0x68] sm:$0xff]
        %v539 = vld [vmem:[%s4 + $0x70] sm:$0xff]
        %v540 = vld [vmem:[%s4 + $0x78] sm:$0xff]
        %541 = vmatprep.subr.mxu0 0.0
        %542 = vmatpush1.msra.mxu0 %v476
        %543 = vmatprep.subr.mxu0 0.0
        %544 = vmatpush1.msra.mxu0 %v475
        %545 = vmatprep.subr.mxu0 0.0
        %546 = vmatpush1.msra.mxu0 %v474
        %547 = vmatprep.subr.mxu0 0.0
        %548 = vmatpush1.msra.mxu0 %v473
        %549 = vmatprep.subr.mxu0 0.0
        %550 = vmatpush1.msra.mxu0 %v472
        %551 = vmatprep.subr.mxu0 0.0
        %552 = vmatpush1.msra.mxu0 %v471
        %553 = vmatprep.subr.mxu0 0.0
        %554 = vmatpush1.msra.mxu0 %v470
        %555 = vmatprep.subr.mxu0 0.0
        %556 = vmatpush1.msra.mxu0 %v469
        %557 = vmatprep.subr.mxu0 0.0
        %558 = vmatpush1.msra.mxu0 %v468
        %559 = vmatprep.subr.mxu0 0.0
        %560 = vmatpush1.msra.mxu0 %v467
        %561 = vmatprep.subr.mxu0 0.0
        %562 = vmatpush1.msra.mxu0 %v466
        %563 = vmatprep.subr.mxu0 0.0
        %564 = vmatpush1.msra.mxu0 %v465
        %565 = vmatprep.subr.mxu0 0.0
        %566 = vmatpush1.msra.mxu0 %v464
        %567 = vmatprep.subr.mxu0 0.0
        %568 = vmatpush1.msra.mxu0 %v463
        %569 = vmatprep.subr.mxu0 0.0
        %570 = vmatpush1.msra.mxu0 %v462
        %571 = vmatprep.subr.mxu0 0.0
        %572 = vmatpush1.msra.mxu0 %v461
        %573 = vmatprep.subr.mxu0 0.0
        %574 = vmatpush2.msra.mxu0 0.0
        %575 = vmatprep.subr.mxu0 0.0
        %576 = vmatpush2.msra.mxu0 0.0
        %577 = vmatprep.subr.mxu0 0.0
        %578 = vmatpush2.msra.mxu0 0.0
        %579 = vmatprep.subr.mxu0 0.0
        %580 = vmatpush2.msra.mxu0 0.0
        %581 = vmatprep.subr.mxu0 0.0
        %582 = vmatpush2.msra.mxu0 0.0
        %583 = vmatprep.subr.mxu0 0.0
        %584 = vmatpush2.msra.mxu0 0.0
        %585 = vmatprep.subr.mxu0 0.0
        %586 = vmatpush2.msra.mxu0 0.0
        %587 = vmatprep.subr.mxu0 0.0
        %588 = vmatpush2.msra.mxu0 0.0
        %589 = vmatprep.subr.mxu0 0.0
        %590 = vmatpush2.msra.mxu0 0.0
        %591 = vmatprep.subr.mxu0 0.0
        %592 = vmatpush2.msra.mxu0 0.0
        %593 = vmatprep.subr.mxu0 0.0
        %594 = vmatpush2.msra.mxu0 0.0
        %595 = vmatprep.subr.mxu0 0.0
        %596 = vmatpush2.msra.mxu0 0.0
        %597 = vmatprep.subr.mxu0 0.0
        %598 = vmatpush2.msra.mxu0 0.0
        %599 = vmatprep.subr.mxu0 0.0
        %600 = vmatpush2.msra.mxu0 0.0
        %601 = vmatprep.subr.mxu0 0.0
        %602 = vmatpush2.msra.mxu0 0.0
        %603 = vmatprep.subr.mxu0 0.0
        %604 = vmatpush2.msra.mxu0 0.0
        %605 = vmatprep.mubr.f32.mxu0 0.0
        %606 = vmatmul.mubr.f32.gmra.mxu0 %v525
        %v607 = vpop.f32.mrf.mxu0
        %v608 = vadd.f32 0.0, %v607
        %v609 = vpop.f32.mrf.mxu0
        %610 = vmatprep.mubr.f32.mxu0 0.0
        %611 = vmatmul.mubr.f32.gmra.mxu0 %v526
        %v612 = vpop.f32.mrf.mxu0
        %v613 = vadd.f32 0.0, %v612
        %v614 = vpop.f32.mrf.mxu0
        %615 = vmatprep.mubr.f32.mxu0 0.0
        %616 = vmatmul.mubr.f32.gmra.mxu0 %v527
        %v617 = vpop.f32.mrf.mxu0
        %v618 = vadd.f32 0.0, %v617
        %v619 = vpop.f32.mrf.mxu0
        %620 = vmatprep.mubr.f32.mxu0 0.0
        %621 = vmatmul.mubr.f32.gmra.mxu0 %v528
        %v622 = vpop.f32.mrf.mxu0
        %v623 = vadd.f32 0.0, %v622
        %v624 = vpop.f32.mrf.mxu0
        %625 = vmatprep.mubr.f32.mxu0 0.0
        %626 = vmatmul.mubr.f32.gmra.mxu0 %v529
        %v627 = vpop.f32.mrf.mxu0
        %v628 = vadd.f32 0.0, %v627
        %v629 = vpop.f32.mrf.mxu0
        %630 = vmatprep.mubr.f32.mxu0 0.0
        %631 = vmatmul.mubr.f32.gmra.mxu0 %v530
        %v632 = vpop.f32.mrf.mxu0
        %v633 = vadd.f32 0.0, %v632
        %v634 = vpop.f32.mrf.mxu0
        %635 = vmatprep.mubr.f32.mxu0 0.0
        %636 = vmatmul.mubr.f32.gmra.mxu0 %v531
        %v637 = vpop.f32.mrf.mxu0
        %v638 = vadd.f32 0.0, %v637
        %v639 = vpop.f32.mrf.mxu0
        %640 = vmatprep.mubr.f32.mxu0 0.0
        %641 = vmatmul.mubr.f32.gmra.mxu0 %v532
        %v642 = vpop.f32.mrf.mxu0
        %v643 = vadd.f32 0.0, %v642
        %v644 = vpop.f32.mrf.mxu0
        %645 = vmatprep.mubr.f32.mxu0 0.0
        %646 = vmatmul.mubr.f32.gmra.mxu0 %v533
        %v647 = vpop.f32.mrf.mxu0
        %v648 = vadd.f32 0.0, %v647
        %v649 = vpop.f32.mrf.mxu0
        %650 = vmatprep.mubr.f32.mxu0 0.0
        %651 = vmatmul.mubr.f32.gmra.mxu0 %v534
        %v652 = vpop.f32.mrf.mxu0
        %v653 = vadd.f32 0.0, %v652
        %v654 = vpop.f32.mrf.mxu0
        %655 = vmatprep.mubr.f32.mxu0 0.0
        %656 = vmatmul.mubr.f32.gmra.mxu0 %v535
        %v657 = vpop.f32.mrf.mxu0
        %v658 = vadd.f32 0.0, %v657
        %v659 = vpop.f32.mrf.mxu0
        %660 = vmatprep.mubr.f32.mxu0 0.0
        %661 = vmatmul.mubr.f32.gmra.mxu0 %v536
        %v662 = vpop.f32.mrf.mxu0
        %v663 = vadd.f32 0.0, %v662
        %v664 = vpop.f32.mrf.mxu0
        %665 = vmatprep.mubr.f32.mxu0 0.0
        %666 = vmatmul.mubr.f32.gmra.mxu0 %v537
        %v667 = vpop.f32.mrf.mxu0
        %v668 = vadd.f32 0.0, %v667
        %v669 = vpop.f32.mrf.mxu0
        %670 = vmatprep.mubr.f32.mxu0 0.0
        %671 = vmatmul.mubr.f32.gmra.mxu0 %v538
        %v672 = vpop.f32.mrf.mxu0
        %v673 = vadd.f32 0.0, %v672
        %v674 = vpop.f32.mrf.mxu0
        %675 = vmatprep.mubr.f32.mxu0 0.0
        %676 = vmatmul.mubr.f32.gmra.mxu0 %v539
        %v677 = vpop.f32.mrf.mxu0
        %v678 = vadd.f32 0.0, %v677
        %v679 = vpop.f32.mrf.mxu0
        %680 = vmatprep.mubr.f32.mxu0 0.0
        %681 = vmatmul.mubr.f32.gmra.mxu0 %v540
        %v682 = vpop.f32.mrf.mxu0
        %v683 = vadd.f32 0.0, %v682
        %v684 = vpop.f32.mrf.mxu0
        %685 = vdwg.mxu0
        %v686 = vmul.f32 %v608, %v608
        %v687 = vmul.f32 %v613, %v613
        %v688 = vmul.f32 %v618, %v618
        %v689 = vmul.f32 %v623, %v623
        %v690 = vmul.f32 %v628, %v628
        %v691 = vmul.f32 %v633, %v633
        %v692 = vmul.f32 %v638, %v638
        %v693 = vmul.f32 %v643, %v643
        %v694 = vmul.f32 %v648, %v648
        %v695 = vmul.f32 %v653, %v653
        %v696 = vmul.f32 %v658, %v658
        %v697 = vmul.f32 %v663, %v663
        %v698 = vmul.f32 %v668, %v668
        %v699 = vmul.f32 %v673, %v673
        %v700 = vmul.f32 %v678, %v678
        %v701 = vmul.f32 %v683, %v683
        %vm702 = vcmask 64512
        %v703 = vsel %vm702, %v686, 0.0
        %704 = vadd.xlane.f32.xlu0 %v703
        %v705 = vpop.xlane.xlu0 %704
        %v706 = vsel %vm702, %v687, 0.0
        %707 = vadd.xlane.f32.xlu0 %v706
        %v708 = vpop.xlane.xlu0 %707
        %v709 = vsel %vm702, %v688, 0.0
        %710 = vadd.xlane.f32.xlu0 %v709
        %v711 = vpop.xlane.xlu0 %710
        %v712 = vsel %vm702, %v689, 0.0
        %713 = vadd.xlane.f32.xlu0 %v712
        %v714 = vpop.xlane.xlu0 %713
        %v715 = vsel %vm702, %v690, 0.0
        %716 = vadd.xlane.f32.xlu0 %v715
        %v717 = vpop.xlane.xlu0 %716
        %v718 = vsel %vm702, %v691, 0.0
        %719 = vadd.xlane.f32.xlu0 %v718
        %v720 = vpop.xlane.xlu0 %719
        %v721 = vsel %vm702, %v692, 0.0
        %722 = vadd.xlane.f32.xlu0 %v721
        %v723 = vpop.xlane.xlu0 %722
        %v724 = vsel %vm702, %v693, 0.0
        %725 = vadd.xlane.f32.xlu0 %v724
        %v726 = vpop.xlane.xlu0 %725
        %v727 = vsel %vm702, %v694, 0.0
        %728 = vadd.xlane.f32.xlu0 %v727
        %v729 = vpop.xlane.xlu0 %728
        %v730 = vsel %vm702, %v695, 0.0
        %731 = vadd.xlane.f32.xlu0 %v730
        %v732 = vpop.xlane.xlu0 %731
        %v733 = vsel %vm702, %v696, 0.0
        %734 = vadd.xlane.f32.xlu0 %v733
        %v735 = vpop.xlane.xlu0 %734
        %v736 = vsel %vm702, %v697, 0.0
        %737 = vadd.xlane.f32.xlu0 %v736
        %v738 = vpop.xlane.xlu0 %737
        %v739 = vsel %vm702, %v698, 0.0
        %740 = vadd.xlane.f32.xlu0 %v739
        %v741 = vpop.xlane.xlu0 %740
        %v742 = vsel %vm702, %v699, 0.0
        %743 = vadd.xlane.f32.xlu0 %v742
        %v744 = vpop.xlane.xlu0 %743
        %v745 = vsel %vm702, %v700, 0.0
        %746 = vadd.xlane.f32.xlu0 %v745
        %v747 = vpop.xlane.xlu0 %746
        %v748 = vsel %vm702, %v701, 0.0
        %749 = vadd.xlane.f32.xlu0 %v748
        %v750 = vpop.xlane.xlu0 %749
        %s751 = scalar_lea.vmem %s4, 128
        %v752 = vld [vmem:[%s751] sm:$0xff]
        %v753 = vld [vmem:[%s751 + $0x8] sm:$0xff]
        %v754 = vld [vmem:[%s751 + $0x10] sm:$0xff]
        %v755 = vld [vmem:[%s751 + $0x18] sm:$0xff]
        %v756 = vld [vmem:[%s751 + $0x20] sm:$0xff]
        %v757 = vld [vmem:[%s751 + $0x28] sm:$0xff]
        %v758 = vld [vmem:[%s751 + $0x30] sm:$0xff]
        %v759 = vld [vmem:[%s751 + $0x38] sm:$0xff]
        %v760 = vld [vmem:[%s751 + $0x40] sm:$0xff]
        %v761 = vld [vmem:[%s751 + $0x48] sm:$0xff]
        %v762 = vld [vmem:[%s751 + $0x50] sm:$0xff]
        %v763 = vld [vmem:[%s751 + $0x58] sm:$0xff]
        %v764 = vld [vmem:[%s751 + $0x60] sm:$0xff]
        %v765 = vld [vmem:[%s751 + $0x68] sm:$0xff]
        %v766 = vld [vmem:[%s751 + $0x70] sm:$0xff]
        %v767 = vld [vmem:[%s751 + $0x78] sm:$0xff]
        %768 = vmatprep.subr.mxu0 0.0
        %769 = vmatpush1.msra.mxu0 %v476
        %770 = vmatprep.subr.mxu0 0.0
        %771 = vmatpush1.msra.mxu0 %v475
        %772 = vmatprep.subr.mxu0 0.0
        %773 = vmatpush1.msra.mxu0 %v474
        %774 = vmatprep.subr.mxu0 0.0
        %775 = vmatpush1.msra.mxu0 %v473
        %776 = vmatprep.subr.mxu0 0.0
        %777 = vmatpush1.msra.mxu0 %v472
        %778 = vmatprep.subr.mxu0 0.0
        %779 = vmatpush1.msra.mxu0 %v471
        %780 = vmatprep.subr.mxu0 0.0
        %781 = vmatpush1.msra.mxu0 %v470
        %782 = vmatprep.subr.mxu0 0.0
        %783 = vmatpush1.msra.mxu0 %v469
        %784 = vmatprep.subr.mxu0 0.0
        %785 = vmatpush1.msra.mxu0 %v468
        %786 = vmatprep.subr.mxu0 0.0
        %787 = vmatpush1.msra.mxu0 %v467
        %788 = vmatprep.subr.mxu0 0.0
        %789 = vmatpush1.msra.mxu0 %v466
        %790 = vmatprep.subr.mxu0 0.0
        %791 = vmatpush1.msra.mxu0 %v465
        %792 = vmatprep.subr.mxu0 0.0
        %793 = vmatpush1.msra.mxu0 %v464
        %794 = vmatprep.subr.mxu0 0.0
        %795 = vmatpush1.msra.mxu0 %v463
        %796 = vmatprep.subr.mxu0 0.0
        %797 = vmatpush1.msra.mxu0 %v462
        %798 = vmatprep.subr.mxu0 0.0
        %799 = vmatpush1.msra.mxu0 %v461
        %800 = vmatprep.subr.mxu0 0.0
        %801 = vmatpush2.msra.mxu0 0.0
        %802 = vmatprep.subr.mxu0 0.0
        %803 = vmatpush2.msra.mxu0 0.0
        %804 = vmatprep.subr.mxu0 0.0
        %805 = vmatpush2.msra.mxu0 0.0
        %806 = vmatprep.subr.mxu0 0.0
        %807 = vmatpush2.msra.mxu0 0.0
        %808 = vmatprep.subr.mxu0 0.0
        %809 = vmatpush2.msra.mxu0 0.0
        %810 = vmatprep.subr.mxu0 0.0
        %811 = vmatpush2.msra.mxu0 0.0
        %812 = vmatprep.subr.mxu0 0.0
        %813 = vmatpush2.msra.mxu0 0.0
        %814 = vmatprep.subr.mxu0 0.0
        %815 = vmatpush2.msra.mxu0 0.0
        %816 = vmatprep.subr.mxu0 0.0
        %817 = vmatpush2.msra.mxu0 0.0
        %818 = vmatprep.subr.mxu0 0.0
        %819 = vmatpush2.msra.mxu0 0.0
        %820 = vmatprep.subr.mxu0 0.0
        %821 = vmatpush2.msra.mxu0 0.0
        %822 = vmatprep.subr.mxu0 0.0
        %823 = vmatpush2.msra.mxu0 0.0
        %824 = vmatprep.subr.mxu0 0.0
        %825 = vmatpush2.msra.mxu0 0.0
        %826 = vmatprep.subr.mxu0 0.0
        %827 = vmatpush2.msra.mxu0 0.0
        %828 = vmatprep.subr.mxu0 0.0
        %829 = vmatpush2.msra.mxu0 0.0
        %830 = vmatprep.subr.mxu0 0.0
        %831 = vmatpush2.msra.mxu0 0.0
        %832 = vmatprep.mubr.f32.mxu0 0.0
        %833 = vmatmul.mubr.f32.gmra.mxu0 %v752
        %v834 = vpop.f32.mrf.mxu0
        %v835 = vadd.f32 0.0, %v834
        %v836 = vpop.f32.mrf.mxu0
        %837 = vmatprep.mubr.f32.mxu0 0.0
        %838 = vmatmul.mubr.f32.gmra.mxu0 %v753
        %v839 = vpop.f32.mrf.mxu0
        %v840 = vadd.f32 0.0, %v839
        %v841 = vpop.f32.mrf.mxu0
        %842 = vmatprep.mubr.f32.mxu0 0.0
        %843 = vmatmul.mubr.f32.gmra.mxu0 %v754
        %v844 = vpop.f32.mrf.mxu0
        %v845 = vadd.f32 0.0, %v844
        %v846 = vpop.f32.mrf.mxu0
        %847 = vmatprep.mubr.f32.mxu0 0.0
        %848 = vmatmul.mubr.f32.gmra.mxu0 %v755
        %v849 = vpop.f32.mrf.mxu0
        %v850 = vadd.f32 0.0, %v849
        %v851 = vpop.f32.mrf.mxu0
        %852 = vmatprep.mubr.f32.mxu0 0.0
        %853 = vmatmul.mubr.f32.gmra.mxu0 %v756
        %v854 = vpop.f32.mrf.mxu0
        %v855 = vadd.f32 0.0, %v854
        %v856 = vpop.f32.mrf.mxu0
        %857 = vmatprep.mubr.f32.mxu0 0.0
        %858 = vmatmul.mubr.f32.gmra.mxu0 %v757
        %v859 = vpop.f32.mrf.mxu0
        %v860 = vadd.f32 0.0, %v859
        %v861 = vpop.f32.mrf.mxu0
        %862 = vmatprep.mubr.f32.mxu0 0.0
        %863 = vmatmul.mubr.f32.gmra.mxu0 %v758
        %v864 = vpop.f32.mrf.mxu0
        %v865 = vadd.f32 0.0, %v864
        %v866 = vpop.f32.mrf.mxu0
        %867 = vmatprep.mubr.f32.mxu0 0.0
        %868 = vmatmul.mubr.f32.gmra.mxu0 %v759
        %v869 = vpop.f32.mrf.mxu0
        %v870 = vadd.f32 0.0, %v869
        %v871 = vpop.f32.mrf.mxu0
        %872 = vmatprep.mubr.f32.mxu0 0.0
        %873 = vmatmul.mubr.f32.gmra.mxu0 %v760
        %v874 = vpop.f32.mrf.mxu0
        %v875 = vadd.f32 0.0, %v874
        %v876 = vpop.f32.mrf.mxu0
        %877 = vmatprep.mubr.f32.mxu0 0.0
        %878 = vmatmul.mubr.f32.gmra.mxu0 %v761
        %v879 = vpop.f32.mrf.mxu0
        %v880 = vadd.f32 0.0, %v879
        %v881 = vpop.f32.mrf.mxu0
        %882 = vmatprep.mubr.f32.mxu0 0.0
        %883 = vmatmul.mubr.f32.gmra.mxu0 %v762
        %v884 = vpop.f32.mrf.mxu0
        %v885 = vadd.f32 0.0, %v884
        %v886 = vpop.f32.mrf.mxu0
        %887 = vmatprep.mubr.f32.mxu0 0.0
        %888 = vmatmul.mubr.f32.gmra.mxu0 %v763
        %v889 = vpop.f32.mrf.mxu0
        %v890 = vadd.f32 0.0, %v889
        %v891 = vpop.f32.mrf.mxu0
        %892 = vmatprep.mubr.f32.mxu0 0.0
        %893 = vmatmul.mubr.f32.gmra.mxu0 %v764
        %v894 = vpop.f32.mrf.mxu0
        %v895 = vadd.f32 0.0, %v894
        %v896 = vpop.f32.mrf.mxu0
        %897 = vmatprep.mubr.f32.mxu0 0.0
        %898 = vmatmul.mubr.f32.gmra.mxu0 %v765
        %v899 = vpop.f32.mrf.mxu0
        %v900 = vadd.f32 0.0, %v899
        %v901 = vpop.f32.mrf.mxu0
        %902 = vmatprep.mubr.f32.mxu0 0.0
        %903 = vmatmul.mubr.f32.gmra.mxu0 %v766
        %v904 = vpop.f32.mrf.mxu0
        %v905 = vadd.f32 0.0, %v904
        %v906 = vpop.f32.mrf.mxu0
        %907 = vmatprep.mubr.f32.mxu0 0.0
        %908 = vmatmul.mubr.f32.gmra.mxu0 %v767
        %v909 = vpop.f32.mrf.mxu0
        %v910 = vadd.f32 0.0, %v909
        %v911 = vpop.f32.mrf.mxu0
        %912 = vdwg.mxu0
        %v913 = vmul.f32 %v835, %v835
        %v914 = vmul.f32 %v840, %v840
        %v915 = vmul.f32 %v845, %v845
        %v916 = vmul.f32 %v850, %v850
        %v917 = vmul.f32 %v855, %v855
        %v918 = vmul.f32 %v860, %v860
        %v919 = vmul.f32 %v865, %v865
        %v920 = vmul.f32 %v870, %v870
        %v921 = vmul.f32 %v875, %v875
        %v922 = vmul.f32 %v880, %v880
        %v923 = vmul.f32 %v885, %v885
        %v924 = vmul.f32 %v890, %v890
        %v925 = vmul.f32 %v895, %v895
        %v926 = vmul.f32 %v900, %v900
        %v927 = vmul.f32 %v905, %v905
        %v928 = vmul.f32 %v910, %v910
        %v929 = vsel %vm702, %v913, 0.0
        %930 = vadd.xlane.f32.xlu0 %v929
        %v931 = vpop.xlane.xlu0 %930
        %v932 = vsel %vm702, %v914, 0.0
        %933 = vadd.xlane.f32.xlu0 %v932
        %v934 = vpop.xlane.xlu0 %933
        %v935 = vsel %vm702, %v915, 0.0
        %936 = vadd.xlane.f32.xlu0 %v935
        %v937 = vpop.xlane.xlu0 %936
        %v938 = vsel %vm702, %v916, 0.0
        %939 = vadd.xlane.f32.xlu0 %v938
        %v940 = vpop.xlane.xlu0 %939
        %v941 = vsel %vm702, %v917, 0.0
        %942 = vadd.xlane.f32.xlu0 %v941
        %v943 = vpop.xlane.xlu0 %942
        %v944 = vsel %vm702, %v918, 0.0
        %945 = vadd.xlane.f32.xlu0 %v944
        %v946 = vpop.xlane.xlu0 %945
        %v947 = vsel %vm702, %v919, 0.0
        %948 = vadd.xlane.f32.xlu0 %v947
        %v949 = vpop.xlane.xlu0 %948
        %v950 = vsel %vm702, %v920, 0.0
        %951 = vadd.xlane.f32.xlu0 %v950
        %v952 = vpop.xlane.xlu0 %951
        %v953 = vsel %vm702, %v921, 0.0
        %954 = vadd.xlane.f32.xlu0 %v953
        %v955 = vpop.xlane.xlu0 %954
        %v956 = vsel %vm702, %v922, 0.0
        %957 = vadd.xlane.f32.xlu0 %v956
        %v958 = vpop.xlane.xlu0 %957
        %v959 = vsel %vm702, %v923, 0.0
        %960 = vadd.xlane.f32.xlu0 %v959
        %v961 = vpop.xlane.xlu0 %960
        %v962 = vsel %vm702, %v924, 0.0
        %963 = vadd.xlane.f32.xlu0 %v962
        %v964 = vpop.xlane.xlu0 %963
        %v965 = vsel %vm702, %v925, 0.0
        %966 = vadd.xlane.f32.xlu0 %v965
        %v967 = vpop.xlane.xlu0 %966
        %v968 = vsel %vm702, %v926, 0.0
        %969 = vadd.xlane.f32.xlu0 %v968
        %v970 = vpop.xlane.xlu0 %969
        %v971 = vsel %vm702, %v927, 0.0
        %972 = vadd.xlane.f32.xlu0 %v971
        %v973 = vpop.xlane.xlu0 %972
        %v974 = vsel %vm702, %v928, 0.0
        %975 = vadd.xlane.f32.xlu0 %v974
        %v976 = vpop.xlane.xlu0 %975
        %s977 = scalar_lea.vmem %s4, 256
        %v978 = vld [vmem:[%s977] sm:$0xff]
        %v979 = vld [vmem:[%s977 + $0x8] sm:$0xff]
        %v980 = vld [vmem:[%s977 + $0x10] sm:$0xff]
        %v981 = vld [vmem:[%s977 + $0x18] sm:$0xff]
        %v982 = vld [vmem:[%s977 + $0x20] sm:$0xff]
        %v983 = vld [vmem:[%s977 + $0x28] sm:$0xff]
        %v984 = vld [vmem:[%s977 + $0x30] sm:$0xff]
        %v985 = vld [vmem:[%s977 + $0x38] sm:$0xff]
        %v986 = vld [vmem:[%s977 + $0x40] sm:$0xff]
        %v987 = vld [vmem:[%s977 + $0x48] sm:$0xff]
        %v988 = vld [vmem:[%s977 + $0x50] sm:$0xff]
        %v989 = vld [vmem:[%s977 + $0x58] sm:$0xff]
        %v990 = vld [vmem:[%s977 + $0x60] sm:$0xff]
        %v991 = vld [vmem:[%s977 + $0x68] sm:$0xff]
        %v992 = vld [vmem:[%s977 + $0x70] sm:$0xff]
        %v993 = vld [vmem:[%s977 + $0x78] sm:$0xff]
        %994 = vmatprep.subr.mxu0 0.0
        %995 = vmatpush1.msra.mxu0 %v476
        %996 = vmatprep.subr.mxu0 0.0
        %997 = vmatpush1.msra.mxu0 %v475
        %998 = vmatprep.subr.mxu0 0.0
        %999 = vmatpush1.msra.mxu0 %v474
        %1000 = vmatprep.subr.mxu0 0.0
        %1001 = vmatpush1.msra.mxu0 %v473
        %1002 = vmatprep.subr.mxu0 0.0
        %1003 = vmatpush1.msra.mxu0 %v472
        %1004 = vmatprep.subr.mxu0 0.0
        %1005 = vmatpush1.msra.mxu0 %v471
        %1006 = vmatprep.subr.mxu0 0.0
        %1007 = vmatpush1.msra.mxu0 %v470
        %1008 = vmatprep.subr.mxu0 0.0
        %1009 = vmatpush1.msra.mxu0 %v469
        %1010 = vmatprep.subr.mxu0 0.0
        %1011 = vmatpush1.msra.mxu0 %v468
        %1012 = vmatprep.subr.mxu0 0.0
        %1013 = vmatpush1.msra.mxu0 %v467
        %1014 = vmatprep.subr.mxu0 0.0
        %1015 = vmatpush1.msra.mxu0 %v466
        %1016 = vmatprep.subr.mxu0 0.0
        %1017 = vmatpush1.msra.mxu0 %v465
        %1018 = vmatprep.subr.mxu0 0.0
        %1019 = vmatpush1.msra.mxu0 %v464
        %1020 = vmatprep.subr.mxu0 0.0
        %1021 = vmatpush1.msra.mxu0 %v463
        %1022 = vmatprep.subr.mxu0 0.0
        %1023 = vmatpush1.msra.mxu0 %v462
        %1024 = vmatprep.subr.mxu0 0.0
        %1025 = vmatpush1.msra.mxu0 %v461
        %1026 = vmatprep.subr.mxu0 0.0
        %1027 = vmatpush2.msra.mxu0 0.0
        %1028 = vmatprep.subr.mxu0 0.0
        %1029 = vmatpush2.msra.mxu0 0.0
        %1030 = vmatprep.subr.mxu0 0.0
        %1031 = vmatpush2.msra.mxu0 0.0
        %1032 = vmatprep.subr.mxu0 0.0
        %1033 = vmatpush2.msra.mxu0 0.0
        %1034 = vmatprep.subr.mxu0 0.0
        %1035 = vmatpush2.msra.mxu0 0.0
        %1036 = vmatprep.subr.mxu0 0.0
        %1037 = vmatpush2.msra.mxu0 0.0
        %1038 = vmatprep.subr.mxu0 0.0
        %1039 = vmatpush2.msra.mxu0 0.0
        %1040 = vmatprep.subr.mxu0 0.0
        %1041 = vmatpush2.msra.mxu0 0.0
        %1042 = vmatprep.subr.mxu0 0.0
        %1043 = vmatpush2.msra.mxu0 0.0
        %1044 = vmatprep.subr.mxu0 0.0
        %1045 = vmatpush2.msra.mxu0 0.0
        %1046 = vmatprep.subr.mxu0 0.0
        %1047 = vmatpush2.msra.mxu0 0.0
        %1048 = vmatprep.subr.mxu0 0.0
        %1049 = vmatpush2.msra.mxu0 0.0
        %1050 = vmatprep.subr.mxu0 0.0
        %1051 = vmatpush2.msra.mxu0 0.0
        %1052 = vmatprep.subr.mxu0 0.0
        %1053 = vmatpush2.msra.mxu0 0.0
        %1054 = vmatprep.subr.mxu0 0.0
        %1055 = vmatpush2.msra.mxu0 0.0
        %1056 = vmatprep.subr.mxu0 0.0
        %1057 = vmatpush2.msra.mxu0 0.0
        %1058 = vmatprep.mubr.f32.mxu0 0.0
        %1059 = vmatmul.mubr.f32.gmra.mxu0 %v978
        %v1060 = vpop.f32.mrf.mxu0
        %v1061 = vadd.f32 0.0, %v1060
        %v1062 = vpop.f32.mrf.mxu0
        %1063 = vmatprep.mubr.f32.mxu0 0.0
        %1064 = vmatmul.mubr.f32.gmra.mxu0 %v979
        %v1065 = vpop.f32.mrf.mxu0
        %v1066 = vadd.f32 0.0, %v1065
        %v1067 = vpop.f32.mrf.mxu0
        %1068 = vmatprep.mubr.f32.mxu0 0.0
        %1069 = vmatmul.mubr.f32.gmra.mxu0 %v980
        %v1070 = vpop.f32.mrf.mxu0
        %v1071 = vadd.f32 0.0, %v1070
        %v1072 = vpop.f32.mrf.mxu0
        %1073 = vmatprep.mubr.f32.mxu0 0.0
        %1074 = vmatmul.mubr.f32.gmra.mxu0 %v981
        %v1075 = vpop.f32.mrf.mxu0
        %v1076 = vadd.f32 0.0, %v1075
        %v1077 = vpop.f32.mrf.mxu0
        %1078 = vmatprep.mubr.f32.mxu0 0.0
        %1079 = vmatmul.mubr.f32.gmra.mxu0 %v982
        %v1080 = vpop.f32.mrf.mxu0
        %v1081 = vadd.f32 0.0, %v1080
        %v1082 = vpop.f32.mrf.mxu0
        %1083 = vmatprep.mubr.f32.mxu0 0.0
        %1084 = vmatmul.mubr.f32.gmra.mxu0 %v983
        %v1085 = vpop.f32.mrf.mxu0
        %v1086 = vadd.f32 0.0, %v1085
        %v1087 = vpop.f32.mrf.mxu0
        %1088 = vmatprep.mubr.f32.mxu0 0.0
        %1089 = vmatmul.mubr.f32.gmra.mxu0 %v984
        %v1090 = vpop.f32.mrf.mxu0
        %v1091 = vadd.f32 0.0, %v1090
        %v1092 = vpop.f32.mrf.mxu0
        %1093 = vmatprep.mubr.f32.mxu0 0.0
        %1094 = vmatmul.mubr.f32.gmra.mxu0 %v985
        %v1095 = vpop.f32.mrf.mxu0
        %v1096 = vadd.f32 0.0, %v1095
        %v1097 = vpop.f32.mrf.mxu0
        %1098 = vmatprep.mubr.f32.mxu0 0.0
        %1099 = vmatmul.mubr.f32.gmra.mxu0 %v986
        %v1100 = vpop.f32.mrf.mxu0
        %v1101 = vadd.f32 0.0, %v1100
        %v1102 = vpop.f32.mrf.mxu0
        %1103 = vmatprep.mubr.f32.mxu0 0.0
        %1104 = vmatmul.mubr.f32.gmra.mxu0 %v987
        %v1105 = vpop.f32.mrf.mxu0
        %v1106 = vadd.f32 0.0, %v1105
        %v1107 = vpop.f32.mrf.mxu0
        %1108 = vmatprep.mubr.f32.mxu0 0.0
        %1109 = vmatmul.mubr.f32.gmra.mxu0 %v988
        %v1110 = vpop.f32.mrf.mxu0
        %v1111 = vadd.f32 0.0, %v1110
        %v1112 = vpop.f32.mrf.mxu0
        %1113 = vmatprep.mubr.f32.mxu0 0.0
        %1114 = vmatmul.mubr.f32.gmra.mxu0 %v989
        %v1115 = vpop.f32.mrf.mxu0
        %v1116 = vadd.f32 0.0, %v1115
        %v1117 = vpop.f32.mrf.mxu0
        %1118 = vmatprep.mubr.f32.mxu0 0.0
        %1119 = vmatmul.mubr.f32.gmra.mxu0 %v990
        %v1120 = vpop.f32.mrf.mxu0
        %v1121 = vadd.f32 0.0, %v1120
        %v1122 = vpop.f32.mrf.mxu0
        %1123 = vmatprep.mubr.f32.mxu0 0.0
        %1124 = vmatmul.mubr.f32.gmra.mxu0 %v991
        %v1125 = vpop.f32.mrf.mxu0
        %v1126 = vadd.f32 0.0, %v1125
        %v1127 = vpop.f32.mrf.mxu0
        %1128 = vmatprep.mubr.f32.mxu0 0.0
        %1129 = vmatmul.mubr.f32.gmra.mxu0 %v992
        %v1130 = vpop.f32.mrf.mxu0
        %v1131 = vadd.f32 0.0, %v1130
        %v1132 = vpop.f32.mrf.mxu0
        %1133 = vmatprep.mubr.f32.mxu0 0.0
        %1134 = vmatmul.mubr.f32.gmra.mxu0 %v993
        %v1135 = vpop.f32.mrf.mxu0
        %v1136 = vadd.f32 0.0, %v1135
        %v1137 = vpop.f32.mrf.mxu0
        %1138 = vdwg.mxu0
        %v1139 = vmul.f32 %v1061, %v1061
        %v1140 = vmul.f32 %v1066, %v1066
        %v1141 = vmul.f32 %v1071, %v1071
        %v1142 = vmul.f32 %v1076, %v1076
        %v1143 = vmul.f32 %v1081, %v1081
        %v1144 = vmul.f32 %v1086, %v1086
        %v1145 = vmul.f32 %v1091, %v1091
        %v1146 = vmul.f32 %v1096, %v1096
        %v1147 = vmul.f32 %v1101, %v1101
        %v1148 = vmul.f32 %v1106, %v1106
        %v1149 = vmul.f32 %v1111, %v1111
        %v1150 = vmul.f32 %v1116, %v1116
        %v1151 = vmul.f32 %v1121, %v1121
        %v1152 = vmul.f32 %v1126, %v1126
        %v1153 = vmul.f32 %v1131, %v1131
        %v1154 = vmul.f32 %v1136, %v1136
        %v1155 = vsel %vm702, %v1139, 0.0
        %1156 = vadd.xlane.f32.xlu0 %v1155
        %v1157 = vpop.xlane.xlu0 %1156
        %v1158 = vsel %vm702, %v1140, 0.0
        %1159 = vadd.xlane.f32.xlu0 %v1158
        %v1160 = vpop.xlane.xlu0 %1159
        %v1161 = vsel %vm702, %v1141, 0.0
        %1162 = vadd.xlane.f32.xlu0 %v1161
        %v1163 = vpop.xlane.xlu0 %1162
        %v1164 = vsel %vm702, %v1142, 0.0
        %1165 = vadd.xlane.f32.xlu0 %v1164
        %v1166 = vpop.xlane.xlu0 %1165
        %v1167 = vsel %vm702, %v1143, 0.0
        %1168 = vadd.xlane.f32.xlu0 %v1167
        %v1169 = vpop.xlane.xlu0 %1168
        %v1170 = vsel %vm702, %v1144, 0.0
        %1171 = vadd.xlane.f32.xlu0 %v1170
        %v1172 = vpop.xlane.xlu0 %1171
        %v1173 = vsel %vm702, %v1145, 0.0
        %1174 = vadd.xlane.f32.xlu0 %v1173
        %v1175 = vpop.xlane.xlu0 %1174
        %v1176 = vsel %vm702, %v1146, 0.0
        %1177 = vadd.xlane.f32.xlu0 %v1176
        %v1178 = vpop.xlane.xlu0 %1177
        %v1179 = vsel %vm702, %v1147, 0.0
        %1180 = vadd.xlane.f32.xlu0 %v1179
        %v1181 = vpop.xlane.xlu0 %1180
        %v1182 = vsel %vm702, %v1148, 0.0
        %1183 = vadd.xlane.f32.xlu0 %v1182
        %v1184 = vpop.xlane.xlu0 %1183
        %v1185 = vsel %vm702, %v1149, 0.0
        %1186 = vadd.xlane.f32.xlu0 %v1185
        %v1187 = vpop.xlane.xlu0 %1186
        %v1188 = vsel %vm702, %v1150, 0.0
        %1189 = vadd.xlane.f32.xlu0 %v1188
        %v1190 = vpop.xlane.xlu0 %1189
        %v1191 = vsel %vm702, %v1151, 0.0
        %1192 = vadd.xlane.f32.xlu0 %v1191
        %v1193 = vpop.xlane.xlu0 %1192
        %v1194 = vsel %vm702, %v1152, 0.0
        %1195 = vadd.xlane.f32.xlu0 %v1194
        %v1196 = vpop.xlane.xlu0 %1195
        %v1197 = vsel %vm702, %v1153, 0.0
        %1198 = vadd.xlane.f32.xlu0 %v1197
        %v1199 = vpop.xlane.xlu0 %1198
        %v1200 = vsel %vm702, %v1154, 0.0
        %1201 = vadd.xlane.f32.xlu0 %v1200
        %v1202 = vpop.xlane.xlu0 %1201
        %s1203 = scalar_lea.vmem %s4, 384
        %v1204 = vld [vmem:[%s1203] sm:$0xff]
        %v1205 = vld [vmem:[%s1203 + $0x8] sm:$0xff]
        %v1206 = vld [vmem:[%s1203 + $0x10] sm:$0xff]
        %v1207 = vld [vmem:[%s1203 + $0x18] sm:$0xff]
        %v1208 = vld [vmem:[%s1203 + $0x20] sm:$0xff]
        %v1209 = vld [vmem:[%s1203 + $0x28] sm:$0xff]
        %v1210 = vld [vmem:[%s1203 + $0x30] sm:$0xff]
        %v1211 = vld [vmem:[%s1203 + $0x38] sm:$0xff]
        %v1212 = vld [vmem:[%s1203 + $0x40] sm:$0xff]
        %v1213 = vld [vmem:[%s1203 + $0x48] sm:$0xff]
        %v1214 = vld [vmem:[%s1203 + $0x50] sm:$0xff]
        %v1215 = vld [vmem:[%s1203 + $0x58] sm:$0xff]
        %v1216 = vld [vmem:[%s1203 + $0x60] sm:$0xff]
        %v1217 = vld [vmem:[%s1203 + $0x68] sm:$0xff]
        %v1218 = vld [vmem:[%s1203 + $0x70] sm:$0xff]
        %v1219 = vld [vmem:[%s1203 + $0x78] sm:$0xff]
        %1220 = vmatprep.subr.mxu0 0.0
        %1221 = vmatpush1.msra.mxu0 %v476
        %1222 = vmatprep.subr.mxu0 0.0
        %1223 = vmatpush1.msra.mxu0 %v475
        %1224 = vmatprep.subr.mxu0 0.0
        %1225 = vmatpush1.msra.mxu0 %v474
        %1226 = vmatprep.subr.mxu0 0.0
        %1227 = vmatpush1.msra.mxu0 %v473
        %1228 = vmatprep.subr.mxu0 0.0
        %1229 = vmatpush1.msra.mxu0 %v472
        %1230 = vmatprep.subr.mxu0 0.0
        %1231 = vmatpush1.msra.mxu0 %v471
        %1232 = vmatprep.subr.mxu0 0.0
        %1233 = vmatpush1.msra.mxu0 %v470
        %1234 = vmatprep.subr.mxu0 0.0
        %1235 = vmatpush1.msra.mxu0 %v469
        %1236 = vmatprep.subr.mxu0 0.0
        %1237 = vmatpush1.msra.mxu0 %v468
        %1238 = vmatprep.subr.mxu0 0.0
        %1239 = vmatpush1.msra.mxu0 %v467
        %1240 = vmatprep.subr.mxu0 0.0
        %1241 = vmatpush1.msra.mxu0 %v466
        %1242 = vmatprep.subr.mxu0 0.0
        %1243 = vmatpush1.msra.mxu0 %v465
        %1244 = vmatprep.subr.mxu0 0.0
        %1245 = vmatpush1.msra.mxu0 %v464
        %1246 = vmatprep.subr.mxu0 0.0
        %1247 = vmatpush1.msra.mxu0 %v463
        %1248 = vmatprep.subr.mxu0 0.0
        %1249 = vmatpush1.msra.mxu0 %v462
        %1250 = vmatprep.subr.mxu0 0.0
        %1251 = vmatpush1.msra.mxu0 %v461
        %1252 = vmatprep.subr.mxu0 0.0
        %1253 = vmatpush2.msra.mxu0 0.0
        %1254 = vmatprep.subr.mxu0 0.0
        %1255 = vmatpush2.msra.mxu0 0.0
        %1256 = vmatprep.subr.mxu0 0.0
        %1257 = vmatpush2.msra.mxu0 0.0
        %1258 = vmatprep.subr.mxu0 0.0
        %1259 = vmatpush2.msra.mxu0 0.0
        %1260 = vmatprep.subr.mxu0 0.0
        %1261 = vmatpush2.msra.mxu0 0.0
        %1262 = vmatprep.subr.mxu0 0.0
        %1263 = vmatpush2.msra.mxu0 0.0
        %1264 = vmatprep.subr.mxu0 0.0
        %1265 = vmatpush2.msra.mxu0 0.0
        %1266 = vmatprep.subr.mxu0 0.0
        %1267 = vmatpush2.msra.mxu0 0.0
        %1268 = vmatprep.subr.mxu0 0.0
        %1269 = vmatpush2.msra.mxu0 0.0
        %1270 = vmatprep.subr.mxu0 0.0
        %1271 = vmatpush2.msra.mxu0 0.0
        %1272 = vmatprep.subr.mxu0 0.0
        %1273 = vmatpush2.msra.mxu0 0.0
        %1274 = vmatprep.subr.mxu0 0.0
        %1275 = vmatpush2.msra.mxu0 0.0
        %1276 = vmatprep.subr.mxu0 0.0
        %1277 = vmatpush2.msra.mxu0 0.0
        %1278 = vmatprep.subr.mxu0 0.0
        %1279 = vmatpush2.msra.mxu0 0.0
        %1280 = vmatprep.subr.mxu0 0.0
        %1281 = vmatpush2.msra.mxu0 0.0
        %1282 = vmatprep.subr.mxu0 0.0
        %1283 = vmatpush2.msra.mxu0 0.0
        %1284 = vmatprep.mubr.f32.mxu0 0.0
        %1285 = vmatmul.mubr.f32.gmra.mxu0 %v1204
        %v1286 = vpop.f32.mrf.mxu0
        %v1287 = vadd.f32 0.0, %v1286
        %v1288 = vpop.f32.mrf.mxu0
        %1289 = vmatprep.mubr.f32.mxu0 0.0
        %1290 = vmatmul.mubr.f32.gmra.mxu0 %v1205
        %v1291 = vpop.f32.mrf.mxu0
        %v1292 = vadd.f32 0.0, %v1291
        %v1293 = vpop.f32.mrf.mxu0
        %1294 = vmatprep.mubr.f32.mxu0 0.0
        %1295 = vmatmul.mubr.f32.gmra.mxu0 %v1206
        %v1296 = vpop.f32.mrf.mxu0
        %v1297 = vadd.f32 0.0, %v1296
        %v1298 = vpop.f32.mrf.mxu0
        %1299 = vmatprep.mubr.f32.mxu0 0.0
        %1300 = vmatmul.mubr.f32.gmra.mxu0 %v1207
        %v1301 = vpop.f32.mrf.mxu0
        %v1302 = vadd.f32 0.0, %v1301
        %v1303 = vpop.f32.mrf.mxu0
        %1304 = vmatprep.mubr.f32.mxu0 0.0
        %1305 = vmatmul.mubr.f32.gmra.mxu0 %v1208
        %v1306 = vpop.f32.mrf.mxu0
        %v1307 = vadd.f32 0.0, %v1306
        %v1308 = vpop.f32.mrf.mxu0
        %1309 = vmatprep.mubr.f32.mxu0 0.0
        %1310 = vmatmul.mubr.f32.gmra.mxu0 %v1209
        %v1311 = vpop.f32.mrf.mxu0
        %v1312 = vadd.f32 0.0, %v1311
        %v1313 = vpop.f32.mrf.mxu0
        %1314 = vmatprep.mubr.f32.mxu0 0.0
        %1315 = vmatmul.mubr.f32.gmra.mxu0 %v1210
        %v1316 = vpop.f32.mrf.mxu0
        %v1317 = vadd.f32 0.0, %v1316
        %v1318 = vpop.f32.mrf.mxu0
        %1319 = vmatprep.mubr.f32.mxu0 0.0
        %1320 = vmatmul.mubr.f32.gmra.mxu0 %v1211
        %v1321 = vpop.f32.mrf.mxu0
        %v1322 = vadd.f32 0.0, %v1321
        %v1323 = vpop.f32.mrf.mxu0
        %1324 = vmatprep.mubr.f32.mxu0 0.0
        %1325 = vmatmul.mubr.f32.gmra.mxu0 %v1212
        %v1326 = vpop.f32.mrf.mxu0
        %v1327 = vadd.f32 0.0, %v1326
        %v1328 = vpop.f32.mrf.mxu0
        %1329 = vmatprep.mubr.f32.mxu0 0.0
        %1330 = vmatmul.mubr.f32.gmra.mxu0 %v1213
        %v1331 = vpop.f32.mrf.mxu0
        %v1332 = vadd.f32 0.0, %v1331
        %v1333 = vpop.f32.mrf.mxu0
        %1334 = vmatprep.mubr.f32.mxu0 0.0
        %1335 = vmatmul.mubr.f32.gmra.mxu0 %v1214
        %v1336 = vpop.f32.mrf.mxu0
        %v1337 = vadd.f32 0.0, %v1336
        %v1338 = vpop.f32.mrf.mxu0
        %1339 = vmatprep.mubr.f32.mxu0 0.0
        %1340 = vmatmul.mubr.f32.gmra.mxu0 %v1215
        %v1341 = vpop.f32.mrf.mxu0
        %v1342 = vadd.f32 0.0, %v1341
        %v1343 = vpop.f32.mrf.mxu0
        %1344 = vmatprep.mubr.f32.mxu0 0.0
        %1345 = vmatmul.mubr.f32.gmra.mxu0 %v1216
        %v1346 = vpop.f32.mrf.mxu0
        %v1347 = vadd.f32 0.0, %v1346
        %v1348 = vpop.f32.mrf.mxu0
        %1349 = vmatprep.mubr.f32.mxu0 0.0
        %1350 = vmatmul.mubr.f32.gmra.mxu0 %v1217
        %v1351 = vpop.f32.mrf.mxu0
        %v1352 = vadd.f32 0.0, %v1351
        %v1353 = vpop.f32.mrf.mxu0
        %1354 = vmatprep.mubr.f32.mxu0 0.0
        %1355 = vmatmul.mubr.f32.gmra.mxu0 %v1218
        %v1356 = vpop.f32.mrf.mxu0
        %v1357 = vadd.f32 0.0, %v1356
        %v1358 = vpop.f32.mrf.mxu0
        %1359 = vmatprep.mubr.f32.mxu0 0.0
        %1360 = vmatmul.mubr.f32.gmra.mxu0 %v1219
        %v1361 = vpop.f32.mrf.mxu0
        %v1362 = vadd.f32 0.0, %v1361
        %v1363 = vpop.f32.mrf.mxu0
        %1364 = vdwg.mxu0
        %v1365 = vmul.f32 %v1287, %v1287
        %v1366 = vmul.f32 %v1292, %v1292
        %v1367 = vmul.f32 %v1297, %v1297
        %v1368 = vmul.f32 %v1302, %v1302
        %v1369 = vmul.f32 %v1307, %v1307
        %v1370 = vmul.f32 %v1312, %v1312
        %v1371 = vmul.f32 %v1317, %v1317
        %v1372 = vmul.f32 %v1322, %v1322
        %v1373 = vmul.f32 %v1327, %v1327
        %v1374 = vmul.f32 %v1332, %v1332
        %v1375 = vmul.f32 %v1337, %v1337
        %v1376 = vmul.f32 %v1342, %v1342
        %v1377 = vmul.f32 %v1347, %v1347
        %v1378 = vmul.f32 %v1352, %v1352
        %v1379 = vmul.f32 %v1357, %v1357
        %v1380 = vmul.f32 %v1362, %v1362
        %v1381 = vsel %vm702, %v1365, 0.0
        %1382 = vadd.xlane.f32.xlu0 %v1381
        %v1383 = vpop.xlane.xlu0 %1382
        %v1384 = vsel %vm702, %v1366, 0.0
        %1385 = vadd.xlane.f32.xlu0 %v1384
        %v1386 = vpop.xlane.xlu0 %1385
        %v1387 = vsel %vm702, %v1367, 0.0
        %1388 = vadd.xlane.f32.xlu0 %v1387
        %v1389 = vpop.xlane.xlu0 %1388
        %v1390 = vsel %vm702, %v1368, 0.0
        %1391 = vadd.xlane.f32.xlu0 %v1390
        %v1392 = vpop.xlane.xlu0 %1391
        %v1393 = vsel %vm702, %v1369, 0.0
        %1394 = vadd.xlane.f32.xlu0 %v1393
        %v1395 = vpop.xlane.xlu0 %1394
        %v1396 = vsel %vm702, %v1370, 0.0
        %1397 = vadd.xlane.f32.xlu0 %v1396
        %v1398 = vpop.xlane.xlu0 %1397
        %v1399 = vsel %vm702, %v1371, 0.0
        %1400 = vadd.xlane.f32.xlu0 %v1399
        %v1401 = vpop.xlane.xlu0 %1400
        %v1402 = vsel %vm702, %v1372, 0.0
        %1403 = vadd.xlane.f32.xlu0 %v1402
        %v1404 = vpop.xlane.xlu0 %1403
        %v1405 = vsel %vm702, %v1373, 0.0
        %1406 = vadd.xlane.f32.xlu0 %v1405
        %v1407 = vpop.xlane.xlu0 %1406
        %v1408 = vsel %vm702, %v1374, 0.0
        %1409 = vadd.xlane.f32.xlu0 %v1408
        %v1410 = vpop.xlane.xlu0 %1409
        %v1411 = vsel %vm702, %v1375, 0.0
        %1412 = vadd.xlane.f32.xlu0 %v1411
        %v1413 = vpop.xlane.xlu0 %1412
        %v1414 = vsel %vm702, %v1376, 0.0
        %1415 = vadd.xlane.f32.xlu0 %v1414
        %v1416 = vpop.xlane.xlu0 %1415
        %v1417 = vsel %vm702, %v1377, 0.0
        %1418 = vadd.xlane.f32.xlu0 %v1417
        %v1419 = vpop.xlane.xlu0 %1418
        %v1420 = vsel %vm702, %v1378, 0.0
        %1421 = vadd.xlane.f32.xlu0 %v1420
        %v1422 = vpop.xlane.xlu0 %1421
        %v1423 = vsel %vm702, %v1379, 0.0
        %1424 = vadd.xlane.f32.xlu0 %v1423
        %v1425 = vpop.xlane.xlu0 %1424
        %v1426 = vsel %vm702, %v1380, 0.0
        %1427 = vadd.xlane.f32.xlu0 %v1426
        %v1428 = vpop.xlane.xlu0 %1427
        %v1429 = vmul.f32 %v705, %v931
        %v1430 = vmul.f32 %v708, %v934
        %v1431 = vmul.f32 %v711, %v937
        %v1432 = vmul.f32 %v714, %v940
        %v1433 = vmul.f32 %v717, %v943
        %v1434 = vmul.f32 %v720, %v946
        %v1435 = vmul.f32 %v723, %v949
        %v1436 = vmul.f32 %v726, %v952
        %v1437 = vmul.f32 %v729, %v955
        %v1438 = vmul.f32 %v732, %v958
        %v1439 = vmul.f32 %v735, %v961
        %v1440 = vmul.f32 %v738, %v964
        %v1441 = vmul.f32 %v741, %v967
        %v1442 = vmul.f32 %v744, %v970
        %v1443 = vmul.f32 %v747, %v973
        %v1444 = vmul.f32 %v750, %v976
        %v1445 = vmul.f32 %v1157, %v1383
        %v1446 = vmul.f32 %v1160, %v1386
        %v1447 = vmul.f32 %v1163, %v1389
        %v1448 = vmul.f32 %v1166, %v1392
        %v1449 = vmul.f32 %v1169, %v1395
        %v1450 = vmul.f32 %v1172, %v1398
        %v1451 = vmul.f32 %v1175, %v1401
        %v1452 = vmul.f32 %v1178, %v1404
        %v1453 = vmul.f32 %v1181, %v1407
        %v1454 = vmul.f32 %v1184, %v1410
        %v1455 = vmul.f32 %v1187, %v1413
        %v1456 = vmul.f32 %v1190, %v1416
        %v1457 = vmul.f32 %v1193, %v1419
        %v1458 = vmul.f32 %v1196, %v1422
        %v1459 = vmul.f32 %v1199, %v1425
        %v1460 = vmul.f32 %v1202, %v1428
        %v1461 = vadd.f32 %v1445, 1e-15
        %v1462 = vadd.f32 %v1446, 1e-15
        %v1463 = vadd.f32 %v1447, 1e-15
        %v1464 = vadd.f32 %v1448, 1e-15
        %v1465 = vadd.f32 %v1449, 1e-15
        %v1466 = vadd.f32 %v1450, 1e-15
        %v1467 = vadd.f32 %v1451, 1e-15
        %v1468 = vadd.f32 %v1452, 1e-15
        %v1469 = vadd.f32 %v1453, 1e-15
        %v1470 = vadd.f32 %v1454, 1e-15
        %v1471 = vadd.f32 %v1455, 1e-15
        %v1472 = vadd.f32 %v1456, 1e-15
        %v1473 = vadd.f32 %v1457, 1e-15
        %v1474 = vadd.f32 %v1458, 1e-15
        %v1475 = vadd.f32 %v1459, 1e-15
        %v1476 = vadd.f32 %v1460, 1e-15
        %v1477 = vrcp.pop %v1461
        %v1478 = vmul.f32 %v1429, %v1477
        %v1479 = vrcp.pop %v1462
        %v1480 = vmul.f32 %v1430, %v1479
        %v1481 = vrcp.pop %v1463
        %v1482 = vmul.f32 %v1431, %v1481
        %v1483 = vrcp.pop %v1464
        %v1484 = vmul.f32 %v1432, %v1483
        %v1485 = vrcp.pop %v1465
        %v1486 = vmul.f32 %v1433, %v1485
        %v1487 = vrcp.pop %v1466
        %v1488 = vmul.f32 %v1434, %v1487
        %v1489 = vrcp.pop %v1467
        %v1490 = vmul.f32 %v1435, %v1489
        %v1491 = vrcp.pop %v1468
        %v1492 = vmul.f32 %v1436, %v1491
        %v1493 = vrcp.pop %v1469
        %v1494 = vmul.f32 %v1437, %v1493
        %v1495 = vrcp.pop %v1470
        %v1496 = vmul.f32 %v1438, %v1495
        %v1497 = vrcp.pop %v1471
        %v1498 = vmul.f32 %v1439, %v1497
        %v1499 = vrcp.pop %v1472
        %v1500 = vmul.f32 %v1440, %v1499
        %v1501 = vrcp.pop %v1473
        %v1502 = vmul.f32 %v1441, %v1501
        %v1503 = vrcp.pop %v1474
        %v1504 = vmul.f32 %v1442, %v1503
        %v1505 = vrcp.pop %v1475
        %v1506 = vmul.f32 %v1443, %v1505
        %v1507 = vrcp.pop %v1476
        %v1508 = vmul.f32 %v1444, %v1507
        %v1509 = vmul.f32 %v461, %v461
        %v1510 = vmul.f32 %v462, %v462
        %v1511 = vmul.f32 %v463, %v463
        %v1512 = vmul.f32 %v464, %v464
        %v1513 = vmul.f32 %v465, %v465
        %v1514 = vmul.f32 %v466, %v466
        %v1515 = vmul.f32 %v467, %v467
        %v1516 = vmul.f32 %v468, %v468
        %v1517 = vmul.f32 %v469, %v469
        %v1518 = vmul.f32 %v470, %v470
        %v1519 = vmul.f32 %v471, %v471
        %v1520 = vmul.f32 %v472, %v472
        %v1521 = vmul.f32 %v473, %v473
        %v1522 = vmul.f32 %v474, %v474
        %v1523 = vmul.f32 %v475, %v475
        %v1524 = vmul.f32 %v476, %v476
        %v1525 = vsel %vm702, %v1509, 0.0
        %1526 = vadd.xlane.f32.xlu0 %v1525
        %v1527 = vpop.xlane.xlu0 %1526
        %v1528 = vsel %vm702, %v1510, 0.0
        %1529 = vadd.xlane.f32.xlu0 %v1528
        %v1530 = vpop.xlane.xlu0 %1529
        %v1531 = vsel %vm702, %v1511, 0.0
        %1532 = vadd.xlane.f32.xlu0 %v1531
        %v1533 = vpop.xlane.xlu0 %1532
        %v1534 = vsel %vm702, %v1512, 0.0
        %1535 = vadd.xlane.f32.xlu0 %v1534
        %v1536 = vpop.xlane.xlu0 %1535
        %v1537 = vsel %vm702, %v1513, 0.0
        %1538 = vadd.xlane.f32.xlu0 %v1537
        %v1539 = vpop.xlane.xlu0 %1538
        %v1540 = vsel %vm702, %v1514, 0.0
        %1541 = vadd.xlane.f32.xlu0 %v1540
        %v1542 = vpop.xlane.xlu0 %1541
        %v1543 = vsel %vm702, %v1515, 0.0
        %1544 = vadd.xlane.f32.xlu0 %v1543
        %v1545 = vpop.xlane.xlu0 %1544
        %v1546 = vsel %vm702, %v1516, 0.0
        %1547 = vadd.xlane.f32.xlu0 %v1546
        %v1548 = vpop.xlane.xlu0 %1547
        %v1549 = vsel %vm702, %v1517, 0.0
        %1550 = vadd.xlane.f32.xlu0 %v1549
        %v1551 = vpop.xlane.xlu0 %1550
        %v1552 = vsel %vm702, %v1518, 0.0
        %1553 = vadd.xlane.f32.xlu0 %v1552
        %v1554 = vpop.xlane.xlu0 %1553
        %v1555 = vsel %vm702, %v1519, 0.0
        %1556 = vadd.xlane.f32.xlu0 %v1555
        %v1557 = vpop.xlane.xlu0 %1556
        %v1558 = vsel %vm702, %v1520, 0.0
        %1559 = vadd.xlane.f32.xlu0 %v1558
        %v1560 = vpop.xlane.xlu0 %1559
        %v1561 = vsel %vm702, %v1521, 0.0
        %1562 = vadd.xlane.f32.xlu0 %v1561
        %v1563 = vpop.xlane.xlu0 %1562
        %v1564 = vsel %vm702, %v1522, 0.0
        %1565 = vadd.xlane.f32.xlu0 %v1564
        %v1566 = vpop.xlane.xlu0 %1565
        %v1567 = vsel %vm702, %v1523, 0.0
        %1568 = vadd.xlane.f32.xlu0 %v1567
        %v1569 = vpop.xlane.xlu0 %1568
        %v1570 = vsel %vm702, %v1524, 0.0
        %1571 = vadd.xlane.f32.xlu0 %v1570
        %v1572 = vpop.xlane.xlu0 %1571
        %v1573 = vmax.f32 %v1527, 1e-15
        %v1574 = vmax.f32 %v1530, 1e-15
        %v1575 = vmax.f32 %v1533, 1e-15
        %v1576 = vmax.f32 %v1536, 1e-15
        %v1577 = vmax.f32 %v1539, 1e-15
        %v1578 = vmax.f32 %v1542, 1e-15
        %v1579 = vmax.f32 %v1545, 1e-15
        %v1580 = vmax.f32 %v1548, 1e-15
        %v1581 = vmax.f32 %v1551, 1e-15
        %v1582 = vmax.f32 %v1554, 1e-15
        %v1583 = vmax.f32 %v1557, 1e-15
        %v1584 = vmax.f32 %v1560, 1e-15
        %v1585 = vmax.f32 %v1563, 1e-15
        %v1586 = vmax.f32 %v1566, 1e-15
        %v1587 = vmax.f32 %v1569, 1e-15
        %v1588 = vmax.f32 %v1572, 1e-15
        %v1589 = vrsqrt.pop %v1573
        %v1590 = vrsqrt.pop %v1574
        %v1591 = vrsqrt.pop %v1575
        %v1592 = vrsqrt.pop %v1576
        %v1593 = vrsqrt.pop %v1577
        %v1594 = vrsqrt.pop %v1578
        %v1595 = vrsqrt.pop %v1579
        %v1596 = vrsqrt.pop %v1580
        %v1597 = vrsqrt.pop %v1581
        %v1598 = vrsqrt.pop %v1582
        %v1599 = vrsqrt.pop %v1583
        %v1600 = vrsqrt.pop %v1584
        %v1601 = vrsqrt.pop %v1585
        %v1602 = vrsqrt.pop %v1586
        %v1603 = vrsqrt.pop %v1587
        %v1604 = vrsqrt.pop %v1588
        %v1605 = vmul.f32 %v461, %v1589
        %v1606 = vmul.f32 %v462, %v1590
        %v1607 = vmul.f32 %v463, %v1591
        %v1608 = vmul.f32 %v464, %v1592
        %v1609 = vmul.f32 %v465, %v1593
        %v1610 = vmul.f32 %v466, %v1594
        %v1611 = vmul.f32 %v467, %v1595
        %v1612 = vmul.f32 %v468, %v1596
        %v1613 = vmul.f32 %v469, %v1597
        %v1614 = vmul.f32 %v470, %v1598
        %v1615 = vmul.f32 %v471, %v1599
        %v1616 = vmul.f32 %v472, %v1600
        %v1617 = vmul.f32 %v473, %v1601
        %v1618 = vmul.f32 %v474, %v1602
        %v1619 = vmul.f32 %v475, %v1603
        %v1620 = vmul.f32 %v476, %v1604
        %v1621 = vpack.c.bf16 %v1606, %v1605
        %v1622 = vpack.c.bf16 %v1608, %v1607
        %v1623 = vpack.c.bf16 %v1610, %v1609
        %v1624 = vpack.c.bf16 %v1612, %v1611
        %v1625 = vpack.c.bf16 %v1614, %v1613
        %v1626 = vpack.c.bf16 %v1616, %v1615
        %v1627 = vpack.c.bf16 %v1618, %v1617
        %v1628 = vpack.c.bf16 %v1620, %v1619
        %v1629 = vld [vmem:[%s5] sm:$0xf]
        %v1630 = vld [vmem:[%s446] sm:$0xff]
        %v1631 = vld [vmem:[%s446 + $0x8] sm:$0xff]
        %v1632 = vld [vmem:[%s446 + $0x10] sm:$0xff]
        %v1633 = vld [vmem:[%s446 + $0x18] sm:$0xff]
        %v1634 = vld [vmem:[%s446 + $0x20] sm:$0xff]
        %v1635 = vld [vmem:[%s446 + $0x28] sm:$0xff]
        %v1636 = vld [vmem:[%s446 + $0x30] sm:$0xff]
        %v1637 = vld [vmem:[%s446 + $0x38] sm:$0xff]
        %v1638 = vld [vmem:[%s446 + $0x40] sm:$0xff]
        %v1639 = vld [vmem:[%s446 + $0x48] sm:$0xff]
        %v1640 = vld [vmem:[%s446 + $0x50] sm:$0xff]
        %v1641 = vld [vmem:[%s446 + $0x58] sm:$0xff]
        %v1642 = vld [vmem:[%s446 + $0x60] sm:$0xff]
        %v1643 = vld [vmem:[%s446 + $0x68] sm:$0xff]
        %v1644 = vld [vmem:[%s446 + $0x70] sm:$0xff]
        %v1645 = vld [vmem:[%s446 + $0x78] sm:$0xff]
        %v1647 = vsel %vm702, %v1621, 0
        %v1650 = vsel %vm702, %v1622, 0
        %v1653 = vsel %vm702, %v1623, 0
        %v1656 = vsel %vm702, %v1624, 0
        %v1659 = vsel %vm702, %v1625, 0
        %v1662 = vsel %vm702, %v1626, 0
        %v1665 = vsel %vm702, %v1627, 0
        %v1668 = vsel %vm702, %v1628, 0
        %vm1670 = vcmask 1043456
        %v1672 = vsel %vm1670, %v1629, 0
        %1674 = vmatprep.subr.bf16.mxu0 0
        %1675 = vmatpush1.bf16.msra.mxu0 0
        %1676 = vmatprep.subr.bf16.mxu0 0
        %1677 = vmatpush1.bf16.msra.mxu0 0
        %1678 = vmatprep.subr.bf16.mxu0 0
        %1679 = vmatpush1.bf16.msra.mxu0 0
        %1680 = vmatprep.subr.bf16.mxu0 0
        %1681 = vmatpush1.bf16.msra.mxu0 0
        %1682 = vmatprep.subr.bf16.mxu0 0
        %1683 = vmatpush1.bf16.msra.mxu0 0
        %1684 = vmatprep.subr.bf16.mxu0 0
        %1685 = vmatpush1.bf16.msra.mxu0 0
        %1686 = vmatprep.subr.bf16.mxu0 0
        %1687 = vmatpush1.bf16.msra.mxu0 0
        %1688 = vmatprep.subr.bf16.mxu0 0
        %1689 = vmatpush1.bf16.msra.mxu0 %v1672
        %1690 = vmatprep.subr.bf16.mxu0 0
        %1691 = vmatpush2.bf16.msra.mxu0 0
        %1692 = vmatprep.subr.bf16.mxu0 0
        %1693 = vmatpush2.bf16.msra.mxu0 0
        %1694 = vmatprep.subr.bf16.mxu0 0
        %1695 = vmatpush2.bf16.msra.mxu0 0
        %1696 = vmatprep.subr.bf16.mxu0 0
        %1697 = vmatpush2.bf16.msra.mxu0 0
        %1698 = vmatprep.subr.bf16.mxu0 0
        %1699 = vmatpush2.bf16.msra.mxu0 0
        %1700 = vmatprep.subr.bf16.mxu0 0
        %1701 = vmatpush2.bf16.msra.mxu0 0
        %1702 = vmatprep.subr.bf16.mxu0 0
        %1703 = vmatpush2.bf16.msra.mxu0 0
        %1704 = vmatprep.subr.bf16.mxu0 0
        %1705 = vmatpush2.bf16.msra.mxu0 0
        %1706 = vmatprep.mubr.bf16.mxu0 0
        %1707 = vmatmul.mubr.bf16.gmra.mxu0 %v1647
        %v1708 = vpop.f32.mrf.mxu0
        %v1709 = vadd.f32 %v1630, %v1708
        %v1710 = vpop.f32.mrf.mxu0
        %v1711 = vpop.f32.mrf.mxu0
        %v1712 = vadd.f32 %v1631, %v1711
        %v1713 = vpop.f32.mrf.mxu0
        %1714 = vmatprep.mubr.bf16.mxu0 0
        %1715 = vmatmul.mubr.bf16.gmra.mxu0 %v1650
        %v1716 = vpop.f32.mrf.mxu0
        %v1717 = vadd.f32 %v1632, %v1716
        %v1718 = vpop.f32.mrf.mxu0
        %v1719 = vpop.f32.mrf.mxu0
        %v1720 = vadd.f32 %v1633, %v1719
        %v1721 = vpop.f32.mrf.mxu0
        %1722 = vmatprep.mubr.bf16.mxu0 0
        %1723 = vmatmul.mubr.bf16.gmra.mxu0 %v1653
        %v1724 = vpop.f32.mrf.mxu0
        %v1725 = vadd.f32 %v1634, %v1724
        %v1726 = vpop.f32.mrf.mxu0
        %v1727 = vpop.f32.mrf.mxu0
        %v1728 = vadd.f32 %v1635, %v1727
        %v1729 = vpop.f32.mrf.mxu0
        %1730 = vmatprep.mubr.bf16.mxu0 0
        %1731 = vmatmul.mubr.bf16.gmra.mxu0 %v1656
        %v1732 = vpop.f32.mrf.mxu0
        %v1733 = vadd.f32 %v1636, %v1732
        %v1734 = vpop.f32.mrf.mxu0
        %v1735 = vpop.f32.mrf.mxu0
        %v1736 = vadd.f32 %v1637, %v1735
        %v1737 = vpop.f32.mrf.mxu0
        %1738 = vmatprep.mubr.bf16.mxu0 0
        %1739 = vmatmul.mubr.bf16.gmra.mxu0 %v1659
        %v1740 = vpop.f32.mrf.mxu0
        %v1741 = vadd.f32 %v1638, %v1740
        %v1742 = vpop.f32.mrf.mxu0
        %v1743 = vpop.f32.mrf.mxu0
        %v1744 = vadd.f32 %v1639, %v1743
        %v1745 = vpop.f32.mrf.mxu0
        %1746 = vmatprep.mubr.bf16.mxu0 0
        %1747 = vmatmul.mubr.bf16.gmra.mxu0 %v1662
        %v1748 = vpop.f32.mrf.mxu0
        %v1749 = vadd.f32 %v1640, %v1748
        %v1750 = vpop.f32.mrf.mxu0
        %v1751 = vpop.f32.mrf.mxu0
        %v1752 = vadd.f32 %v1641, %v1751
        %v1753 = vpop.f32.mrf.mxu0
        %1754 = vmatprep.mubr.bf16.mxu0 0
        %1755 = vmatmul.mubr.bf16.gmra.mxu0 %v1665
        %v1756 = vpop.f32.mrf.mxu0
        %v1757 = vadd.f32 %v1642, %v1756
        %v1758 = vpop.f32.mrf.mxu0
        %v1759 = vpop.f32.mrf.mxu0
        %v1760 = vadd.f32 %v1643, %v1759
        %v1761 = vpop.f32.mrf.mxu0
        %1762 = vmatprep.mubr.bf16.mxu0 0
        %1763 = vmatmul.mubr.bf16.gmra.mxu0 %v1668
        %v1764 = vpop.f32.mrf.mxu0
        %v1765 = vadd.f32 %v1644, %v1764
        %v1766 = vpop.f32.mrf.mxu0
        %v1767 = vpop.f32.mrf.mxu0
        %v1768 = vadd.f32 %v1645, %v1767
        %v1769 = vpop.f32.mrf.mxu0
        %1770 = vdwg.mxu0
        %v1771 = vpack.c.bf16 %v1712, %v1709
        %v1772 = vpack.c.bf16 %v1720, %v1717
        %v1773 = vpack.c.bf16 %v1728, %v1725
        %v1774 = vpack.c.bf16 %v1736, %v1733
        %v1775 = vpack.c.bf16 %v1744, %v1741
        %v1776 = vpack.c.bf16 %v1752, %v1749
        %v1777 = vpack.c.bf16 %v1760, %v1757
        %v1778 = vpack.c.bf16 %v1768, %v1765
        %v1795 = vunpack.c.l.b16 %v477
        %v1796 = vunpack.c.l.b16 %v478
        %v1797 = vunpack.c.l.b16 %v479
        %v1798 = vunpack.c.l.b16 %v480
        %v1799 = vunpack.c.l.b16 %v481
        %v1800 = vunpack.c.l.b16 %v482
        %v1801 = vunpack.c.l.b16 %v483
        %v1802 = vunpack.c.l.b16 %v484
        %v1803 = vunpack.c.l.b16 %v485
        %v1804 = vunpack.c.l.b16 %v486
        %v1805 = vunpack.c.l.b16 %v487
        %v1806 = vunpack.c.l.b16 %v488
        %v1807 = vunpack.c.l.b16 %v489
        %v1808 = vunpack.c.l.b16 %v490
        %v1809 = vunpack.c.l.b16 %v491
        %v1810 = vunpack.c.l.b16 %v492
        %v1811 = vpack.c.b16 %v1796, %v1795
        %v1812 = vpack.c.b16 %v1798, %v1797
        %v1813 = vpack.c.b16 %v1800, %v1799
        %v1814 = vpack.c.b16 %v1802, %v1801
        %v1815 = vpack.c.b16 %v1804, %v1803
        %v1816 = vpack.c.b16 %v1806, %v1805
        %v1817 = vpack.c.b16 %v1808, %v1807
        %v1818 = vpack.c.b16 %v1810, %v1809
        %1835 = vrot.lane.b32.xlu0 %v1771, 112
        %v1836 = vpop.permute.xlu0 %1835
        %1837 = vrot.lane.b32.xlu0 %v1772, 112
        %v1838 = vpop.permute.xlu0 %1837
        %1839 = vrot.lane.b32.xlu0 %v1773, 112
        %v1840 = vpop.permute.xlu0 %1839
        %1841 = vrot.lane.b32.xlu0 %v1774, 112
        %v1842 = vpop.permute.xlu0 %1841
        %1843 = vrot.lane.b32.xlu0 %v1775, 112
        %v1844 = vpop.permute.xlu0 %1843
        %1845 = vrot.lane.b32.xlu0 %v1776, 112
        %v1846 = vpop.permute.xlu0 %1845
        %1847 = vrot.lane.b32.xlu0 %v1777, 112
        %v1848 = vpop.permute.xlu0 %1847
        %1849 = vrot.lane.b32.xlu0 %v1778, 112
        %v1850 = vpop.permute.xlu0 %1849
        %1859 = vmatprep.subr.bf16.mxu0 0
        %1860 = vmatpush1.bf16.msra.mxu0 %v1850
        %1861 = vmatprep.subr.bf16.mxu0 0
        %1862 = vmatpush1.bf16.msra.mxu0 %v1848
        %1863 = vmatprep.subr.bf16.mxu0 0
        %1864 = vmatpush1.bf16.msra.mxu0 %v1846
        %1865 = vmatprep.subr.bf16.mxu0 0
        %1866 = vmatpush1.bf16.msra.mxu0 %v1844
        %1867 = vmatprep.subr.bf16.mxu0 0
        %1868 = vmatpush1.bf16.msra.mxu0 %v1842
        %1869 = vmatprep.subr.bf16.mxu0 0
        %1870 = vmatpush1.bf16.msra.mxu0 %v1840
        %1871 = vmatprep.subr.bf16.mxu0 0
        %1872 = vmatpush1.bf16.msra.mxu0 %v1838
        %1873 = vmatprep.subr.bf16.mxu0 0
        %1874 = vmatpush1.bf16.msra.mxu0 %v1836
        %1875 = vmatprep.subr.bf16.mxu0 0
        %1876 = vmatpush2.bf16.msra.mxu0 0
        %1877 = vmatprep.subr.bf16.mxu0 0
        %1878 = vmatpush2.bf16.msra.mxu0 0
        %1879 = vmatprep.subr.bf16.mxu0 0
        %1880 = vmatpush2.bf16.msra.mxu0 0
        %1881 = vmatprep.subr.bf16.mxu0 0
        %1882 = vmatpush2.bf16.msra.mxu0 0
        %1883 = vmatprep.subr.bf16.mxu0 0
        %1884 = vmatpush2.bf16.msra.mxu0 0
        %1885 = vmatprep.subr.bf16.mxu0 0
        %1886 = vmatpush2.bf16.msra.mxu0 0
        %1887 = vmatprep.subr.bf16.mxu0 0
        %1888 = vmatpush2.bf16.msra.mxu0 0
        %1889 = vmatprep.subr.bf16.mxu0 0
        %1890 = vmatpush2.bf16.msra.mxu0 0
        %1891 = vmatprep.mubr.bf16.mxu0 0
        %1892 = vmatmul.mubr.bf16.gmra.mxu0 %v1811
        %v1893 = vpop.f32.mrf.mxu0
        %v1894 = vadd.f32 0.0, %v1893
        %v1895 = vpop.f32.mrf.mxu0
        %v1896 = vpop.f32.mrf.mxu0
        %v1897 = vadd.f32 0.0, %v1896
        %v1898 = vpop.f32.mrf.mxu0
        %1899 = vmatprep.mubr.bf16.mxu0 0
        %1900 = vmatmul.mubr.bf16.gmra.mxu0 %v1812
        %v1901 = vpop.f32.mrf.mxu0
        %v1902 = vadd.f32 0.0, %v1901
        %v1903 = vpop.f32.mrf.mxu0
        %v1904 = vpop.f32.mrf.mxu0
        %v1905 = vadd.f32 0.0, %v1904
        %v1906 = vpop.f32.mrf.mxu0
        %1907 = vmatprep.mubr.bf16.mxu0 0
        %1908 = vmatmul.mubr.bf16.gmra.mxu0 %v1813
        %v1909 = vpop.f32.mrf.mxu0
        %v1910 = vadd.f32 0.0, %v1909
        %v1911 = vpop.f32.mrf.mxu0
        %v1912 = vpop.f32.mrf.mxu0
        %v1913 = vadd.f32 0.0, %v1912
        %v1914 = vpop.f32.mrf.mxu0
        %1915 = vmatprep.mubr.bf16.mxu0 0
        %1916 = vmatmul.mubr.bf16.gmra.mxu0 %v1814
        %v1917 = vpop.f32.mrf.mxu0
        %v1918 = vadd.f32 0.0, %v1917
        %v1919 = vpop.f32.mrf.mxu0
        %v1920 = vpop.f32.mrf.mxu0
        %v1921 = vadd.f32 0.0, %v1920
        %v1922 = vpop.f32.mrf.mxu0
        %1923 = vmatprep.mubr.bf16.mxu0 0
        %1924 = vmatmul.mubr.bf16.gmra.mxu0 %v1815
        %v1925 = vpop.f32.mrf.mxu0
        %v1926 = vadd.f32 0.0, %v1925
        %v1927 = vpop.f32.mrf.mxu0
        %v1928 = vpop.f32.mrf.mxu0
        %v1929 = vadd.f32 0.0, %v1928
        %v1930 = vpop.f32.mrf.mxu0
        %1931 = vmatprep.mubr.bf16.mxu0 0
        %1932 = vmatmul.mubr.bf16.gmra.mxu0 %v1816
        %v1933 = vpop.f32.mrf.mxu0
        %v1934 = vadd.f32 0.0, %v1933
        %v1935 = vpop.f32.mrf.mxu0
        %v1936 = vpop.f32.mrf.mxu0
        %v1937 = vadd.f32 0.0, %v1936
        %v1938 = vpop.f32.mrf.mxu0
        %1939 = vmatprep.mubr.bf16.mxu0 0
        %1940 = vmatmul.mubr.bf16.gmra.mxu0 %v1817
        %v1941 = vpop.f32.mrf.mxu0
        %v1942 = vadd.f32 0.0, %v1941
        %v1943 = vpop.f32.mrf.mxu0
        %v1944 = vpop.f32.mrf.mxu0
        %v1945 = vadd.f32 0.0, %v1944
        %v1946 = vpop.f32.mrf.mxu0
        %1947 = vmatprep.mubr.bf16.mxu0 0
        %1948 = vmatmul.mubr.bf16.gmra.mxu0 %v1818
        %v1949 = vpop.f32.mrf.mxu0
        %v1950 = vadd.f32 0.0, %v1949
        %v1951 = vpop.f32.mrf.mxu0
        %v1952 = vpop.f32.mrf.mxu0
        %v1953 = vadd.f32 0.0, %v1952
        %v1954 = vpop.f32.mrf.mxu0
        %1955 = vdwg.mxu0
        %v1956 = vadd.f32 %v1709, %v1894
        %v1957 = vadd.f32 %v1712, %v1897
        %v1958 = vadd.f32 %v1717, %v1902
        %v1959 = vadd.f32 %v1720, %v1905
        %v1960 = vadd.f32 %v1725, %v1910
        %v1961 = vadd.f32 %v1728, %v1913
        %v1962 = vadd.f32 %v1733, %v1918
        %v1963 = vadd.f32 %v1736, %v1921
        %v1964 = vadd.f32 %v1741, %v1926
        %v1965 = vadd.f32 %v1744, %v1929
        %v1966 = vadd.f32 %v1749, %v1934
        %v1967 = vadd.f32 %v1752, %v1937
        %v1968 = vadd.f32 %v1757, %v1942
        %v1969 = vadd.f32 %v1760, %v1945
        %v1970 = vadd.f32 %v1765, %v1950
        %v1971 = vadd.f32 %v1768, %v1953
        %v1988 = vunpack.c.l.b16 %v493
        %v1989 = vunpack.c.l.b16 %v494
        %v1990 = vunpack.c.l.b16 %v495
        %v1991 = vunpack.c.l.b16 %v496
        %v1992 = vunpack.c.l.b16 %v497
        %v1993 = vunpack.c.l.b16 %v498
        %v1994 = vunpack.c.l.b16 %v499
        %v1995 = vunpack.c.l.b16 %v500
        %v1996 = vunpack.c.l.b16 %v501
        %v1997 = vunpack.c.l.b16 %v502
        %v1998 = vunpack.c.l.b16 %v503
        %v1999 = vunpack.c.l.b16 %v504
        %v2000 = vunpack.c.l.b16 %v505
        %v2001 = vunpack.c.l.b16 %v506
        %v2002 = vunpack.c.l.b16 %v507
        %v2003 = vunpack.c.l.b16 %v508
        %v2004 = vpack.c.b16 %v1989, %v1988
        %v2005 = vpack.c.b16 %v1991, %v1990
        %v2006 = vpack.c.b16 %v1993, %v1992
        %v2007 = vpack.c.b16 %v1995, %v1994
        %v2008 = vpack.c.b16 %v1997, %v1996
        %v2009 = vpack.c.b16 %v1999, %v1998
        %v2010 = vpack.c.b16 %v2001, %v2000
        %v2011 = vpack.c.b16 %v2003, %v2002
        %2020 = vrot.lane.b32.xlu0 %v1771, 96
        %v2021 = vpop.permute.xlu0 %2020
        %2022 = vrot.lane.b32.xlu0 %v1772, 96
        %v2023 = vpop.permute.xlu0 %2022
        %2024 = vrot.lane.b32.xlu0 %v1773, 96
        %v2025 = vpop.permute.xlu0 %2024
        %2026 = vrot.lane.b32.xlu0 %v1774, 96
        %v2027 = vpop.permute.xlu0 %2026
        %2028 = vrot.lane.b32.xlu0 %v1775, 96
        %v2029 = vpop.permute.xlu0 %2028
        %2030 = vrot.lane.b32.xlu0 %v1776, 96
        %v2031 = vpop.permute.xlu0 %2030
        %2032 = vrot.lane.b32.xlu0 %v1777, 96
        %v2033 = vpop.permute.xlu0 %2032
        %2034 = vrot.lane.b32.xlu0 %v1778, 96
        %v2035 = vpop.permute.xlu0 %2034
        %2044 = vmatprep.subr.bf16.mxu0 0
        %2045 = vmatpush1.bf16.msra.mxu0 %v2035
        %2046 = vmatprep.subr.bf16.mxu0 0
        %2047 = vmatpush1.bf16.msra.mxu0 %v2033
        %2048 = vmatprep.subr.bf16.mxu0 0
        %2049 = vmatpush1.bf16.msra.mxu0 %v2031
        %2050 = vmatprep.subr.bf16.mxu0 0
        %2051 = vmatpush1.bf16.msra.mxu0 %v2029
        %2052 = vmatprep.subr.bf16.mxu0 0
        %2053 = vmatpush1.bf16.msra.mxu0 %v2027
        %2054 = vmatprep.subr.bf16.mxu0 0
        %2055 = vmatpush1.bf16.msra.mxu0 %v2025
        %2056 = vmatprep.subr.bf16.mxu0 0
        %2057 = vmatpush1.bf16.msra.mxu0 %v2023
        %2058 = vmatprep.subr.bf16.mxu0 0
        %2059 = vmatpush1.bf16.msra.mxu0 %v2021
        %2060 = vmatprep.subr.bf16.mxu0 0
        %2061 = vmatpush2.bf16.msra.mxu0 0
        %2062 = vmatprep.subr.bf16.mxu0 0
        %2063 = vmatpush2.bf16.msra.mxu0 0
        %2064 = vmatprep.subr.bf16.mxu0 0
        %2065 = vmatpush2.bf16.msra.mxu0 0
        %2066 = vmatprep.subr.bf16.mxu0 0
        %2067 = vmatpush2.bf16.msra.mxu0 0
        %2068 = vmatprep.subr.bf16.mxu0 0
        %2069 = vmatpush2.bf16.msra.mxu0 0
        %2070 = vmatprep.subr.bf16.mxu0 0
        %2071 = vmatpush2.bf16.msra.mxu0 0
        %2072 = vmatprep.subr.bf16.mxu0 0
        %2073 = vmatpush2.bf16.msra.mxu0 0
        %2074 = vmatprep.subr.bf16.mxu0 0
        %2075 = vmatpush2.bf16.msra.mxu0 0
        %2076 = vmatprep.mubr.bf16.mxu0 0
        %2077 = vmatmul.mubr.bf16.gmra.mxu0 %v2004
        %v2078 = vpop.f32.mrf.mxu0
        %v2079 = vadd.f32 0.0, %v2078
        %v2080 = vpop.f32.mrf.mxu0
        %v2081 = vpop.f32.mrf.mxu0
        %v2082 = vadd.f32 0.0, %v2081
        %v2083 = vpop.f32.mrf.mxu0
        %2084 = vmatprep.mubr.bf16.mxu0 0
        %2085 = vmatmul.mubr.bf16.gmra.mxu0 %v2005
        %v2086 = vpop.f32.mrf.mxu0
        %v2087 = vadd.f32 0.0, %v2086
        %v2088 = vpop.f32.mrf.mxu0
        %v2089 = vpop.f32.mrf.mxu0
        %v2090 = vadd.f32 0.0, %v2089
        %v2091 = vpop.f32.mrf.mxu0
        %2092 = vmatprep.mubr.bf16.mxu0 0
        %2093 = vmatmul.mubr.bf16.gmra.mxu0 %v2006
        %v2094 = vpop.f32.mrf.mxu0
        %v2095 = vadd.f32 0.0, %v2094
        %v2096 = vpop.f32.mrf.mxu0
        %v2097 = vpop.f32.mrf.mxu0
        %v2098 = vadd.f32 0.0, %v2097
        %v2099 = vpop.f32.mrf.mxu0
        %2100 = vmatprep.mubr.bf16.mxu0 0
        %2101 = vmatmul.mubr.bf16.gmra.mxu0 %v2007
        %v2102 = vpop.f32.mrf.mxu0
        %v2103 = vadd.f32 0.0, %v2102
        %v2104 = vpop.f32.mrf.mxu0
        %v2105 = vpop.f32.mrf.mxu0
        %v2106 = vadd.f32 0.0, %v2105
        %v2107 = vpop.f32.mrf.mxu0
        %2108 = vmatprep.mubr.bf16.mxu0 0
        %2109 = vmatmul.mubr.bf16.gmra.mxu0 %v2008
        %v2110 = vpop.f32.mrf.mxu0
        %v2111 = vadd.f32 0.0, %v2110
        %v2112 = vpop.f32.mrf.mxu0
        %v2113 = vpop.f32.mrf.mxu0
        %v2114 = vadd.f32 0.0, %v2113
        %v2115 = vpop.f32.mrf.mxu0
        %2116 = vmatprep.mubr.bf16.mxu0 0
        %2117 = vmatmul.mubr.bf16.gmra.mxu0 %v2009
        %v2118 = vpop.f32.mrf.mxu0
        %v2119 = vadd.f32 0.0, %v2118
        %v2120 = vpop.f32.mrf.mxu0
        %v2121 = vpop.f32.mrf.mxu0
        %v2122 = vadd.f32 0.0, %v2121
        %v2123 = vpop.f32.mrf.mxu0
        %2124 = vmatprep.mubr.bf16.mxu0 0
        %2125 = vmatmul.mubr.bf16.gmra.mxu0 %v2010
        %v2126 = vpop.f32.mrf.mxu0
        %v2127 = vadd.f32 0.0, %v2126
        %v2128 = vpop.f32.mrf.mxu0
        %v2129 = vpop.f32.mrf.mxu0
        %v2130 = vadd.f32 0.0, %v2129
        %v2131 = vpop.f32.mrf.mxu0
        %2132 = vmatprep.mubr.bf16.mxu0 0
        %2133 = vmatmul.mubr.bf16.gmra.mxu0 %v2011
        %v2134 = vpop.f32.mrf.mxu0
        %v2135 = vadd.f32 0.0, %v2134
        %v2136 = vpop.f32.mrf.mxu0
        %v2137 = vpop.f32.mrf.mxu0
        %v2138 = vadd.f32 0.0, %v2137
        %v2139 = vpop.f32.mrf.mxu0
        %2140 = vdwg.mxu0
        %v2141 = vadd.f32 %v1956, %v2079
        %v2142 = vadd.f32 %v1957, %v2082
        %v2143 = vadd.f32 %v1958, %v2087
        %v2144 = vadd.f32 %v1959, %v2090
        %v2145 = vadd.f32 %v1960, %v2095
        %v2146 = vadd.f32 %v1961, %v2098
        %v2147 = vadd.f32 %v1962, %v2103
        %v2148 = vadd.f32 %v1963, %v2106
        %v2149 = vadd.f32 %v1964, %v2111
        %v2150 = vadd.f32 %v1965, %v2114
        %v2151 = vadd.f32 %v1966, %v2119
        %v2152 = vadd.f32 %v1967, %v2122
        %v2153 = vadd.f32 %v1968, %v2127
        %v2154 = vadd.f32 %v1969, %v2130
        %v2155 = vadd.f32 %v1970, %v2135
        %v2156 = vadd.f32 %v1971, %v2138
        %v2173 = vunpack.c.l.b16 %v509
        %v2174 = vunpack.c.l.b16 %v510
        %v2175 = vunpack.c.l.b16 %v511
        %v2176 = vunpack.c.l.b16 %v512
        %v2177 = vunpack.c.l.b16 %v513
        %v2178 = vunpack.c.l.b16 %v514
        %v2179 = vunpack.c.l.b16 %v515
        %v2180 = vunpack.c.l.b16 %v516
        %v2181 = vunpack.c.l.b16 %v517
        %v2182 = vunpack.c.l.b16 %v518
        %v2183 = vunpack.c.l.b16 %v519
        %v2184 = vunpack.c.l.b16 %v520
        %v2185 = vunpack.c.l.b16 %v521
        %v2186 = vunpack.c.l.b16 %v522
        %v2187 = vunpack.c.l.b16 %v523
        %v2188 = vunpack.c.l.b16 %v524
        %v2189 = vpack.c.b16 %v2174, %v2173
        %v2190 = vpack.c.b16 %v2176, %v2175
        %v2191 = vpack.c.b16 %v2178, %v2177
        %v2192 = vpack.c.b16 %v2180, %v2179
        %v2193 = vpack.c.b16 %v2182, %v2181
        %v2194 = vpack.c.b16 %v2184, %v2183
        %v2195 = vpack.c.b16 %v2186, %v2185
        %v2196 = vpack.c.b16 %v2188, %v2187
        %2205 = vrot.lane.b32.xlu0 %v1771, 80
        %v2206 = vpop.permute.xlu0 %2205
        %2207 = vrot.lane.b32.xlu0 %v1772, 80
        %v2208 = vpop.permute.xlu0 %2207
        %2209 = vrot.lane.b32.xlu0 %v1773, 80
        %v2210 = vpop.permute.xlu0 %2209
        %2211 = vrot.lane.b32.xlu0 %v1774, 80
        %v2212 = vpop.permute.xlu0 %2211
        %2213 = vrot.lane.b32.xlu0 %v1775, 80
        %v2214 = vpop.permute.xlu0 %2213
        %2215 = vrot.lane.b32.xlu0 %v1776, 80
        %v2216 = vpop.permute.xlu0 %2215
        %2217 = vrot.lane.b32.xlu0 %v1777, 80
        %v2218 = vpop.permute.xlu0 %2217
        %2219 = vrot.lane.b32.xlu0 %v1778, 80
        %v2220 = vpop.permute.xlu0 %2219
        %2229 = vmatprep.subr.bf16.mxu0 0
        %2230 = vmatpush1.bf16.msra.mxu0 %v2220
        %2231 = vmatprep.subr.bf16.mxu0 0
        %2232 = vmatpush1.bf16.msra.mxu0 %v2218
        %2233 = vmatprep.subr.bf16.mxu0 0
        %2234 = vmatpush1.bf16.msra.mxu0 %v2216
        %2235 = vmatprep.subr.bf16.mxu0 0
        %2236 = vmatpush1.bf16.msra.mxu0 %v2214
        %2237 = vmatprep.subr.bf16.mxu0 0
        %2238 = vmatpush1.bf16.msra.mxu0 %v2212
        %2239 = vmatprep.subr.bf16.mxu0 0
        %2240 = vmatpush1.bf16.msra.mxu0 %v2210
        %2241 = vmatprep.subr.bf16.mxu0 0
        %2242 = vmatpush1.bf16.msra.mxu0 %v2208
        %2243 = vmatprep.subr.bf16.mxu0 0
        %2244 = vmatpush1.bf16.msra.mxu0 %v2206
        %2245 = vmatprep.subr.bf16.mxu0 0
        %2246 = vmatpush2.bf16.msra.mxu0 0
        %2247 = vmatprep.subr.bf16.mxu0 0
        %2248 = vmatpush2.bf16.msra.mxu0 0
        %2249 = vmatprep.subr.bf16.mxu0 0
        %2250 = vmatpush2.bf16.msra.mxu0 0
        %2251 = vmatprep.subr.bf16.mxu0 0
        %2252 = vmatpush2.bf16.msra.mxu0 0
        %2253 = vmatprep.subr.bf16.mxu0 0
        %2254 = vmatpush2.bf16.msra.mxu0 0
        %2255 = vmatprep.subr.bf16.mxu0 0
        %2256 = vmatpush2.bf16.msra.mxu0 0
        %2257 = vmatprep.subr.bf16.mxu0 0
        %2258 = vmatpush2.bf16.msra.mxu0 0
        %2259 = vmatprep.subr.bf16.mxu0 0
        %2260 = vmatpush2.bf16.msra.mxu0 0
        %2261 = vmatprep.mubr.bf16.mxu0 0
        %2262 = vmatmul.mubr.bf16.gmra.mxu0 %v2189
        %v2263 = vpop.f32.mrf.mxu0
        %v2264 = vadd.f32 0.0, %v2263
        %v2265 = vpop.f32.mrf.mxu0
        %v2266 = vpop.f32.mrf.mxu0
        %v2267 = vadd.f32 0.0, %v2266
        %v2268 = vpop.f32.mrf.mxu0
        %2269 = vmatprep.mubr.bf16.mxu0 0
        %2270 = vmatmul.mubr.bf16.gmra.mxu0 %v2190
        %v2271 = vpop.f32.mrf.mxu0
        %v2272 = vadd.f32 0.0, %v2271
        %v2273 = vpop.f32.mrf.mxu0
        %v2274 = vpop.f32.mrf.mxu0
        %v2275 = vadd.f32 0.0, %v2274
        %v2276 = vpop.f32.mrf.mxu0
        %2277 = vmatprep.mubr.bf16.mxu0 0
        %2278 = vmatmul.mubr.bf16.gmra.mxu0 %v2191
        %v2279 = vpop.f32.mrf.mxu0
        %v2280 = vadd.f32 0.0, %v2279
        %v2281 = vpop.f32.mrf.mxu0
        %v2282 = vpop.f32.mrf.mxu0
        %v2283 = vadd.f32 0.0, %v2282
        %v2284 = vpop.f32.mrf.mxu0
        %2285 = vmatprep.mubr.bf16.mxu0 0
        %2286 = vmatmul.mubr.bf16.gmra.mxu0 %v2192
        %v2287 = vpop.f32.mrf.mxu0
        %v2288 = vadd.f32 0.0, %v2287
        %v2289 = vpop.f32.mrf.mxu0
        %v2290 = vpop.f32.mrf.mxu0
        %v2291 = vadd.f32 0.0, %v2290
        %v2292 = vpop.f32.mrf.mxu0
        %2293 = vmatprep.mubr.bf16.mxu0 0
        %2294 = vmatmul.mubr.bf16.gmra.mxu0 %v2193
        %v2295 = vpop.f32.mrf.mxu0
        %v2296 = vadd.f32 0.0, %v2295
        %v2297 = vpop.f32.mrf.mxu0
        %v2298 = vpop.f32.mrf.mxu0
        %v2299 = vadd.f32 0.0, %v2298
        %v2300 = vpop.f32.mrf.mxu0
        %2301 = vmatprep.mubr.bf16.mxu0 0
        %2302 = vmatmul.mubr.bf16.gmra.mxu0 %v2194
        %v2303 = vpop.f32.mrf.mxu0
        %v2304 = vadd.f32 0.0, %v2303
        %v2305 = vpop.f32.mrf.mxu0
        %v2306 = vpop.f32.mrf.mxu0
        %v2307 = vadd.f32 0.0, %v2306
        %v2308 = vpop.f32.mrf.mxu0
        %2309 = vmatprep.mubr.bf16.mxu0 0
        %2310 = vmatmul.mubr.bf16.gmra.mxu0 %v2195
        %v2311 = vpop.f32.mrf.mxu0
        %v2312 = vadd.f32 0.0, %v2311
        %v2313 = vpop.f32.mrf.mxu0
        %v2314 = vpop.f32.mrf.mxu0
        %v2315 = vadd.f32 0.0, %v2314
        %v2316 = vpop.f32.mrf.mxu0
        %2317 = vmatprep.mubr.bf16.mxu0 0
        %2318 = vmatmul.mubr.bf16.gmra.mxu0 %v2196
        %v2319 = vpop.f32.mrf.mxu0
        %v2320 = vadd.f32 0.0, %v2319
        %v2321 = vpop.f32.mrf.mxu0
        %v2322 = vpop.f32.mrf.mxu0
        %v2323 = vadd.f32 0.0, %v2322
        %v2324 = vpop.f32.mrf.mxu0
        %2325 = vdwg.mxu0
        %v2326 = vadd.f32 %v2141, %v2264
        %v2327 = vadd.f32 %v2142, %v2267
        %v2328 = vadd.f32 %v2143, %v2272
        %v2329 = vadd.f32 %v2144, %v2275
        %v2330 = vadd.f32 %v2145, %v2280
        %v2331 = vadd.f32 %v2146, %v2283
        %v2332 = vadd.f32 %v2147, %v2288
        %v2333 = vadd.f32 %v2148, %v2291
        %v2334 = vadd.f32 %v2149, %v2296
        %v2335 = vadd.f32 %v2150, %v2299
        %v2336 = vadd.f32 %v2151, %v2304
        %v2337 = vadd.f32 %v2152, %v2307
        %v2338 = vadd.f32 %v2153, %v2312
        %v2339 = vadd.f32 %v2154, %v2315
        %v2340 = vadd.f32 %v2155, %v2320
        %v2341 = vadd.f32 %v2156, %v2323
        %v2342 = vmul.f32 %v2326, %v2326
        %v2343 = vmul.f32 %v2327, %v2327
        %v2344 = vmul.f32 %v2328, %v2328
        %v2345 = vmul.f32 %v2329, %v2329
        %v2346 = vmul.f32 %v2330, %v2330
        %v2347 = vmul.f32 %v2331, %v2331
        %v2348 = vmul.f32 %v2332, %v2332
        %v2349 = vmul.f32 %v2333, %v2333
        %v2350 = vmul.f32 %v2334, %v2334
        %v2351 = vmul.f32 %v2335, %v2335
        %v2352 = vmul.f32 %v2336, %v2336
        %v2353 = vmul.f32 %v2337, %v2337
        %v2354 = vmul.f32 %v2338, %v2338
        %v2355 = vmul.f32 %v2339, %v2339
        %v2356 = vmul.f32 %v2340, %v2340
        %v2357 = vmul.f32 %v2341, %v2341
        %vm2358 = vcmask 130048
        %v2359 = vsel %vm2358, %v2342, 0.0
        %2360 = vadd.xlane.f32.xlu0 %v2359
        %v2361 = vpop.xlane.xlu0 %2360
        %v2362 = vsel %vm2358, %v2343, 0.0
        %2363 = vadd.xlane.f32.xlu0 %v2362
        %v2364 = vpop.xlane.xlu0 %2363
        %v2365 = vsel %vm2358, %v2344, 0.0
        %2366 = vadd.xlane.f32.xlu0 %v2365
        %v2367 = vpop.xlane.xlu0 %2366
        %v2368 = vsel %vm2358, %v2345, 0.0
        %2369 = vadd.xlane.f32.xlu0 %v2368
        %v2370 = vpop.xlane.xlu0 %2369
        %v2371 = vsel %vm2358, %v2346, 0.0
        %2372 = vadd.xlane.f32.xlu0 %v2371
        %v2373 = vpop.xlane.xlu0 %2372
        %v2374 = vsel %vm2358, %v2347, 0.0
        %2375 = vadd.xlane.f32.xlu0 %v2374
        %v2376 = vpop.xlane.xlu0 %2375
        %v2377 = vsel %vm2358, %v2348, 0.0
        %2378 = vadd.xlane.f32.xlu0 %v2377
        %v2379 = vpop.xlane.xlu0 %2378
        %v2380 = vsel %vm2358, %v2349, 0.0
        %2381 = vadd.xlane.f32.xlu0 %v2380
        %v2382 = vpop.xlane.xlu0 %2381
        %v2383 = vsel %vm2358, %v2350, 0.0
        %2384 = vadd.xlane.f32.xlu0 %v2383
        %v2385 = vpop.xlane.xlu0 %2384
        %v2386 = vsel %vm2358, %v2351, 0.0
        %2387 = vadd.xlane.f32.xlu0 %v2386
        %v2388 = vpop.xlane.xlu0 %2387
        %v2389 = vsel %vm2358, %v2352, 0.0
        %2390 = vadd.xlane.f32.xlu0 %v2389
        %v2391 = vpop.xlane.xlu0 %2390
        %v2392 = vsel %vm2358, %v2353, 0.0
        %2393 = vadd.xlane.f32.xlu0 %v2392
        %v2394 = vpop.xlane.xlu0 %2393
        %v2395 = vsel %vm2358, %v2354, 0.0
        %2396 = vadd.xlane.f32.xlu0 %v2395
        %v2397 = vpop.xlane.xlu0 %2396
        %v2398 = vsel %vm2358, %v2355, 0.0
        %2399 = vadd.xlane.f32.xlu0 %v2398
        %v2400 = vpop.xlane.xlu0 %2399
        %v2401 = vsel %vm2358, %v2356, 0.0
        %2402 = vadd.xlane.f32.xlu0 %v2401
        %v2403 = vpop.xlane.xlu0 %2402
        %v2404 = vsel %vm2358, %v2357, 0.0
        %2405 = vadd.xlane.f32.xlu0 %v2404
        %v2406 = vpop.xlane.xlu0 %2405
        %v2407 = vmax.f32 %v2361, 1e-15
        %v2408 = vmax.f32 %v2364, 1e-15
        %v2409 = vmax.f32 %v2367, 1e-15
        %v2410 = vmax.f32 %v2370, 1e-15
        %v2411 = vmax.f32 %v2373, 1e-15
        %v2412 = vmax.f32 %v2376, 1e-15
        %v2413 = vmax.f32 %v2379, 1e-15
        %v2414 = vmax.f32 %v2382, 1e-15
        %v2415 = vmax.f32 %v2385, 1e-15
        %v2416 = vmax.f32 %v2388, 1e-15
        %v2417 = vmax.f32 %v2391, 1e-15
        %v2418 = vmax.f32 %v2394, 1e-15
        %v2419 = vmax.f32 %v2397, 1e-15
        %v2420 = vmax.f32 %v2400, 1e-15
        %v2421 = vmax.f32 %v2403, 1e-15
        %v2422 = vmax.f32 %v2406, 1e-15
        %v2423 = vrsqrt.pop %v2407
        %v2424 = vrsqrt.pop %v2408
        %v2425 = vrsqrt.pop %v2409
        %v2426 = vrsqrt.pop %v2410
        %v2427 = vrsqrt.pop %v2411
        %v2428 = vrsqrt.pop %v2412
        %v2429 = vrsqrt.pop %v2413
        %v2430 = vrsqrt.pop %v2414
        %v2431 = vrsqrt.pop %v2415
        %v2432 = vrsqrt.pop %v2416
        %v2433 = vrsqrt.pop %v2417
        %v2434 = vrsqrt.pop %v2418
        %v2435 = vrsqrt.pop %v2419
        %v2436 = vrsqrt.pop %v2420
        %v2437 = vrsqrt.pop %v2421
        %v2438 = vrsqrt.pop %v2422
        %v2439 = vmul.f32 %v2326, %v2423
        %v2440 = vmul.f32 %v2327, %v2424
        %v2441 = vmul.f32 %v2328, %v2425
        %v2442 = vmul.f32 %v2329, %v2426
        %v2443 = vmul.f32 %v2330, %v2427
        %v2444 = vmul.f32 %v2331, %v2428
        %v2445 = vmul.f32 %v2332, %v2429
        %v2446 = vmul.f32 %v2333, %v2430
        %v2447 = vmul.f32 %v2334, %v2431
        %v2448 = vmul.f32 %v2335, %v2432
        %v2449 = vmul.f32 %v2336, %v2433
        %v2450 = vmul.f32 %v2337, %v2434
        %v2451 = vmul.f32 %v2338, %v2435
        %v2452 = vmul.f32 %v2339, %v2436
        %v2453 = vmul.f32 %v2340, %v2437
        %v2454 = vmul.f32 %v2341, %v2438
        %v2455 = vmax.f32 %v2439, 0.0
        %v2456 = vmax.f32 %v2440, 0.0
        %v2457 = vmax.f32 %v2441, 0.0
        %v2458 = vmax.f32 %v2442, 0.0
        %v2459 = vmax.f32 %v2443, 0.0
        %v2460 = vmax.f32 %v2444, 0.0
        %v2461 = vmax.f32 %v2445, 0.0
        %v2462 = vmax.f32 %v2446, 0.0
        %v2463 = vmax.f32 %v2447, 0.0
        %v2464 = vmax.f32 %v2448, 0.0
        %v2465 = vmax.f32 %v2449, 0.0
        %v2466 = vmax.f32 %v2450, 0.0
        %v2467 = vmax.f32 %v2451, 0.0
        %v2468 = vmax.f32 %v2452, 0.0
        %v2469 = vmax.f32 %v2453, 0.0
        %v2470 = vmax.f32 %v2454, 0.0
        %v2471 = vmul.f32 %v2455, %v2455
        %v2472 = vmul.f32 %v2456, %v2456
        %v2473 = vmul.f32 %v2457, %v2457
        %v2474 = vmul.f32 %v2458, %v2458
        %v2475 = vmul.f32 %v2459, %v2459
        %v2476 = vmul.f32 %v2460, %v2460
        %v2477 = vmul.f32 %v2461, %v2461
        %v2478 = vmul.f32 %v2462, %v2462
        %v2479 = vmul.f32 %v2463, %v2463
        %v2480 = vmul.f32 %v2464, %v2464
        %v2481 = vmul.f32 %v2465, %v2465
        %v2482 = vmul.f32 %v2466, %v2466
        %v2483 = vmul.f32 %v2467, %v2467
        %v2484 = vmul.f32 %v2468, %v2468
        %v2485 = vmul.f32 %v2469, %v2469
        %v2486 = vmul.f32 %v2470, %v2470
        %v2487 = vsel %vm2358, %v2471, 0.0
        %2488 = vadd.xlane.f32.xlu0 %v2487
        %v2489 = vpop.xlane.xlu0 %2488
        %v2490 = vsel %vm2358, %v2472, 0.0
        %2491 = vadd.xlane.f32.xlu0 %v2490
        %v2492 = vpop.xlane.xlu0 %2491
        %v2493 = vsel %vm2358, %v2473, 0.0
        %2494 = vadd.xlane.f32.xlu0 %v2493
        %v2495 = vpop.xlane.xlu0 %2494
        %v2496 = vsel %vm2358, %v2474, 0.0
        %2497 = vadd.xlane.f32.xlu0 %v2496
        %v2498 = vpop.xlane.xlu0 %2497
        %v2499 = vsel %vm2358, %v2475, 0.0
        %2500 = vadd.xlane.f32.xlu0 %v2499
        %v2501 = vpop.xlane.xlu0 %2500
        %v2502 = vsel %vm2358, %v2476, 0.0
        %2503 = vadd.xlane.f32.xlu0 %v2502
        %v2504 = vpop.xlane.xlu0 %2503
        %v2505 = vsel %vm2358, %v2477, 0.0
        %2506 = vadd.xlane.f32.xlu0 %v2505
        %v2507 = vpop.xlane.xlu0 %2506
        %v2508 = vsel %vm2358, %v2478, 0.0
        %2509 = vadd.xlane.f32.xlu0 %v2508
        %v2510 = vpop.xlane.xlu0 %2509
        %v2511 = vsel %vm2358, %v2479, 0.0
        %2512 = vadd.xlane.f32.xlu0 %v2511
        %v2513 = vpop.xlane.xlu0 %2512
        %v2514 = vsel %vm2358, %v2480, 0.0
        %2515 = vadd.xlane.f32.xlu0 %v2514
        %v2516 = vpop.xlane.xlu0 %2515
        %v2517 = vsel %vm2358, %v2481, 0.0
        %2518 = vadd.xlane.f32.xlu0 %v2517
        %v2519 = vpop.xlane.xlu0 %2518
        %v2520 = vsel %vm2358, %v2482, 0.0
        %2521 = vadd.xlane.f32.xlu0 %v2520
        %v2522 = vpop.xlane.xlu0 %2521
        %v2523 = vsel %vm2358, %v2483, 0.0
        %2524 = vadd.xlane.f32.xlu0 %v2523
        %v2525 = vpop.xlane.xlu0 %2524
        %v2526 = vsel %vm2358, %v2484, 0.0
        %2527 = vadd.xlane.f32.xlu0 %v2526
        %v2528 = vpop.xlane.xlu0 %2527
        %v2529 = vsel %vm2358, %v2485, 0.0
        %2530 = vadd.xlane.f32.xlu0 %v2529
        %v2531 = vpop.xlane.xlu0 %2530
        %v2532 = vsel %vm2358, %v2486, 0.0
        %2533 = vadd.xlane.f32.xlu0 %v2532
        %v2534 = vpop.xlane.xlu0 %2533
        %v2535 = vmax.f32 %v2489, 1e-15
        %v2536 = vmax.f32 %v2492, 1e-15
        %v2537 = vmax.f32 %v2495, 1e-15
        %v2538 = vmax.f32 %v2498, 1e-15
        %v2539 = vmax.f32 %v2501, 1e-15
        %v2540 = vmax.f32 %v2504, 1e-15
        %v2541 = vmax.f32 %v2507, 1e-15
        %v2542 = vmax.f32 %v2510, 1e-15
        %v2543 = vmax.f32 %v2513, 1e-15
        %v2544 = vmax.f32 %v2516, 1e-15
        %v2545 = vmax.f32 %v2519, 1e-15
        %v2546 = vmax.f32 %v2522, 1e-15
        %v2547 = vmax.f32 %v2525, 1e-15
        %v2548 = vmax.f32 %v2528, 1e-15
        %v2549 = vmax.f32 %v2531, 1e-15
        %v2550 = vmax.f32 %v2534, 1e-15
        %v2551 = vrsqrt.pop %v2535
        %v2552 = vrsqrt.pop %v2536
        %v2553 = vrsqrt.pop %v2537
        %v2554 = vrsqrt.pop %v2538
        %v2555 = vrsqrt.pop %v2539
        %v2556 = vrsqrt.pop %v2540
        %v2557 = vrsqrt.pop %v2541
        %v2558 = vrsqrt.pop %v2542
        %v2559 = vrsqrt.pop %v2543
        %v2560 = vrsqrt.pop %v2544
        %v2561 = vrsqrt.pop %v2545
        %v2562 = vrsqrt.pop %v2546
        %v2563 = vrsqrt.pop %v2547
        %v2564 = vrsqrt.pop %v2548
        %v2565 = vrsqrt.pop %v2549
        %v2566 = vrsqrt.pop %v2550
        %v2567 = vmul.f32 %v2455, %v2551
        %v2568 = vmul.f32 %v2456, %v2552
        %v2569 = vmul.f32 %v2457, %v2553
        %v2570 = vmul.f32 %v2458, %v2554
        %v2571 = vmul.f32 %v2459, %v2555
        %v2572 = vmul.f32 %v2460, %v2556
        %v2573 = vmul.f32 %v2461, %v2557
        %v2574 = vmul.f32 %v2462, %v2558
        %v2575 = vmul.f32 %v2463, %v2559
        %v2576 = vmul.f32 %v2464, %v2560
        %v2577 = vmul.f32 %v2465, %v2561
        %v2578 = vmul.f32 %v2466, %v2562
        %v2579 = vmul.f32 %v2467, %v2563
        %v2580 = vmul.f32 %v2468, %v2564
        %v2581 = vmul.f32 %v2469, %v2565
        %v2582 = vmul.f32 %v2470, %v2566
        %v2583 = vpack.c.bf16 %v2568, %v2567
        %v2584 = vpack.c.bf16 %v2570, %v2569
        %v2585 = vpack.c.bf16 %v2572, %v2571
        %v2586 = vpack.c.bf16 %v2574, %v2573
        %v2587 = vpack.c.bf16 %v2576, %v2575
        %v2588 = vpack.c.bf16 %v2578, %v2577
        %v2589 = vpack.c.bf16 %v2580, %v2579
        %v2590 = vpack.c.bf16 %v2582, %v2581
        %v2591 = vld [vmem:[%s7] sm:$0xf]
        %v2592 = vld [vmem:[%s7 + $0x4] sm:$0xf]
        %v2595 = vunpack.c.l.b16 %v2591
        %v2596 = vunpack.c.l.b16 %v2592
        %v2597 = vpack.c.b16 %v2596, %v2595
        %v2600 = vsel %vm2358, %v2583, 0
        %v2603 = vsel %vm2358, %v2584, 0
        %v2606 = vsel %vm2358, %v2585, 0
        %v2609 = vsel %vm2358, %v2586, 0
        %v2612 = vsel %vm2358, %v2587, 0
        %v2615 = vsel %vm2358, %v2588, 0
        %v2618 = vsel %vm2358, %v2589, 0
        %v2621 = vsel %vm2358, %v2590, 0
        %2623 = vmatprep.subr.bf16.mxu0 0
        %2624 = vmatpush1.bf16.msra.mxu0 0
        %2625 = vmatprep.subr.bf16.mxu0 0
        %2626 = vmatpush1.bf16.msra.mxu0 0
        %2627 = vmatprep.subr.bf16.mxu0 0
        %2628 = vmatpush1.bf16.msra.mxu0 0
        %2629 = vmatprep.subr.bf16.mxu0 0
        %2630 = vmatpush1.bf16.msra.mxu0 0
        %2631 = vmatprep.subr.bf16.mxu0 0
        %2632 = vmatpush1.bf16.msra.mxu0 0
        %2633 = vmatprep.subr.bf16.mxu0 0
        %2634 = vmatpush1.bf16.msra.mxu0 0
        %2635 = vmatprep.subr.bf16.mxu0 0
        %2636 = vmatpush1.bf16.msra.mxu0 0
        %2637 = vmatprep.subr.bf16.mxu0 0
        %2638 = vmatpush1.bf16.msra.mxu0 %v2597
        %2639 = vmatprep.subr.bf16.mxu0 0
        %2640 = vmatpush2.bf16.msra.mxu0 0
        %2641 = vmatprep.subr.bf16.mxu0 0
        %2642 = vmatpush2.bf16.msra.mxu0 0
        %2643 = vmatprep.subr.bf16.mxu0 0
        %2644 = vmatpush2.bf16.msra.mxu0 0
        %2645 = vmatprep.subr.bf16.mxu0 0
        %2646 = vmatpush2.bf16.msra.mxu0 0
        %2647 = vmatprep.subr.bf16.mxu0 0
        %2648 = vmatpush2.bf16.msra.mxu0 0
        %2649 = vmatprep.subr.bf16.mxu0 0
        %2650 = vmatpush2.bf16.msra.mxu0 0
        %2651 = vmatprep.subr.bf16.mxu0 0
        %2652 = vmatpush2.bf16.msra.mxu0 0
        %2653 = vmatprep.subr.bf16.mxu0 0
        %2654 = vmatpush2.bf16.msra.mxu0 0
        %2655 = vmatprep.mubr.bf16.mxu0 0
        %2656 = vmatmul.mubr.bf16.gmra.mxu0 %v2600
        %v2657 = vpop.f32.mrf.mxu0
        %v2658 = vadd.f32 0.0, %v2657
        %v2659 = vpop.f32.mrf.mxu0
        %v2660 = vpop.f32.mrf.mxu0
        %v2661 = vadd.f32 0.0, %v2660
        %v2662 = vpop.f32.mrf.mxu0
        %2663 = vmatprep.mubr.bf16.mxu0 0
        %2664 = vmatmul.mubr.bf16.gmra.mxu0 %v2603
        %v2665 = vpop.f32.mrf.mxu0
        %v2666 = vadd.f32 0.0, %v2665
        %v2667 = vpop.f32.mrf.mxu0
        %v2668 = vpop.f32.mrf.mxu0
        %v2669 = vadd.f32 0.0, %v2668
        %v2670 = vpop.f32.mrf.mxu0
        %2671 = vmatprep.mubr.bf16.mxu0 0
        %2672 = vmatmul.mubr.bf16.gmra.mxu0 %v2606
        %v2673 = vpop.f32.mrf.mxu0
        %v2674 = vadd.f32 0.0, %v2673
        %v2675 = vpop.f32.mrf.mxu0
        %v2676 = vpop.f32.mrf.mxu0
        %v2677 = vadd.f32 0.0, %v2676
        %v2678 = vpop.f32.mrf.mxu0
        %2679 = vmatprep.mubr.bf16.mxu0 0
        %2680 = vmatmul.mubr.bf16.gmra.mxu0 %v2609
        %v2681 = vpop.f32.mrf.mxu0
        %v2682 = vadd.f32 0.0, %v2681
        %v2683 = vpop.f32.mrf.mxu0
        %v2684 = vpop.f32.mrf.mxu0
        %v2685 = vadd.f32 0.0, %v2684
        %v2686 = vpop.f32.mrf.mxu0
        %2687 = vmatprep.mubr.bf16.mxu0 0
        %2688 = vmatmul.mubr.bf16.gmra.mxu0 %v2612
        %v2689 = vpop.f32.mrf.mxu0
        %v2690 = vadd.f32 0.0, %v2689
        %v2691 = vpop.f32.mrf.mxu0
        %v2692 = vpop.f32.mrf.mxu0
        %v2693 = vadd.f32 0.0, %v2692
        %v2694 = vpop.f32.mrf.mxu0
        %2695 = vmatprep.mubr.bf16.mxu0 0
        %2696 = vmatmul.mubr.bf16.gmra.mxu0 %v2615
        %v2697 = vpop.f32.mrf.mxu0
        %v2698 = vadd.f32 0.0, %v2697
        %v2699 = vpop.f32.mrf.mxu0
        %v2700 = vpop.f32.mrf.mxu0
        %v2701 = vadd.f32 0.0, %v2700
        %v2702 = vpop.f32.mrf.mxu0
        %2703 = vmatprep.mubr.bf16.mxu0 0
        %2704 = vmatmul.mubr.bf16.gmra.mxu0 %v2618
        %v2705 = vpop.f32.mrf.mxu0
        %v2706 = vadd.f32 0.0, %v2705
        %v2707 = vpop.f32.mrf.mxu0
        %v2708 = vpop.f32.mrf.mxu0
        %v2709 = vadd.f32 0.0, %v2708
        %v2710 = vpop.f32.mrf.mxu0
        %2711 = vmatprep.mubr.bf16.mxu0 0
        %2712 = vmatmul.mubr.bf16.gmra.mxu0 %v2621
        %v2713 = vpop.f32.mrf.mxu0
        %v2714 = vadd.f32 0.0, %v2713
        %v2715 = vpop.f32.mrf.mxu0
        %v2716 = vpop.f32.mrf.mxu0
        %v2717 = vadd.f32 0.0, %v2716
        %v2718 = vpop.f32.mrf.mxu0
        %2719 = vdwg.mxu0
        %2720 = vmatprep.subr.mxu0 0.0
        %2721 = vmatpush1.msra.mxu0 %v2582
        %2722 = vmatprep.subr.mxu0 0.0
        %2723 = vmatpush1.msra.mxu0 %v2581
        %2724 = vmatprep.subr.mxu0 0.0
        %2725 = vmatpush1.msra.mxu0 %v2580
        %2726 = vmatprep.subr.mxu0 0.0
        %2727 = vmatpush1.msra.mxu0 %v2579
        %2728 = vmatprep.subr.mxu0 0.0
        %2729 = vmatpush1.msra.mxu0 %v2578
        %2730 = vmatprep.subr.mxu0 0.0
        %2731 = vmatpush1.msra.mxu0 %v2577
        %2732 = vmatprep.subr.mxu0 0.0
        %2733 = vmatpush1.msra.mxu0 %v2576
        %2734 = vmatprep.subr.mxu0 0.0
        %2735 = vmatpush1.msra.mxu0 %v2575
        %2736 = vmatprep.subr.mxu0 0.0
        %2737 = vmatpush1.msra.mxu0 %v2574
        %2738 = vmatprep.subr.mxu0 0.0
        %2739 = vmatpush1.msra.mxu0 %v2573
        %2740 = vmatprep.subr.mxu0 0.0
        %2741 = vmatpush1.msra.mxu0 %v2572
        %2742 = vmatprep.subr.mxu0 0.0
        %2743 = vmatpush1.msra.mxu0 %v2571
        %2744 = vmatprep.subr.mxu0 0.0
        %2745 = vmatpush1.msra.mxu0 %v2570
        %2746 = vmatprep.subr.mxu0 0.0
        %2747 = vmatpush1.msra.mxu0 %v2569
        %2748 = vmatprep.subr.mxu0 0.0
        %2749 = vmatpush1.msra.mxu0 %v2568
        %2750 = vmatprep.subr.mxu0 0.0
        %2751 = vmatpush1.msra.mxu0 %v2567
        %2752 = vmatprep.subr.mxu0 0.0
        %2753 = vmatpush2.msra.mxu0 0.0
        %2754 = vmatprep.subr.mxu0 0.0
        %2755 = vmatpush2.msra.mxu0 0.0
        %2756 = vmatprep.subr.mxu0 0.0
        %2757 = vmatpush2.msra.mxu0 0.0
        %2758 = vmatprep.subr.mxu0 0.0
        %2759 = vmatpush2.msra.mxu0 0.0
        %2760 = vmatprep.subr.mxu0 0.0
        %2761 = vmatpush2.msra.mxu0 0.0
        %2762 = vmatprep.subr.mxu0 0.0
        %2763 = vmatpush2.msra.mxu0 0.0
        %2764 = vmatprep.subr.mxu0 0.0
        %2765 = vmatpush2.msra.mxu0 0.0
        %2766 = vmatprep.subr.mxu0 0.0
        %2767 = vmatpush2.msra.mxu0 0.0
        %2768 = vmatprep.subr.mxu0 0.0
        %2769 = vmatpush2.msra.mxu0 0.0
        %2770 = vmatprep.subr.mxu0 0.0
        %2771 = vmatpush2.msra.mxu0 0.0
        %2772 = vmatprep.subr.mxu0 0.0
        %2773 = vmatpush2.msra.mxu0 0.0
        %2774 = vmatprep.subr.mxu0 0.0
        %2775 = vmatpush2.msra.mxu0 0.0
        %2776 = vmatprep.subr.mxu0 0.0
        %2777 = vmatpush2.msra.mxu0 0.0
        %2778 = vmatprep.subr.mxu0 0.0
        %2779 = vmatpush2.msra.mxu0 0.0
        %2780 = vmatprep.subr.mxu0 0.0
        %2781 = vmatpush2.msra.mxu0 0.0
        %2782 = vmatprep.subr.mxu0 0.0
        %2783 = vmatpush2.msra.mxu0 0.0
        %2784 = vmatprep.mubr.f32.mxu0 0.0
        %2785 = vmatmul.mubr.f32.gmra.mxu0 %v525
        %v2786 = vpop.f32.mrf.mxu0
        %v2787 = vadd.f32 0.0, %v2786
        %v2788 = vpop.f32.mrf.mxu0
        %2789 = vmatprep.mubr.f32.mxu0 0.0
        %2790 = vmatmul.mubr.f32.gmra.mxu0 %v526
        %v2791 = vpop.f32.mrf.mxu0
        %v2792 = vadd.f32 0.0, %v2791
        %v2793 = vpop.f32.mrf.mxu0
        %2794 = vmatprep.mubr.f32.mxu0 0.0
        %2795 = vmatmul.mubr.f32.gmra.mxu0 %v527
        %v2796 = vpop.f32.mrf.mxu0
        %v2797 = vadd.f32 0.0, %v2796
        %v2798 = vpop.f32.mrf.mxu0
        %2799 = vmatprep.mubr.f32.mxu0 0.0
        %2800 = vmatmul.mubr.f32.gmra.mxu0 %v528
        %v2801 = vpop.f32.mrf.mxu0
        %v2802 = vadd.f32 0.0, %v2801
        %v2803 = vpop.f32.mrf.mxu0
        %2804 = vmatprep.mubr.f32.mxu0 0.0
        %2805 = vmatmul.mubr.f32.gmra.mxu0 %v529
        %v2806 = vpop.f32.mrf.mxu0
        %v2807 = vadd.f32 0.0, %v2806
        %v2808 = vpop.f32.mrf.mxu0
        %2809 = vmatprep.mubr.f32.mxu0 0.0
        %2810 = vmatmul.mubr.f32.gmra.mxu0 %v530
        %v2811 = vpop.f32.mrf.mxu0
        %v2812 = vadd.f32 0.0, %v2811
        %v2813 = vpop.f32.mrf.mxu0
        %2814 = vmatprep.mubr.f32.mxu0 0.0
        %2815 = vmatmul.mubr.f32.gmra.mxu0 %v531
        %v2816 = vpop.f32.mrf.mxu0
        %v2817 = vadd.f32 0.0, %v2816
        %v2818 = vpop.f32.mrf.mxu0
        %2819 = vmatprep.mubr.f32.mxu0 0.0
        %2820 = vmatmul.mubr.f32.gmra.mxu0 %v532
        %v2821 = vpop.f32.mrf.mxu0
        %v2822 = vadd.f32 0.0, %v2821
        %v2823 = vpop.f32.mrf.mxu0
        %2824 = vmatprep.mubr.f32.mxu0 0.0
        %2825 = vmatmul.mubr.f32.gmra.mxu0 %v533
        %v2826 = vpop.f32.mrf.mxu0
        %v2827 = vadd.f32 0.0, %v2826
        %v2828 = vpop.f32.mrf.mxu0
        %2829 = vmatprep.mubr.f32.mxu0 0.0
        %2830 = vmatmul.mubr.f32.gmra.mxu0 %v534
        %v2831 = vpop.f32.mrf.mxu0
        %v2832 = vadd.f32 0.0, %v2831
        %v2833 = vpop.f32.mrf.mxu0
        %2834 = vmatprep.mubr.f32.mxu0 0.0
        %2835 = vmatmul.mubr.f32.gmra.mxu0 %v535
        %v2836 = vpop.f32.mrf.mxu0
        %v2837 = vadd.f32 0.0, %v2836
        %v2838 = vpop.f32.mrf.mxu0
        %2839 = vmatprep.mubr.f32.mxu0 0.0
        %2840 = vmatmul.mubr.f32.gmra.mxu0 %v536
        %v2841 = vpop.f32.mrf.mxu0
        %v2842 = vadd.f32 0.0, %v2841
        %v2843 = vpop.f32.mrf.mxu0
        %2844 = vmatprep.mubr.f32.mxu0 0.0
        %2845 = vmatmul.mubr.f32.gmra.mxu0 %v537
        %v2846 = vpop.f32.mrf.mxu0
        %v2847 = vadd.f32 0.0, %v2846
        %v2848 = vpop.f32.mrf.mxu0
        %2849 = vmatprep.mubr.f32.mxu0 0.0
        %2850 = vmatmul.mubr.f32.gmra.mxu0 %v538
        %v2851 = vpop.f32.mrf.mxu0
        %v2852 = vadd.f32 0.0, %v2851
        %v2853 = vpop.f32.mrf.mxu0
        %2854 = vmatprep.mubr.f32.mxu0 0.0
        %2855 = vmatmul.mubr.f32.gmra.mxu0 %v539
        %v2856 = vpop.f32.mrf.mxu0
        %v2857 = vadd.f32 0.0, %v2856
        %v2858 = vpop.f32.mrf.mxu0
        %2859 = vmatprep.mubr.f32.mxu0 0.0
        %2860 = vmatmul.mubr.f32.gmra.mxu0 %v540
        %v2861 = vpop.f32.mrf.mxu0
        %v2862 = vadd.f32 0.0, %v2861
        %v2863 = vpop.f32.mrf.mxu0
        %2864 = vdwg.mxu0
        %v2865 = vmul.f32 %v2787, %v2787
        %v2866 = vmul.f32 %v2792, %v2792
        %v2867 = vmul.f32 %v2797, %v2797
        %v2868 = vmul.f32 %v2802, %v2802
        %v2869 = vmul.f32 %v2807, %v2807
        %v2870 = vmul.f32 %v2812, %v2812
        %v2871 = vmul.f32 %v2817, %v2817
        %v2872 = vmul.f32 %v2822, %v2822
        %v2873 = vmul.f32 %v2827, %v2827
        %v2874 = vmul.f32 %v2832, %v2832
        %v2875 = vmul.f32 %v2837, %v2837
        %v2876 = vmul.f32 %v2842, %v2842
        %v2877 = vmul.f32 %v2847, %v2847
        %v2878 = vmul.f32 %v2852, %v2852
        %v2879 = vmul.f32 %v2857, %v2857
        %v2880 = vmul.f32 %v2862, %v2862
        %v2881 = vsel %vm2358, %v2865, 0.0
        %2882 = vadd.xlane.f32.xlu0 %v2881
        %v2883 = vpop.xlane.xlu0 %2882
        %v2884 = vsel %vm2358, %v2866, 0.0
        %2885 = vadd.xlane.f32.xlu0 %v2884
        %v2886 = vpop.xlane.xlu0 %2885
        %v2887 = vsel %vm2358, %v2867, 0.0
        %2888 = vadd.xlane.f32.xlu0 %v2887
        %v2889 = vpop.xlane.xlu0 %2888
        %v2890 = vsel %vm2358, %v2868, 0.0
        %2891 = vadd.xlane.f32.xlu0 %v2890
        %v2892 = vpop.xlane.xlu0 %2891
        %v2893 = vsel %vm2358, %v2869, 0.0
        %2894 = vadd.xlane.f32.xlu0 %v2893
        %v2895 = vpop.xlane.xlu0 %2894
        %v2896 = vsel %vm2358, %v2870, 0.0
        %2897 = vadd.xlane.f32.xlu0 %v2896
        %v2898 = vpop.xlane.xlu0 %2897
        %v2899 = vsel %vm2358, %v2871, 0.0
        %2900 = vadd.xlane.f32.xlu0 %v2899
        %v2901 = vpop.xlane.xlu0 %2900
        %v2902 = vsel %vm2358, %v2872, 0.0
        %2903 = vadd.xlane.f32.xlu0 %v2902
        %v2904 = vpop.xlane.xlu0 %2903
        %v2905 = vsel %vm2358, %v2873, 0.0
        %2906 = vadd.xlane.f32.xlu0 %v2905
        %v2907 = vpop.xlane.xlu0 %2906
        %v2908 = vsel %vm2358, %v2874, 0.0
        %2909 = vadd.xlane.f32.xlu0 %v2908
        %v2910 = vpop.xlane.xlu0 %2909
        %v2911 = vsel %vm2358, %v2875, 0.0
        %2912 = vadd.xlane.f32.xlu0 %v2911
        %v2913 = vpop.xlane.xlu0 %2912
        %v2914 = vsel %vm2358, %v2876, 0.0
        %2915 = vadd.xlane.f32.xlu0 %v2914
        %v2916 = vpop.xlane.xlu0 %2915
        %v2917 = vsel %vm2358, %v2877, 0.0
        %2918 = vadd.xlane.f32.xlu0 %v2917
        %v2919 = vpop.xlane.xlu0 %2918
        %v2920 = vsel %vm2358, %v2878, 0.0
        %2921 = vadd.xlane.f32.xlu0 %v2920
        %v2922 = vpop.xlane.xlu0 %2921
        %v2923 = vsel %vm2358, %v2879, 0.0
        %2924 = vadd.xlane.f32.xlu0 %v2923
        %v2925 = vpop.xlane.xlu0 %2924
        %v2926 = vsel %vm2358, %v2880, 0.0
        %2927 = vadd.xlane.f32.xlu0 %v2926
        %v2928 = vpop.xlane.xlu0 %2927
        %2929 = vmatprep.subr.mxu0 0.0
        %2930 = vmatpush1.msra.mxu0 %v2582
        %2931 = vmatprep.subr.mxu0 0.0
        %2932 = vmatpush1.msra.mxu0 %v2581
        %2933 = vmatprep.subr.mxu0 0.0
        %2934 = vmatpush1.msra.mxu0 %v2580
        %2935 = vmatprep.subr.mxu0 0.0
        %2936 = vmatpush1.msra.mxu0 %v2579
        %2937 = vmatprep.subr.mxu0 0.0
        %2938 = vmatpush1.msra.mxu0 %v2578
        %2939 = vmatprep.subr.mxu0 0.0
        %2940 = vmatpush1.msra.mxu0 %v2577
        %2941 = vmatprep.subr.mxu0 0.0
        %2942 = vmatpush1.msra.mxu0 %v2576
        %2943 = vmatprep.subr.mxu0 0.0
        %2944 = vmatpush1.msra.mxu0 %v2575
        %2945 = vmatprep.subr.mxu0 0.0
        %2946 = vmatpush1.msra.mxu0 %v2574
        %2947 = vmatprep.subr.mxu0 0.0
        %2948 = vmatpush1.msra.mxu0 %v2573
        %2949 = vmatprep.subr.mxu0 0.0
        %2950 = vmatpush1.msra.mxu0 %v2572
        %2951 = vmatprep.subr.mxu0 0.0
        %2952 = vmatpush1.msra.mxu0 %v2571
        %2953 = vmatprep.subr.mxu0 0.0
        %2954 = vmatpush1.msra.mxu0 %v2570
        %2955 = vmatprep.subr.mxu0 0.0
        %2956 = vmatpush1.msra.mxu0 %v2569
        %2957 = vmatprep.subr.mxu0 0.0
        %2958 = vmatpush1.msra.mxu0 %v2568
        %2959 = vmatprep.subr.mxu0 0.0
        %2960 = vmatpush1.msra.mxu0 %v2567
        %2961 = vmatprep.subr.mxu0 0.0
        %2962 = vmatpush2.msra.mxu0 0.0
        %2963 = vmatprep.subr.mxu0 0.0
        %2964 = vmatpush2.msra.mxu0 0.0
        %2965 = vmatprep.subr.mxu0 0.0
        %2966 = vmatpush2.msra.mxu0 0.0
        %2967 = vmatprep.subr.mxu0 0.0
        %2968 = vmatpush2.msra.mxu0 0.0
        %2969 = vmatprep.subr.mxu0 0.0
        %2970 = vmatpush2.msra.mxu0 0.0
        %2971 = vmatprep.subr.mxu0 0.0
        %2972 = vmatpush2.msra.mxu0 0.0
        %2973 = vmatprep.subr.mxu0 0.0
        %2974 = vmatpush2.msra.mxu0 0.0
        %2975 = vmatprep.subr.mxu0 0.0
        %2976 = vmatpush2.msra.mxu0 0.0
        %2977 = vmatprep.subr.mxu0 0.0
        %2978 = vmatpush2.msra.mxu0 0.0
        %2979 = vmatprep.subr.mxu0 0.0
        %2980 = vmatpush2.msra.mxu0 0.0
        %2981 = vmatprep.subr.mxu0 0.0
        %2982 = vmatpush2.msra.mxu0 0.0
        %2983 = vmatprep.subr.mxu0 0.0
        %2984 = vmatpush2.msra.mxu0 0.0
        %2985 = vmatprep.subr.mxu0 0.0
        %2986 = vmatpush2.msra.mxu0 0.0
        %2987 = vmatprep.subr.mxu0 0.0
        %2988 = vmatpush2.msra.mxu0 0.0
        %2989 = vmatprep.subr.mxu0 0.0
        %2990 = vmatpush2.msra.mxu0 0.0
        %2991 = vmatprep.subr.mxu0 0.0
        %2992 = vmatpush2.msra.mxu0 0.0
        %2993 = vmatprep.mubr.f32.mxu0 0.0
        %2994 = vmatmul.mubr.f32.gmra.mxu0 %v752
        %v2995 = vpop.f32.mrf.mxu0
        %v2996 = vadd.f32 0.0, %v2995
        %v2997 = vpop.f32.mrf.mxu0
        %2998 = vmatprep.mubr.f32.mxu0 0.0
        %2999 = vmatmul.mubr.f32.gmra.mxu0 %v753
        %v3000 = vpop.f32.mrf.mxu0
        %v3001 = vadd.f32 0.0, %v3000
        %v3002 = vpop.f32.mrf.mxu0
        %3003 = vmatprep.mubr.f32.mxu0 0.0
        %3004 = vmatmul.mubr.f32.gmra.mxu0 %v754
        %v3005 = vpop.f32.mrf.mxu0
        %v3006 = vadd.f32 0.0, %v3005
        %v3007 = vpop.f32.mrf.mxu0
        %3008 = vmatprep.mubr.f32.mxu0 0.0
        %3009 = vmatmul.mubr.f32.gmra.mxu0 %v755
        %v3010 = vpop.f32.mrf.mxu0
        %v3011 = vadd.f32 0.0, %v3010
        %v3012 = vpop.f32.mrf.mxu0
        %3013 = vmatprep.mubr.f32.mxu0 0.0
        %3014 = vmatmul.mubr.f32.gmra.mxu0 %v756
        %v3015 = vpop.f32.mrf.mxu0
        %v3016 = vadd.f32 0.0, %v3015
        %v3017 = vpop.f32.mrf.mxu0
        %3018 = vmatprep.mubr.f32.mxu0 0.0
        %3019 = vmatmul.mubr.f32.gmra.mxu0 %v757
        %v3020 = vpop.f32.mrf.mxu0
        %v3021 = vadd.f32 0.0, %v3020
        %v3022 = vpop.f32.mrf.mxu0
        %3023 = vmatprep.mubr.f32.mxu0 0.0
        %3024 = vmatmul.mubr.f32.gmra.mxu0 %v758
        %v3025 = vpop.f32.mrf.mxu0
        %v3026 = vadd.f32 0.0, %v3025
        %v3027 = vpop.f32.mrf.mxu0
        %3028 = vmatprep.mubr.f32.mxu0 0.0
        %3029 = vmatmul.mubr.f32.gmra.mxu0 %v759
        %v3030 = vpop.f32.mrf.mxu0
        %v3031 = vadd.f32 0.0, %v3030
        %v3032 = vpop.f32.mrf.mxu0
        %3033 = vmatprep.mubr.f32.mxu0 0.0
        %3034 = vmatmul.mubr.f32.gmra.mxu0 %v760
        %v3035 = vpop.f32.mrf.mxu0
        %v3036 = vadd.f32 0.0, %v3035
        %v3037 = vpop.f32.mrf.mxu0
        %3038 = vmatprep.mubr.f32.mxu0 0.0
        %3039 = vmatmul.mubr.f32.gmra.mxu0 %v761
        %v3040 = vpop.f32.mrf.mxu0
        %v3041 = vadd.f32 0.0, %v3040
        %v3042 = vpop.f32.mrf.mxu0
        %3043 = vmatprep.mubr.f32.mxu0 0.0
        %3044 = vmatmul.mubr.f32.gmra.mxu0 %v762
        %v3045 = vpop.f32.mrf.mxu0
        %v3046 = vadd.f32 0.0, %v3045
        %v3047 = vpop.f32.mrf.mxu0
        %3048 = vmatprep.mubr.f32.mxu0 0.0
        %3049 = vmatmul.mubr.f32.gmra.mxu0 %v763
        %v3050 = vpop.f32.mrf.mxu0
        %v3051 = vadd.f32 0.0, %v3050
        %v3052 = vpop.f32.mrf.mxu0
        %3053 = vmatprep.mubr.f32.mxu0 0.0
        %3054 = vmatmul.mubr.f32.gmra.mxu0 %v764
        %v3055 = vpop.f32.mrf.mxu0
        %v3056 = vadd.f32 0.0, %v3055
        %v3057 = vpop.f32.mrf.mxu0
        %3058 = vmatprep.mubr.f32.mxu0 0.0
        %3059 = vmatmul.mubr.f32.gmra.mxu0 %v765
        %v3060 = vpop.f32.mrf.mxu0
        %v3061 = vadd.f32 0.0, %v3060
        %v3062 = vpop.f32.mrf.mxu0
        %3063 = vmatprep.mubr.f32.mxu0 0.0
        %3064 = vmatmul.mubr.f32.gmra.mxu0 %v766
        %v3065 = vpop.f32.mrf.mxu0
        %v3066 = vadd.f32 0.0, %v3065
        %v3067 = vpop.f32.mrf.mxu0
        %3068 = vmatprep.mubr.f32.mxu0 0.0
        %3069 = vmatmul.mubr.f32.gmra.mxu0 %v767
        %v3070 = vpop.f32.mrf.mxu0
        %v3071 = vadd.f32 0.0, %v3070
        %v3072 = vpop.f32.mrf.mxu0
        %3073 = vdwg.mxu0
        %v3074 = vmul.f32 %v2996, %v2996
        %v3075 = vmul.f32 %v3001, %v3001
        %v3076 = vmul.f32 %v3006, %v3006
        %v3077 = vmul.f32 %v3011, %v3011
        %v3078 = vmul.f32 %v3016, %v3016
        %v3079 = vmul.f32 %v3021, %v3021
        %v3080 = vmul.f32 %v3026, %v3026
        %v3081 = vmul.f32 %v3031, %v3031
        %v3082 = vmul.f32 %v3036, %v3036
        %v3083 = vmul.f32 %v3041, %v3041
        %v3084 = vmul.f32 %v3046, %v3046
        %v3085 = vmul.f32 %v3051, %v3051
        %v3086 = vmul.f32 %v3056, %v3056
        %v3087 = vmul.f32 %v3061, %v3061
        %v3088 = vmul.f32 %v3066, %v3066
        %v3089 = vmul.f32 %v3071, %v3071
        %v3090 = vsel %vm2358, %v3074, 0.0
        %3091 = vadd.xlane.f32.xlu0 %v3090
        %v3092 = vpop.xlane.xlu0 %3091
        %v3093 = vsel %vm2358, %v3075, 0.0
        %3094 = vadd.xlane.f32.xlu0 %v3093
        %v3095 = vpop.xlane.xlu0 %3094
        %v3096 = vsel %vm2358, %v3076, 0.0
        %3097 = vadd.xlane.f32.xlu0 %v3096
        %v3098 = vpop.xlane.xlu0 %3097
        %v3099 = vsel %vm2358, %v3077, 0.0
        %3100 = vadd.xlane.f32.xlu0 %v3099
        %v3101 = vpop.xlane.xlu0 %3100
        %v3102 = vsel %vm2358, %v3078, 0.0
        %3103 = vadd.xlane.f32.xlu0 %v3102
        %v3104 = vpop.xlane.xlu0 %3103
        %v3105 = vsel %vm2358, %v3079, 0.0
        %3106 = vadd.xlane.f32.xlu0 %v3105
        %v3107 = vpop.xlane.xlu0 %3106
        %v3108 = vsel %vm2358, %v3080, 0.0
        %3109 = vadd.xlane.f32.xlu0 %v3108
        %v3110 = vpop.xlane.xlu0 %3109
        %v3111 = vsel %vm2358, %v3081, 0.0
        %3112 = vadd.xlane.f32.xlu0 %v3111
        %v3113 = vpop.xlane.xlu0 %3112
        %v3114 = vsel %vm2358, %v3082, 0.0
        %3115 = vadd.xlane.f32.xlu0 %v3114
        %v3116 = vpop.xlane.xlu0 %3115
        %v3117 = vsel %vm2358, %v3083, 0.0
        %3118 = vadd.xlane.f32.xlu0 %v3117
        %v3119 = vpop.xlane.xlu0 %3118
        %v3120 = vsel %vm2358, %v3084, 0.0
        %3121 = vadd.xlane.f32.xlu0 %v3120
        %v3122 = vpop.xlane.xlu0 %3121
        %v3123 = vsel %vm2358, %v3085, 0.0
        %3124 = vadd.xlane.f32.xlu0 %v3123
        %v3125 = vpop.xlane.xlu0 %3124
        %v3126 = vsel %vm2358, %v3086, 0.0
        %3127 = vadd.xlane.f32.xlu0 %v3126
        %v3128 = vpop.xlane.xlu0 %3127
        %v3129 = vsel %vm2358, %v3087, 0.0
        %3130 = vadd.xlane.f32.xlu0 %v3129
        %v3131 = vpop.xlane.xlu0 %3130
        %v3132 = vsel %vm2358, %v3088, 0.0
        %3133 = vadd.xlane.f32.xlu0 %v3132
        %v3134 = vpop.xlane.xlu0 %3133
        %v3135 = vsel %vm2358, %v3089, 0.0
        %3136 = vadd.xlane.f32.xlu0 %v3135
        %v3137 = vpop.xlane.xlu0 %3136
        %3138 = vmatprep.subr.mxu0 0.0
        %3139 = vmatpush1.msra.mxu0 %v2582
        %3140 = vmatprep.subr.mxu0 0.0
        %3141 = vmatpush1.msra.mxu0 %v2581
        %3142 = vmatprep.subr.mxu0 0.0
        %3143 = vmatpush1.msra.mxu0 %v2580
        %3144 = vmatprep.subr.mxu0 0.0
        %3145 = vmatpush1.msra.mxu0 %v2579
        %3146 = vmatprep.subr.mxu0 0.0
        %3147 = vmatpush1.msra.mxu0 %v2578
        %3148 = vmatprep.subr.mxu0 0.0
        %3149 = vmatpush1.msra.mxu0 %v2577
        %3150 = vmatprep.subr.mxu0 0.0
        %3151 = vmatpush1.msra.mxu0 %v2576
        %3152 = vmatprep.subr.mxu0 0.0
        %3153 = vmatpush1.msra.mxu0 %v2575
        %3154 = vmatprep.subr.mxu0 0.0
        %3155 = vmatpush1.msra.mxu0 %v2574
        %3156 = vmatprep.subr.mxu0 0.0
        %3157 = vmatpush1.msra.mxu0 %v2573
        %3158 = vmatprep.subr.mxu0 0.0
        %3159 = vmatpush1.msra.mxu0 %v2572
        %3160 = vmatprep.subr.mxu0 0.0
        %3161 = vmatpush1.msra.mxu0 %v2571
        %3162 = vmatprep.subr.mxu0 0.0
        %3163 = vmatpush1.msra.mxu0 %v2570
        %3164 = vmatprep.subr.mxu0 0.0
        %3165 = vmatpush1.msra.mxu0 %v2569
        %3166 = vmatprep.subr.mxu0 0.0
        %3167 = vmatpush1.msra.mxu0 %v2568
        %3168 = vmatprep.subr.mxu0 0.0
        %3169 = vmatpush1.msra.mxu0 %v2567
        %3170 = vmatprep.subr.mxu0 0.0
        %3171 = vmatpush2.msra.mxu0 0.0
        %3172 = vmatprep.subr.mxu0 0.0
        %3173 = vmatpush2.msra.mxu0 0.0
        %3174 = vmatprep.subr.mxu0 0.0
        %3175 = vmatpush2.msra.mxu0 0.0
        %3176 = vmatprep.subr.mxu0 0.0
        %3177 = vmatpush2.msra.mxu0 0.0
        %3178 = vmatprep.subr.mxu0 0.0
        %3179 = vmatpush2.msra.mxu0 0.0
        %3180 = vmatprep.subr.mxu0 0.0
        %3181 = vmatpush2.msra.mxu0 0.0
        %3182 = vmatprep.subr.mxu0 0.0
        %3183 = vmatpush2.msra.mxu0 0.0
        %3184 = vmatprep.subr.mxu0 0.0
        %3185 = vmatpush2.msra.mxu0 0.0
        %3186 = vmatprep.subr.mxu0 0.0
        %3187 = vmatpush2.msra.mxu0 0.0
        %3188 = vmatprep.subr.mxu0 0.0
        %3189 = vmatpush2.msra.mxu0 0.0
        %3190 = vmatprep.subr.mxu0 0.0
        %3191 = vmatpush2.msra.mxu0 0.0
        %3192 = vmatprep.subr.mxu0 0.0
        %3193 = vmatpush2.msra.mxu0 0.0
        %3194 = vmatprep.subr.mxu0 0.0
        %3195 = vmatpush2.msra.mxu0 0.0
        %3196 = vmatprep.subr.mxu0 0.0
        %3197 = vmatpush2.msra.mxu0 0.0
        %3198 = vmatprep.subr.mxu0 0.0
        %3199 = vmatpush2.msra.mxu0 0.0
        %3200 = vmatprep.subr.mxu0 0.0
        %3201 = vmatpush2.msra.mxu0 0.0
        %3202 = vmatprep.mubr.f32.mxu0 0.0
        %3203 = vmatmul.mubr.f32.gmra.mxu0 %v978
        %v3204 = vpop.f32.mrf.mxu0
        %v3205 = vadd.f32 0.0, %v3204
        %v3206 = vpop.f32.mrf.mxu0
        %3207 = vmatprep.mubr.f32.mxu0 0.0
        %3208 = vmatmul.mubr.f32.gmra.mxu0 %v979
        %v3209 = vpop.f32.mrf.mxu0
        %v3210 = vadd.f32 0.0, %v3209
        %v3211 = vpop.f32.mrf.mxu0
        %3212 = vmatprep.mubr.f32.mxu0 0.0
        %3213 = vmatmul.mubr.f32.gmra.mxu0 %v980
        %v3214 = vpop.f32.mrf.mxu0
        %v3215 = vadd.f32 0.0, %v3214
        %v3216 = vpop.f32.mrf.mxu0
        %3217 = vmatprep.mubr.f32.mxu0 0.0
        %3218 = vmatmul.mubr.f32.gmra.mxu0 %v981
        %v3219 = vpop.f32.mrf.mxu0
        %v3220 = vadd.f32 0.0, %v3219
        %v3221 = vpop.f32.mrf.mxu0
        %3222 = vmatprep.mubr.f32.mxu0 0.0
        %3223 = vmatmul.mubr.f32.gmra.mxu0 %v982
        %v3224 = vpop.f32.mrf.mxu0
        %v3225 = vadd.f32 0.0, %v3224
        %v3226 = vpop.f32.mrf.mxu0
        %3227 = vmatprep.mubr.f32.mxu0 0.0
        %3228 = vmatmul.mubr.f32.gmra.mxu0 %v983
        %v3229 = vpop.f32.mrf.mxu0
        %v3230 = vadd.f32 0.0, %v3229
        %v3231 = vpop.f32.mrf.mxu0
        %3232 = vmatprep.mubr.f32.mxu0 0.0
        %3233 = vmatmul.mubr.f32.gmra.mxu0 %v984
        %v3234 = vpop.f32.mrf.mxu0
        %v3235 = vadd.f32 0.0, %v3234
        %v3236 = vpop.f32.mrf.mxu0
        %3237 = vmatprep.mubr.f32.mxu0 0.0
        %3238 = vmatmul.mubr.f32.gmra.mxu0 %v985
        %v3239 = vpop.f32.mrf.mxu0
        %v3240 = vadd.f32 0.0, %v3239
        %v3241 = vpop.f32.mrf.mxu0
        %3242 = vmatprep.mubr.f32.mxu0 0.0
        %3243 = vmatmul.mubr.f32.gmra.mxu0 %v986
        %v3244 = vpop.f32.mrf.mxu0
        %v3245 = vadd.f32 0.0, %v3244
        %v3246 = vpop.f32.mrf.mxu0
        %3247 = vmatprep.mubr.f32.mxu0 0.0
        %3248 = vmatmul.mubr.f32.gmra.mxu0 %v987
        %v3249 = vpop.f32.mrf.mxu0
        %v3250 = vadd.f32 0.0, %v3249
        %v3251 = vpop.f32.mrf.mxu0
        %3252 = vmatprep.mubr.f32.mxu0 0.0
        %3253 = vmatmul.mubr.f32.gmra.mxu0 %v988
        %v3254 = vpop.f32.mrf.mxu0
        %v3255 = vadd.f32 0.0, %v3254
        %v3256 = vpop.f32.mrf.mxu0
        %3257 = vmatprep.mubr.f32.mxu0 0.0
        %3258 = vmatmul.mubr.f32.gmra.mxu0 %v989
        %v3259 = vpop.f32.mrf.mxu0
        %v3260 = vadd.f32 0.0, %v3259
        %v3261 = vpop.f32.mrf.mxu0
        %3262 = vmatprep.mubr.f32.mxu0 0.0
        %3263 = vmatmul.mubr.f32.gmra.mxu0 %v990
        %v3264 = vpop.f32.mrf.mxu0
        %v3265 = vadd.f32 0.0, %v3264
        %v3266 = vpop.f32.mrf.mxu0
        %3267 = vmatprep.mubr.f32.mxu0 0.0
        %3268 = vmatmul.mubr.f32.gmra.mxu0 %v991
        %v3269 = vpop.f32.mrf.mxu0
        %v3270 = vadd.f32 0.0, %v3269
        %v3271 = vpop.f32.mrf.mxu0
        %3272 = vmatprep.mubr.f32.mxu0 0.0
        %3273 = vmatmul.mubr.f32.gmra.mxu0 %v992
        %v3274 = vpop.f32.mrf.mxu0
        %v3275 = vadd.f32 0.0, %v3274
        %v3276 = vpop.f32.mrf.mxu0
        %3277 = vmatprep.mubr.f32.mxu0 0.0
        %3278 = vmatmul.mubr.f32.gmra.mxu0 %v993
        %v3279 = vpop.f32.mrf.mxu0
        %v3280 = vadd.f32 0.0, %v3279
        %v3281 = vpop.f32.mrf.mxu0
        %3282 = vdwg.mxu0
        %v3283 = vmul.f32 %v3205, %v3205
        %v3284 = vmul.f32 %v3210, %v3210
        %v3285 = vmul.f32 %v3215, %v3215
        %v3286 = vmul.f32 %v3220, %v3220
        %v3287 = vmul.f32 %v3225, %v3225
        %v3288 = vmul.f32 %v3230, %v3230
        %v3289 = vmul.f32 %v3235, %v3235
        %v3290 = vmul.f32 %v3240, %v3240
        %v3291 = vmul.f32 %v3245, %v3245
        %v3292 = vmul.f32 %v3250, %v3250
        %v3293 = vmul.f32 %v3255, %v3255
        %v3294 = vmul.f32 %v3260, %v3260
        %v3295 = vmul.f32 %v3265, %v3265
        %v3296 = vmul.f32 %v3270, %v3270
        %v3297 = vmul.f32 %v3275, %v3275
        %v3298 = vmul.f32 %v3280, %v3280
        %v3299 = vsel %vm2358, %v3283, 0.0
        %3300 = vadd.xlane.f32.xlu0 %v3299
        %v3301 = vpop.xlane.xlu0 %3300
        %v3302 = vsel %vm2358, %v3284, 0.0
        %3303 = vadd.xlane.f32.xlu0 %v3302
        %v3304 = vpop.xlane.xlu0 %3303
        %v3305 = vsel %vm2358, %v3285, 0.0
        %3306 = vadd.xlane.f32.xlu0 %v3305
        %v3307 = vpop.xlane.xlu0 %3306
        %v3308 = vsel %vm2358, %v3286, 0.0
        %3309 = vadd.xlane.f32.xlu0 %v3308
        %v3310 = vpop.xlane.xlu0 %3309
        %v3311 = vsel %vm2358, %v3287, 0.0
        %3312 = vadd.xlane.f32.xlu0 %v3311
        %v3313 = vpop.xlane.xlu0 %3312
        %v3314 = vsel %vm2358, %v3288, 0.0
        %3315 = vadd.xlane.f32.xlu0 %v3314
        %v3316 = vpop.xlane.xlu0 %3315
        %v3317 = vsel %vm2358, %v3289, 0.0
        %3318 = vadd.xlane.f32.xlu0 %v3317
        %v3319 = vpop.xlane.xlu0 %3318
        %v3320 = vsel %vm2358, %v3290, 0.0
        %3321 = vadd.xlane.f32.xlu0 %v3320
        %v3322 = vpop.xlane.xlu0 %3321
        %v3323 = vsel %vm2358, %v3291, 0.0
        %3324 = vadd.xlane.f32.xlu0 %v3323
        %v3325 = vpop.xlane.xlu0 %3324
        %v3326 = vsel %vm2358, %v3292, 0.0
        %3327 = vadd.xlane.f32.xlu0 %v3326
        %v3328 = vpop.xlane.xlu0 %3327
        %v3329 = vsel %vm2358, %v3293, 0.0
        %3330 = vadd.xlane.f32.xlu0 %v3329
        %v3331 = vpop.xlane.xlu0 %3330
        %v3332 = vsel %vm2358, %v3294, 0.0
        %3333 = vadd.xlane.f32.xlu0 %v3332
        %v3334 = vpop.xlane.xlu0 %3333
        %v3335 = vsel %vm2358, %v3295, 0.0
        %3336 = vadd.xlane.f32.xlu0 %v3335
        %v3337 = vpop.xlane.xlu0 %3336
        %v3338 = vsel %vm2358, %v3296, 0.0
        %3339 = vadd.xlane.f32.xlu0 %v3338
        %v3340 = vpop.xlane.xlu0 %3339
        %v3341 = vsel %vm2358, %v3297, 0.0
        %3342 = vadd.xlane.f32.xlu0 %v3341
        %v3343 = vpop.xlane.xlu0 %3342
        %v3344 = vsel %vm2358, %v3298, 0.0
        %3345 = vadd.xlane.f32.xlu0 %v3344
        %v3346 = vpop.xlane.xlu0 %3345
        %3347 = vmatprep.subr.mxu0 0.0
        %3348 = vmatpush1.msra.mxu0 %v2582
        %3349 = vmatprep.subr.mxu0 0.0
        %3350 = vmatpush1.msra.mxu0 %v2581
        %3351 = vmatprep.subr.mxu0 0.0
        %3352 = vmatpush1.msra.mxu0 %v2580
        %3353 = vmatprep.subr.mxu0 0.0
        %3354 = vmatpush1.msra.mxu0 %v2579
        %3355 = vmatprep.subr.mxu0 0.0
        %3356 = vmatpush1.msra.mxu0 %v2578
        %3357 = vmatprep.subr.mxu0 0.0
        %3358 = vmatpush1.msra.mxu0 %v2577
        %3359 = vmatprep.subr.mxu0 0.0
        %3360 = vmatpush1.msra.mxu0 %v2576
        %3361 = vmatprep.subr.mxu0 0.0
        %3362 = vmatpush1.msra.mxu0 %v2575
        %3363 = vmatprep.subr.mxu0 0.0
        %3364 = vmatpush1.msra.mxu0 %v2574
        %3365 = vmatprep.subr.mxu0 0.0
        %3366 = vmatpush1.msra.mxu0 %v2573
        %3367 = vmatprep.subr.mxu0 0.0
        %3368 = vmatpush1.msra.mxu0 %v2572
        %3369 = vmatprep.subr.mxu0 0.0
        %3370 = vmatpush1.msra.mxu0 %v2571
        %3371 = vmatprep.subr.mxu0 0.0
        %3372 = vmatpush1.msra.mxu0 %v2570
        %3373 = vmatprep.subr.mxu0 0.0
        %3374 = vmatpush1.msra.mxu0 %v2569
        %3375 = vmatprep.subr.mxu0 0.0
        %3376 = vmatpush1.msra.mxu0 %v2568
        %3377 = vmatprep.subr.mxu0 0.0
        %3378 = vmatpush1.msra.mxu0 %v2567
        %3379 = vmatprep.subr.mxu0 0.0
        %3380 = vmatpush2.msra.mxu0 0.0
        %3381 = vmatprep.subr.mxu0 0.0
        %3382 = vmatpush2.msra.mxu0 0.0
        %3383 = vmatprep.subr.mxu0 0.0
        %3384 = vmatpush2.msra.mxu0 0.0
        %3385 = vmatprep.subr.mxu0 0.0
        %3386 = vmatpush2.msra.mxu0 0.0
        %3387 = vmatprep.subr.mxu0 0.0
        %3388 = vmatpush2.msra.mxu0 0.0
        %3389 = vmatprep.subr.mxu0 0.0
        %3390 = vmatpush2.msra.mxu0 0.0
        %3391 = vmatprep.subr.mxu0 0.0
        %3392 = vmatpush2.msra.mxu0 0.0
        %3393 = vmatprep.subr.mxu0 0.0
        %3394 = vmatpush2.msra.mxu0 0.0
        %3395 = vmatprep.subr.mxu0 0.0
        %3396 = vmatpush2.msra.mxu0 0.0
        %3397 = vmatprep.subr.mxu0 0.0
        %3398 = vmatpush2.msra.mxu0 0.0
        %3399 = vmatprep.subr.mxu0 0.0
        %3400 = vmatpush2.msra.mxu0 0.0
        %3401 = vmatprep.subr.mxu0 0.0
        %3402 = vmatpush2.msra.mxu0 0.0
        %3403 = vmatprep.subr.mxu0 0.0
        %3404 = vmatpush2.msra.mxu0 0.0
        %3405 = vmatprep.subr.mxu0 0.0
        %3406 = vmatpush2.msra.mxu0 0.0
        %3407 = vmatprep.subr.mxu0 0.0
        %3408 = vmatpush2.msra.mxu0 0.0
        %3409 = vmatprep.subr.mxu0 0.0
        %3410 = vmatpush2.msra.mxu0 0.0
        %3411 = vmatprep.mubr.f32.mxu0 0.0
        %3412 = vmatmul.mubr.f32.gmra.mxu0 %v1204
        %v3413 = vpop.f32.mrf.mxu0
        %v3414 = vadd.f32 0.0, %v3413
        %v3415 = vpop.f32.mrf.mxu0
        %3416 = vmatprep.mubr.f32.mxu0 0.0
        %3417 = vmatmul.mubr.f32.gmra.mxu0 %v1205
        %v3418 = vpop.f32.mrf.mxu0
        %v3419 = vadd.f32 0.0, %v3418
        %v3420 = vpop.f32.mrf.mxu0
        %3421 = vmatprep.mubr.f32.mxu0 0.0
        %3422 = vmatmul.mubr.f32.gmra.mxu0 %v1206
        %v3423 = vpop.f32.mrf.mxu0
        %v3424 = vadd.f32 0.0, %v3423
        %v3425 = vpop.f32.mrf.mxu0
        %3426 = vmatprep.mubr.f32.mxu0 0.0
        %3427 = vmatmul.mubr.f32.gmra.mxu0 %v1207
        %v3428 = vpop.f32.mrf.mxu0
        %v3429 = vadd.f32 0.0, %v3428
        %v3430 = vpop.f32.mrf.mxu0
        %3431 = vmatprep.mubr.f32.mxu0 0.0
        %3432 = vmatmul.mubr.f32.gmra.mxu0 %v1208
        %v3433 = vpop.f32.mrf.mxu0
        %v3434 = vadd.f32 0.0, %v3433
        %v3435 = vpop.f32.mrf.mxu0
        %3436 = vmatprep.mubr.f32.mxu0 0.0
        %3437 = vmatmul.mubr.f32.gmra.mxu0 %v1209
        %v3438 = vpop.f32.mrf.mxu0
        %v3439 = vadd.f32 0.0, %v3438
        %v3440 = vpop.f32.mrf.mxu0
        %3441 = vmatprep.mubr.f32.mxu0 0.0
        %3442 = vmatmul.mubr.f32.gmra.mxu0 %v1210
        %v3443 = vpop.f32.mrf.mxu0
        %v3444 = vadd.f32 0.0, %v3443
        %v3445 = vpop.f32.mrf.mxu0
        %3446 = vmatprep.mubr.f32.mxu0 0.0
        %3447 = vmatmul.mubr.f32.gmra.mxu0 %v1211
        %v3448 = vpop.f32.mrf.mxu0
        %v3449 = vadd.f32 0.0, %v3448
        %v3450 = vpop.f32.mrf.mxu0
        %3451 = vmatprep.mubr.f32.mxu0 0.0
        %3452 = vmatmul.mubr.f32.gmra.mxu0 %v1212
        %v3453 = vpop.f32.mrf.mxu0
        %v3454 = vadd.f32 0.0, %v3453
        %v3455 = vpop.f32.mrf.mxu0
        %3456 = vmatprep.mubr.f32.mxu0 0.0
        %3457 = vmatmul.mubr.f32.gmra.mxu0 %v1213
        %v3458 = vpop.f32.mrf.mxu0
        %v3459 = vadd.f32 0.0, %v3458
        %v3460 = vpop.f32.mrf.mxu0
        %3461 = vmatprep.mubr.f32.mxu0 0.0
        %3462 = vmatmul.mubr.f32.gmra.mxu0 %v1214
        %v3463 = vpop.f32.mrf.mxu0
        %v3464 = vadd.f32 0.0, %v3463
        %v3465 = vpop.f32.mrf.mxu0
        %3466 = vmatprep.mubr.f32.mxu0 0.0
        %3467 = vmatmul.mubr.f32.gmra.mxu0 %v1215
        %v3468 = vpop.f32.mrf.mxu0
        %v3469 = vadd.f32 0.0, %v3468
        %v3470 = vpop.f32.mrf.mxu0
        %3471 = vmatprep.mubr.f32.mxu0 0.0
        %3472 = vmatmul.mubr.f32.gmra.mxu0 %v1216
        %v3473 = vpop.f32.mrf.mxu0
        %v3474 = vadd.f32 0.0, %v3473
        %v3475 = vpop.f32.mrf.mxu0
        %3476 = vmatprep.mubr.f32.mxu0 0.0
        %3477 = vmatmul.mubr.f32.gmra.mxu0 %v1217
        %v3478 = vpop.f32.mrf.mxu0
        %v3479 = vadd.f32 0.0, %v3478
        %v3480 = vpop.f32.mrf.mxu0
        %3481 = vmatprep.mubr.f32.mxu0 0.0
        %3482 = vmatmul.mubr.f32.gmra.mxu0 %v1218
        %v3483 = vpop.f32.mrf.mxu0
        %v3484 = vadd.f32 0.0, %v3483
        %v3485 = vpop.f32.mrf.mxu0
        %3486 = vmatprep.mubr.f32.mxu0 0.0
        %3487 = vmatmul.mubr.f32.gmra.mxu0 %v1219
        %v3488 = vpop.f32.mrf.mxu0
        %v3489 = vadd.f32 0.0, %v3488
        %v3490 = vpop.f32.mrf.mxu0
        %3491 = vdwg.mxu0
        %v3492 = vmul.f32 %v3414, %v3414
        %v3493 = vmul.f32 %v3419, %v3419
        %v3494 = vmul.f32 %v3424, %v3424
        %v3495 = vmul.f32 %v3429, %v3429
        %v3496 = vmul.f32 %v3434, %v3434
        %v3497 = vmul.f32 %v3439, %v3439
        %v3498 = vmul.f32 %v3444, %v3444
        %v3499 = vmul.f32 %v3449, %v3449
        %v3500 = vmul.f32 %v3454, %v3454
        %v3501 = vmul.f32 %v3459, %v3459
        %v3502 = vmul.f32 %v3464, %v3464
        %v3503 = vmul.f32 %v3469, %v3469
        %v3504 = vmul.f32 %v3474, %v3474
        %v3505 = vmul.f32 %v3479, %v3479
        %v3506 = vmul.f32 %v3484, %v3484
        %v3507 = vmul.f32 %v3489, %v3489
        %v3508 = vsel %vm2358, %v3492, 0.0
        %3509 = vadd.xlane.f32.xlu0 %v3508
        %v3510 = vpop.xlane.xlu0 %3509
        %v3511 = vsel %vm2358, %v3493, 0.0
        %3512 = vadd.xlane.f32.xlu0 %v3511
        %v3513 = vpop.xlane.xlu0 %3512
        %v3514 = vsel %vm2358, %v3494, 0.0
        %3515 = vadd.xlane.f32.xlu0 %v3514
        %v3516 = vpop.xlane.xlu0 %3515
        %v3517 = vsel %vm2358, %v3495, 0.0
        %3518 = vadd.xlane.f32.xlu0 %v3517
        %v3519 = vpop.xlane.xlu0 %3518
        %v3520 = vsel %vm2358, %v3496, 0.0
        %3521 = vadd.xlane.f32.xlu0 %v3520
        %v3522 = vpop.xlane.xlu0 %3521
        %v3523 = vsel %vm2358, %v3497, 0.0
        %3524 = vadd.xlane.f32.xlu0 %v3523
        %v3525 = vpop.xlane.xlu0 %3524
        %v3526 = vsel %vm2358, %v3498, 0.0
        %3527 = vadd.xlane.f32.xlu0 %v3526
        %v3528 = vpop.xlane.xlu0 %3527
        %v3529 = vsel %vm2358, %v3499, 0.0
        %3530 = vadd.xlane.f32.xlu0 %v3529
        %v3531 = vpop.xlane.xlu0 %3530
        %v3532 = vsel %vm2358, %v3500, 0.0
        %3533 = vadd.xlane.f32.xlu0 %v3532
        %v3534 = vpop.xlane.xlu0 %3533
        %v3535 = vsel %vm2358, %v3501, 0.0
        %3536 = vadd.xlane.f32.xlu0 %v3535
        %v3537 = vpop.xlane.xlu0 %3536
        %v3538 = vsel %vm2358, %v3502, 0.0
        %3539 = vadd.xlane.f32.xlu0 %v3538
        %v3540 = vpop.xlane.xlu0 %3539
        %v3541 = vsel %vm2358, %v3503, 0.0
        %3542 = vadd.xlane.f32.xlu0 %v3541
        %v3543 = vpop.xlane.xlu0 %3542
        %v3544 = vsel %vm2358, %v3504, 0.0
        %3545 = vadd.xlane.f32.xlu0 %v3544
        %v3546 = vpop.xlane.xlu0 %3545
        %v3547 = vsel %vm2358, %v3505, 0.0
        %3548 = vadd.xlane.f32.xlu0 %v3547
        %v3549 = vpop.xlane.xlu0 %3548
        %v3550 = vsel %vm2358, %v3506, 0.0
        %3551 = vadd.xlane.f32.xlu0 %v3550
        %v3552 = vpop.xlane.xlu0 %3551
        %v3553 = vsel %vm2358, %v3507, 0.0
        %3554 = vadd.xlane.f32.xlu0 %v3553
        %v3555 = vpop.xlane.xlu0 %3554
        %v3556 = vmul.f32 %v2883, %v3092
        %v3557 = vmul.f32 %v2886, %v3095
        %v3558 = vmul.f32 %v2889, %v3098
        %v3559 = vmul.f32 %v2892, %v3101
        %v3560 = vmul.f32 %v2895, %v3104
        %v3561 = vmul.f32 %v2898, %v3107
        %v3562 = vmul.f32 %v2901, %v3110
        %v3563 = vmul.f32 %v2904, %v3113
        %v3564 = vmul.f32 %v2907, %v3116
        %v3565 = vmul.f32 %v2910, %v3119
        %v3566 = vmul.f32 %v2913, %v3122
        %v3567 = vmul.f32 %v2916, %v3125
        %v3568 = vmul.f32 %v2919, %v3128
        %v3569 = vmul.f32 %v2922, %v3131
        %v3570 = vmul.f32 %v2925, %v3134
        %v3571 = vmul.f32 %v2928, %v3137
        %v3572 = vmul.f32 %v3301, %v3510
        %v3573 = vmul.f32 %v3304, %v3513
        %v3574 = vmul.f32 %v3307, %v3516
        %v3575 = vmul.f32 %v3310, %v3519
        %v3576 = vmul.f32 %v3313, %v3522
        %v3577 = vmul.f32 %v3316, %v3525
        %v3578 = vmul.f32 %v3319, %v3528
        %v3579 = vmul.f32 %v3322, %v3531
        %v3580 = vmul.f32 %v3325, %v3534
        %v3581 = vmul.f32 %v3328, %v3537
        %v3582 = vmul.f32 %v3331, %v3540
        %v3583 = vmul.f32 %v3334, %v3543
        %v3584 = vmul.f32 %v3337, %v3546
        %v3585 = vmul.f32 %v3340, %v3549
        %v3586 = vmul.f32 %v3343, %v3552
        %v3587 = vmul.f32 %v3346, %v3555
        %v3588 = vadd.f32 %v3572, 1e-15
        %v3589 = vadd.f32 %v3573, 1e-15
        %v3590 = vadd.f32 %v3574, 1e-15
        %v3591 = vadd.f32 %v3575, 1e-15
        %v3592 = vadd.f32 %v3576, 1e-15
        %v3593 = vadd.f32 %v3577, 1e-15
        %v3594 = vadd.f32 %v3578, 1e-15
        %v3595 = vadd.f32 %v3579, 1e-15
        %v3596 = vadd.f32 %v3580, 1e-15
        %v3597 = vadd.f32 %v3581, 1e-15
        %v3598 = vadd.f32 %v3582, 1e-15
        %v3599 = vadd.f32 %v3583, 1e-15
        %v3600 = vadd.f32 %v3584, 1e-15
        %v3601 = vadd.f32 %v3585, 1e-15
        %v3602 = vadd.f32 %v3586, 1e-15
        %v3603 = vadd.f32 %v3587, 1e-15
        %v3604 = vrcp.pop %v3588
        %v3605 = vmul.f32 %v3556, %v3604
        %v3606 = vrcp.pop %v3589
        %v3607 = vmul.f32 %v3557, %v3606
        %v3608 = vrcp.pop %v3590
        %v3609 = vmul.f32 %v3558, %v3608
        %v3610 = vrcp.pop %v3591
        %v3611 = vmul.f32 %v3559, %v3610
        %v3612 = vrcp.pop %v3592
        %v3613 = vmul.f32 %v3560, %v3612
        %v3614 = vrcp.pop %v3593
        %v3615 = vmul.f32 %v3561, %v3614
        %v3616 = vrcp.pop %v3594
        %v3617 = vmul.f32 %v3562, %v3616
        %v3618 = vrcp.pop %v3595
        %v3619 = vmul.f32 %v3563, %v3618
        %v3620 = vrcp.pop %v3596
        %v3621 = vmul.f32 %v3564, %v3620
        %v3622 = vrcp.pop %v3597
        %v3623 = vmul.f32 %v3565, %v3622
        %v3624 = vrcp.pop %v3598
        %v3625 = vmul.f32 %v3566, %v3624
        %v3626 = vrcp.pop %v3599
        %v3627 = vmul.f32 %v3567, %v3626
        %v3628 = vrcp.pop %v3600
        %v3629 = vmul.f32 %v3568, %v3628
        %v3630 = vrcp.pop %v3601
        %v3631 = vmul.f32 %v3569, %v3630
        %v3632 = vrcp.pop %v3602
        %v3633 = vmul.f32 %v3570, %v3632
        %v3634 = vrcp.pop %v3603
        %v3635 = vmul.f32 %v3571, %v3634
        %vm3636 = vcmp.ne.f32.partialorder %v3605, %v3605
        %vm3637 = vcmp.ne.f32.partialorder %v3607, %v3607
        %vm3638 = vcmp.ne.f32.partialorder %v3609, %v3609
        %vm3639 = vcmp.ne.f32.partialorder %v3611, %v3611
        %vm3640 = vcmp.ne.f32.partialorder %v3613, %v3613
        %vm3641 = vcmp.ne.f32.partialorder %v3615, %v3615
        %vm3642 = vcmp.ne.f32.partialorder %v3617, %v3617
        %vm3643 = vcmp.ne.f32.partialorder %v3619, %v3619
        %vm3644 = vcmp.ne.f32.partialorder %v3621, %v3621
        %vm3645 = vcmp.ne.f32.partialorder %v3623, %v3623
        %vm3646 = vcmp.ne.f32.partialorder %v3625, %v3625
        %vm3647 = vcmp.ne.f32.partialorder %v3627, %v3627
        %vm3648 = vcmp.ne.f32.partialorder %v3629, %v3629
        %vm3649 = vcmp.ne.f32.partialorder %v3631, %v3631
        %vm3650 = vcmp.ne.f32.partialorder %v3633, %v3633
        %vm3651 = vcmp.ne.f32.partialorder %v3635, %v3635
        %vm3652 = vmxor %vm3636, 1
        %vm3653 = vmxor %vm3637, 1
        %vm3654 = vmxor %vm3638, 1
        %vm3655 = vmxor %vm3639, 1
        %vm3656 = vmxor %vm3640, 1
        %vm3657 = vmxor %vm3641, 1
        %vm3658 = vmxor %vm3642, 1
        %vm3659 = vmxor %vm3643, 1
        %vm3660 = vmxor %vm3644, 1
        %vm3661 = vmxor %vm3645, 1
        %vm3662 = vmxor %vm3646, 1
        %vm3663 = vmxor %vm3647, 1
        %vm3664 = vmxor %vm3648, 1
        %vm3665 = vmxor %vm3649, 1
        %vm3666 = vmxor %vm3650, 1
        %vm3667 = vmxor %vm3651, 1
        %vm3668 = vcmp.ne.f32.partialorder %v1478, %v1478
        %vm3669 = vcmp.ne.f32.partialorder %v1480, %v1480
        %vm3670 = vcmp.ne.f32.partialorder %v1482, %v1482
        %vm3671 = vcmp.ne.f32.partialorder %v1484, %v1484
        %vm3672 = vcmp.ne.f32.partialorder %v1486, %v1486
        %vm3673 = vcmp.ne.f32.partialorder %v1488, %v1488
        %vm3674 = vcmp.ne.f32.partialorder %v1490, %v1490
        %vm3675 = vcmp.ne.f32.partialorder %v1492, %v1492
        %vm3676 = vcmp.ne.f32.partialorder %v1494, %v1494
        %vm3677 = vcmp.ne.f32.partialorder %v1496, %v1496
        %vm3678 = vcmp.ne.f32.partialorder %v1498, %v1498
        %vm3679 = vcmp.ne.f32.partialorder %v1500, %v1500
        %vm3680 = vcmp.ne.f32.partialorder %v1502, %v1502
        %vm3681 = vcmp.ne.f32.partialorder %v1504, %v1504
        %vm3682 = vcmp.ne.f32.partialorder %v1506, %v1506
        %vm3683 = vcmp.ne.f32.partialorder %v1508, %v1508
        %vm3684 = vmxor %vm3668, 1
        %vm3685 = vmxor %vm3669, 1
        %vm3686 = vmxor %vm3670, 1
        %vm3687 = vmxor %vm3671, 1
        %vm3688 = vmxor %vm3672, 1
        %vm3689 = vmxor %vm3673, 1
        %vm3690 = vmxor %vm3674, 1
        %vm3691 = vmxor %vm3675, 1
        %vm3692 = vmxor %vm3676, 1
        %vm3693 = vmxor %vm3677, 1
        %vm3694 = vmxor %vm3678, 1
        %vm3695 = vmxor %vm3679, 1
        %vm3696 = vmxor %vm3680, 1
        %vm3697 = vmxor %vm3681, 1
        %vm3698 = vmxor %vm3682, 1
        %vm3699 = vmxor %vm3683, 1
        %vm3700 = vmand %vm3652, %vm3684
        %vm3701 = vmand %vm3653, %vm3685
        %vm3702 = vmand %vm3654, %vm3686
        %vm3703 = vmand %vm3655, %vm3687
        %vm3704 = vmand %vm3656, %vm3688
        %vm3705 = vmand %vm3657, %vm3689
        %vm3706 = vmand %vm3658, %vm3690
        %vm3707 = vmand %vm3659, %vm3691
        %vm3708 = vmand %vm3660, %vm3692
        %vm3709 = vmand %vm3661, %vm3693
        %vm3710 = vmand %vm3662, %vm3694
        %vm3711 = vmand %vm3663, %vm3695
        %vm3712 = vmand %vm3664, %vm3696
        %vm3713 = vmand %vm3665, %vm3697
        %vm3714 = vmand %vm3666, %vm3698
        %vm3715 = vmand %vm3667, %vm3699
        %vm3716 = vcmp.ne.f32.partialorder %v3605, 0.0
        %vm3717 = vcmp.ne.f32.partialorder %v3607, 0.0
        %vm3718 = vcmp.ne.f32.partialorder %v3609, 0.0
        %vm3719 = vcmp.ne.f32.partialorder %v3611, 0.0
        %vm3720 = vcmp.ne.f32.partialorder %v3613, 0.0
        %vm3721 = vcmp.ne.f32.partialorder %v3615, 0.0
        %vm3722 = vcmp.ne.f32.partialorder %v3617, 0.0
        %vm3723 = vcmp.ne.f32.partialorder %v3619, 0.0
        %vm3724 = vcmp.ne.f32.partialorder %v3621, 0.0
        %vm3725 = vcmp.ne.f32.partialorder %v3623, 0.0
        %vm3726 = vcmp.ne.f32.partialorder %v3625, 0.0
        %vm3727 = vcmp.ne.f32.partialorder %v3627, 0.0
        %vm3728 = vcmp.ne.f32.partialorder %v3629, 0.0
        %vm3729 = vcmp.ne.f32.partialorder %v3631, 0.0
        %vm3730 = vcmp.ne.f32.partialorder %v3633, 0.0
        %vm3731 = vcmp.ne.f32.partialorder %v3635, 0.0
        %vm3732 = vmand %vm3700, %vm3716
        %vm3733 = vmand %vm3701, %vm3717
        %vm3734 = vmand %vm3702, %vm3718
        %vm3735 = vmand %vm3703, %vm3719
        %vm3736 = vmand %vm3704, %vm3720
        %vm3737 = vmand %vm3705, %vm3721
        %vm3738 = vmand %vm3706, %vm3722
        %vm3739 = vmand %vm3707, %vm3723
        %vm3740 = vmand %vm3708, %vm3724
        %vm3741 = vmand %vm3709, %vm3725
        %vm3742 = vmand %vm3710, %vm3726
        %vm3743 = vmand %vm3711, %vm3727
        %vm3744 = vmand %vm3712, %vm3728
        %vm3745 = vmand %vm3713, %vm3729
        %vm3746 = vmand %vm3714, %vm3730
        %vm3747 = vmand %vm3715, %vm3731
        %v3748 = vsel %vm3732, %v3605, 1.0
        %v3749 = vsel %vm3733, %v3607, 1.0
        %v3750 = vsel %vm3734, %v3609, 1.0
        %v3751 = vsel %vm3735, %v3611, 1.0
        %v3752 = vsel %vm3736, %v3613, 1.0
        %v3753 = vsel %vm3737, %v3615, 1.0
        %v3754 = vsel %vm3738, %v3617, 1.0
        %v3755 = vsel %vm3739, %v3619, 1.0
        %v3756 = vsel %vm3740, %v3621, 1.0
        %v3757 = vsel %vm3741, %v3623, 1.0
        %v3758 = vsel %vm3742, %v3625, 1.0
        %v3759 = vsel %vm3743, %v3627, 1.0
        %v3760 = vsel %vm3744, %v3629, 1.0
        %v3761 = vsel %vm3745, %v3631, 1.0
        %v3762 = vsel %vm3746, %v3633, 1.0
        %v3763 = vsel %vm3747, %v3635, 1.0
        %v3764 = vrcp.pop %v3748
        %v3765 = vmul.f32 %v1478, %v3764
        %v3766 = vrcp.pop %v3749
        %v3767 = vmul.f32 %v1480, %v3766
        %v3768 = vrcp.pop %v3750
        %v3769 = vmul.f32 %v1482, %v3768
        %v3770 = vrcp.pop %v3751
        %v3771 = vmul.f32 %v1484, %v3770
        %v3772 = vrcp.pop %v3752
        %v3773 = vmul.f32 %v1486, %v3772
        %v3774 = vrcp.pop %v3753
        %v3775 = vmul.f32 %v1488, %v3774
        %v3776 = vrcp.pop %v3754
        %v3777 = vmul.f32 %v1490, %v3776
        %v3778 = vrcp.pop %v3755
        %v3779 = vmul.f32 %v1492, %v3778
        %v3780 = vrcp.pop %v3756
        %v3781 = vmul.f32 %v1494, %v3780
        %v3782 = vrcp.pop %v3757
        %v3783 = vmul.f32 %v1496, %v3782
        %v3784 = vrcp.pop %v3758
        %v3785 = vmul.f32 %v1498, %v3784
        %v3786 = vrcp.pop %v3759
        %v3787 = vmul.f32 %v1500, %v3786
        %v3788 = vrcp.pop %v3760
        %v3789 = vmul.f32 %v1502, %v3788
        %v3790 = vrcp.pop %v3761
        %v3791 = vmul.f32 %v1504, %v3790
        %v3792 = vrcp.pop %v3762
        %v3793 = vmul.f32 %v1506, %v3792
        %v3794 = vrcp.pop %v3763
        %v3795 = vmul.f32 %v1508, %v3794
        %v3796 = vrsqrt.pop %v3765
        %v3797 = vrsqrt.pop %v3767
        %v3798 = vrsqrt.pop %v3769
        %v3799 = vrsqrt.pop %v3771
        %v3800 = vrsqrt.pop %v3773
        %v3801 = vrsqrt.pop %v3775
        %v3802 = vrsqrt.pop %v3777
        %v3803 = vrsqrt.pop %v3779
        %v3804 = vrsqrt.pop %v3781
        %v3805 = vrsqrt.pop %v3783
        %v3806 = vrsqrt.pop %v3785
        %v3807 = vrsqrt.pop %v3787
        %v3808 = vrsqrt.pop %v3789
        %v3809 = vrsqrt.pop %v3791
        %v3810 = vrsqrt.pop %v3793
        %v3811 = vrsqrt.pop %v3795
        %v3812 = vrsqrt.pop %v3796
        %v3813 = vrsqrt.pop %v3797
        %v3814 = vrsqrt.pop %v3798
        %v3815 = vrsqrt.pop %v3799
        %v3816 = vrsqrt.pop %v3800
        %v3817 = vrsqrt.pop %v3801
        %v3818 = vrsqrt.pop %v3802
        %v3819 = vrsqrt.pop %v3803
        %v3820 = vrsqrt.pop %v3804
        %v3821 = vrsqrt.pop %v3805
        %v3822 = vrsqrt.pop %v3806
        %v3823 = vrsqrt.pop %v3807
        %v3824 = vrsqrt.pop %v3808
        %v3825 = vrsqrt.pop %v3809
        %v3826 = vrsqrt.pop %v3810
        %v3827 = vrsqrt.pop %v3811
        %v3828 = vsel %vm3732, %v3812, 1.0
        %v3829 = vsel %vm3733, %v3813, 1.0
        %v3830 = vsel %vm3734, %v3814, 1.0
        %v3831 = vsel %vm3735, %v3815, 1.0
        %v3832 = vsel %vm3736, %v3816, 1.0
        %v3833 = vsel %vm3737, %v3817, 1.0
        %v3834 = vsel %vm3738, %v3818, 1.0
        %v3835 = vsel %vm3739, %v3819, 1.0
        %v3836 = vsel %vm3740, %v3820, 1.0
        %v3837 = vsel %vm3741, %v3821, 1.0
        %v3838 = vsel %vm3742, %v3822, 1.0
        %v3839 = vsel %vm3743, %v3823, 1.0
        %v3840 = vsel %vm3744, %v3824, 1.0
        %v3841 = vsel %vm3745, %v3825, 1.0
        %v3842 = vsel %vm3746, %v3826, 1.0
        %v3843 = vsel %vm3747, %v3827, 1.0
        %v3844 = vmul.f32 %v2658, %v3828
        %v3845 = vmul.f32 %v2661, %v3829
        %v3846 = vmul.f32 %v2666, %v3830
        %v3847 = vmul.f32 %v2669, %v3831
        %v3848 = vmul.f32 %v2674, %v3832
        %v3849 = vmul.f32 %v2677, %v3833
        %v3850 = vmul.f32 %v2682, %v3834
        %v3851 = vmul.f32 %v2685, %v3835
        %v3852 = vmul.f32 %v2690, %v3836
        %v3853 = vmul.f32 %v2693, %v3837
        %v3854 = vmul.f32 %v2698, %v3838
        %v3855 = vmul.f32 %v2701, %v3839
        %v3856 = vmul.f32 %v2706, %v3840
        %v3857 = vmul.f32 %v2709, %v3841
        %v3858 = vmul.f32 %v2714, %v3842
        %v3859 = vmul.f32 %v2717, %v3843
        %v3860 = vld [vmem:[%s452] sm:$0xff]
        %v3861 = vld [vmem:[%s452 + $0x8] sm:$0xff]
        %v3862 = vld [vmem:[%s452 + $0x10] sm:$0xff]
        %v3863 = vld [vmem:[%s452 + $0x18] sm:$0xff]
        %v3864 = vld [vmem:[%s452 + $0x20] sm:$0xff]
        %v3865 = vld [vmem:[%s452 + $0x28] sm:$0xff]
        %v3866 = vld [vmem:[%s452 + $0x30] sm:$0xff]
        %v3867 = vld [vmem:[%s452 + $0x38] sm:$0xff]
        %v3868 = vld [vmem:[%s452 + $0x40] sm:$0xff]
        %v3869 = vld [vmem:[%s452 + $0x48] sm:$0xff]
        %v3870 = vld [vmem:[%s452 + $0x50] sm:$0xff]
        %v3871 = vld [vmem:[%s452 + $0x58] sm:$0xff]
        %v3872 = vld [vmem:[%s452 + $0x60] sm:$0xff]
        %v3873 = vld [vmem:[%s452 + $0x68] sm:$0xff]
        %v3874 = vld [vmem:[%s452 + $0x70] sm:$0xff]
        %v3875 = vld [vmem:[%s452 + $0x78] sm:$0xff]
        %v3876 = vadd.f32 %v3844, %v3860
        %v3877 = vadd.f32 %v3845, %v3861
        %v3878 = vadd.f32 %v3846, %v3862
        %v3879 = vadd.f32 %v3847, %v3863
        %v3880 = vadd.f32 %v3848, %v3864
        %v3881 = vadd.f32 %v3849, %v3865
        %v3882 = vadd.f32 %v3850, %v3866
        %v3883 = vadd.f32 %v3851, %v3867
        %v3884 = vadd.f32 %v3852, %v3868
        %v3885 = vadd.f32 %v3853, %v3869
        %v3886 = vadd.f32 %v3854, %v3870
        %v3887 = vadd.f32 %v3855, %v3871
        %v3888 = vadd.f32 %v3856, %v3872
        %v3889 = vadd.f32 %v3857, %v3873
        %v3890 = vadd.f32 %v3858, %v3874
        %v3891 = vadd.f32 %v3859, %v3875
        %v3892 = vpack.c.bf16 %v3877, %v3876
        %v3893 = vpack.c.bf16 %v3879, %v3878
        %v3894 = vpack.c.bf16 %v3881, %v3880
        %v3895 = vpack.c.bf16 %v3883, %v3882
        %v3896 = vpack.c.bf16 %v3885, %v3884
        %v3897 = vpack.c.bf16 %v3887, %v3886
        %v3898 = vpack.c.bf16 %v3889, %v3888
        %v3899 = vpack.c.bf16 %v3891, %v3890
        %3908 = vrot.lane.b32.xlu0 %v3892, 120
        %v3909 = vpop.permute.xlu0 %3908
        %3910 = vrot.lane.b32.xlu0 %v3893, 120
        %v3911 = vpop.permute.xlu0 %3910
        %3912 = vrot.lane.b32.xlu0 %v3894, 120
        %v3913 = vpop.permute.xlu0 %3912
        %3914 = vrot.lane.b32.xlu0 %v3895, 120
        %v3915 = vpop.permute.xlu0 %3914
        %3916 = vrot.lane.b32.xlu0 %v3896, 120
        %v3917 = vpop.permute.xlu0 %3916
        %3918 = vrot.lane.b32.xlu0 %v3897, 120
        %v3919 = vpop.permute.xlu0 %3918
        %3920 = vrot.lane.b32.xlu0 %v3898, 120
        %v3921 = vpop.permute.xlu0 %3920
        %3922 = vrot.lane.b32.xlu0 %v3899, 120
        %v3923 = vpop.permute.xlu0 %3922
        %3932 = vmatprep.subr.bf16.mxu0 0
        %3933 = vmatpush1.bf16.msra.mxu0 %v3923
        %3934 = vmatprep.subr.bf16.mxu0 0
        %3935 = vmatpush1.bf16.msra.mxu0 %v3921
        %3936 = vmatprep.subr.bf16.mxu0 0
        %3937 = vmatpush1.bf16.msra.mxu0 %v3919
        %3938 = vmatprep.subr.bf16.mxu0 0
        %3939 = vmatpush1.bf16.msra.mxu0 %v3917
        %3940 = vmatprep.subr.bf16.mxu0 0
        %3941 = vmatpush1.bf16.msra.mxu0 %v3915
        %3942 = vmatprep.subr.bf16.mxu0 0
        %3943 = vmatpush1.bf16.msra.mxu0 %v3913
        %3944 = vmatprep.subr.bf16.mxu0 0
        %3945 = vmatpush1.bf16.msra.mxu0 %v3911
        %3946 = vmatprep.subr.bf16.mxu0 0
        %3947 = vmatpush1.bf16.msra.mxu0 %v3909
        %3948 = vmatprep.subr.bf16.mxu0 0
        %3949 = vmatpush2.bf16.msra.mxu0 0
        %3950 = vmatprep.subr.bf16.mxu0 0
        %3951 = vmatpush2.bf16.msra.mxu0 0
        %3952 = vmatprep.subr.bf16.mxu0 0
        %3953 = vmatpush2.bf16.msra.mxu0 0
        %3954 = vmatprep.subr.bf16.mxu0 0
        %3955 = vmatpush2.bf16.msra.mxu0 0
        %3956 = vmatprep.subr.bf16.mxu0 0
        %3957 = vmatpush2.bf16.msra.mxu0 0
        %3958 = vmatprep.subr.bf16.mxu0 0
        %3959 = vmatpush2.bf16.msra.mxu0 0
        %3960 = vmatprep.subr.bf16.mxu0 0
        %3961 = vmatpush2.bf16.msra.mxu0 0
        %3962 = vmatprep.subr.bf16.mxu0 0
        %3963 = vmatpush2.bf16.msra.mxu0 0
        %3964 = vmatprep.mubr.bf16.mxu0 0
        %3965 = vmatmul.mubr.bf16.gmra.mxu0 %v1811
        %v3966 = vpop.f32.mrf.mxu0
        %v3967 = vadd.f32 0.0, %v3966
        %v3968 = vpop.f32.mrf.mxu0
        %v3969 = vpop.f32.mrf.mxu0
        %v3970 = vadd.f32 0.0, %v3969
        %v3971 = vpop.f32.mrf.mxu0
        %3972 = vmatprep.mubr.bf16.mxu0 0
        %3973 = vmatmul.mubr.bf16.gmra.mxu0 %v1812
        %v3974 = vpop.f32.mrf.mxu0
        %v3975 = vadd.f32 0.0, %v3974
        %v3976 = vpop.f32.mrf.mxu0
        %v3977 = vpop.f32.mrf.mxu0
        %v3978 = vadd.f32 0.0, %v3977
        %v3979 = vpop.f32.mrf.mxu0
        %3980 = vmatprep.mubr.bf16.mxu0 0
        %3981 = vmatmul.mubr.bf16.gmra.mxu0 %v1813
        %v3982 = vpop.f32.mrf.mxu0
        %v3983 = vadd.f32 0.0, %v3982
        %v3984 = vpop.f32.mrf.mxu0
        %v3985 = vpop.f32.mrf.mxu0
        %v3986 = vadd.f32 0.0, %v3985
        %v3987 = vpop.f32.mrf.mxu0
        %3988 = vmatprep.mubr.bf16.mxu0 0
        %3989 = vmatmul.mubr.bf16.gmra.mxu0 %v1814
        %v3990 = vpop.f32.mrf.mxu0
        %v3991 = vadd.f32 0.0, %v3990
        %v3992 = vpop.f32.mrf.mxu0
        %v3993 = vpop.f32.mrf.mxu0
        %v3994 = vadd.f32 0.0, %v3993
        %v3995 = vpop.f32.mrf.mxu0
        %3996 = vmatprep.mubr.bf16.mxu0 0
        %3997 = vmatmul.mubr.bf16.gmra.mxu0 %v1815
        %v3998 = vpop.f32.mrf.mxu0
        %v3999 = vadd.f32 0.0, %v3998
        %v4000 = vpop.f32.mrf.mxu0
        %v4001 = vpop.f32.mrf.mxu0
        %v4002 = vadd.f32 0.0, %v4001
        %v4003 = vpop.f32.mrf.mxu0
        %4004 = vmatprep.mubr.bf16.mxu0 0
        %4005 = vmatmul.mubr.bf16.gmra.mxu0 %v1816
        %v4006 = vpop.f32.mrf.mxu0
        %v4007 = vadd.f32 0.0, %v4006
        %v4008 = vpop.f32.mrf.mxu0
        %v4009 = vpop.f32.mrf.mxu0
        %v4010 = vadd.f32 0.0, %v4009
        %v4011 = vpop.f32.mrf.mxu0
        %4012 = vmatprep.mubr.bf16.mxu0 0
        %4013 = vmatmul.mubr.bf16.gmra.mxu0 %v1817
        %v4014 = vpop.f32.mrf.mxu0
        %v4015 = vadd.f32 0.0, %v4014
        %v4016 = vpop.f32.mrf.mxu0
        %v4017 = vpop.f32.mrf.mxu0
        %v4018 = vadd.f32 0.0, %v4017
        %v4019 = vpop.f32.mrf.mxu0
        %4020 = vmatprep.mubr.bf16.mxu0 0
        %4021 = vmatmul.mubr.bf16.gmra.mxu0 %v1818
        %v4022 = vpop.f32.mrf.mxu0
        %v4023 = vadd.f32 0.0, %v4022
        %v4024 = vpop.f32.mrf.mxu0
        %v4025 = vpop.f32.mrf.mxu0
        %v4026 = vadd.f32 0.0, %v4025
        %v4027 = vpop.f32.mrf.mxu0
        %4028 = vdwg.mxu0
        %v4029 = vadd.f32 %v3876, %v3967
        %v4030 = vadd.f32 %v3877, %v3970
        %v4031 = vadd.f32 %v3878, %v3975
        %v4032 = vadd.f32 %v3879, %v3978
        %v4033 = vadd.f32 %v3880, %v3983
        %v4034 = vadd.f32 %v3881, %v3986
        %v4035 = vadd.f32 %v3882, %v3991
        %v4036 = vadd.f32 %v3883, %v3994
        %v4037 = vadd.f32 %v3884, %v3999
        %v4038 = vadd.f32 %v3885, %v4002
        %v4039 = vadd.f32 %v3886, %v4007
        %v4040 = vadd.f32 %v3887, %v4010
        %v4041 = vadd.f32 %v3888, %v4015
        %v4042 = vadd.f32 %v3889, %v4018
        %v4043 = vadd.f32 %v3890, %v4023
        %v4044 = vadd.f32 %v3891, %v4026
        %4045 = vrot.lane.b32.xlu0 %v3892, 112
        %v4046 = vpop.permute.xlu0 %4045
        %4047 = vrot.lane.b32.xlu0 %v3893, 112
        %v4048 = vpop.permute.xlu0 %4047
        %4049 = vrot.lane.b32.xlu0 %v3894, 112
        %v4050 = vpop.permute.xlu0 %4049
        %4051 = vrot.lane.b32.xlu0 %v3895, 112
        %v4052 = vpop.permute.xlu0 %4051
        %4053 = vrot.lane.b32.xlu0 %v3896, 112
        %v4054 = vpop.permute.xlu0 %4053
        %4055 = vrot.lane.b32.xlu0 %v3897, 112
        %v4056 = vpop.permute.xlu0 %4055
        %4057 = vrot.lane.b32.xlu0 %v3898, 112
        %v4058 = vpop.permute.xlu0 %4057
        %4059 = vrot.lane.b32.xlu0 %v3899, 112
        %v4060 = vpop.permute.xlu0 %4059
        %4069 = vmatprep.subr.bf16.mxu0 0
        %4070 = vmatpush1.bf16.msra.mxu0 %v4060
        %4071 = vmatprep.subr.bf16.mxu0 0
        %4072 = vmatpush1.bf16.msra.mxu0 %v4058
        %4073 = vmatprep.subr.bf16.mxu0 0
        %4074 = vmatpush1.bf16.msra.mxu0 %v4056
        %4075 = vmatprep.subr.bf16.mxu0 0
        %4076 = vmatpush1.bf16.msra.mxu0 %v4054
        %4077 = vmatprep.subr.bf16.mxu0 0
        %4078 = vmatpush1.bf16.msra.mxu0 %v4052
        %4079 = vmatprep.subr.bf16.mxu0 0
        %4080 = vmatpush1.bf16.msra.mxu0 %v4050
        %4081 = vmatprep.subr.bf16.mxu0 0
        %4082 = vmatpush1.bf16.msra.mxu0 %v4048
        %4083 = vmatprep.subr.bf16.mxu0 0
        %4084 = vmatpush1.bf16.msra.mxu0 %v4046
        %4085 = vmatprep.subr.bf16.mxu0 0
        %4086 = vmatpush2.bf16.msra.mxu0 0
        %4087 = vmatprep.subr.bf16.mxu0 0
        %4088 = vmatpush2.bf16.msra.mxu0 0
        %4089 = vmatprep.subr.bf16.mxu0 0
        %4090 = vmatpush2.bf16.msra.mxu0 0
        %4091 = vmatprep.subr.bf16.mxu0 0
        %4092 = vmatpush2.bf16.msra.mxu0 0
        %4093 = vmatprep.subr.bf16.mxu0 0
        %4094 = vmatpush2.bf16.msra.mxu0 0
        %4095 = vmatprep.subr.bf16.mxu0 0
        %4096 = vmatpush2.bf16.msra.mxu0 0
        %4097 = vmatprep.subr.bf16.mxu0 0
        %4098 = vmatpush2.bf16.msra.mxu0 0
        %4099 = vmatprep.subr.bf16.mxu0 0
        %4100 = vmatpush2.bf16.msra.mxu0 0
        %4101 = vmatprep.mubr.bf16.mxu0 0
        %4102 = vmatmul.mubr.bf16.gmra.mxu0 %v2004
        %v4103 = vpop.f32.mrf.mxu0
        %v4104 = vadd.f32 0.0, %v4103
        %v4105 = vpop.f32.mrf.mxu0
        %v4106 = vpop.f32.mrf.mxu0
        %v4107 = vadd.f32 0.0, %v4106
        %v4108 = vpop.f32.mrf.mxu0
        %4109 = vmatprep.mubr.bf16.mxu0 0
        %4110 = vmatmul.mubr.bf16.gmra.mxu0 %v2005
        %v4111 = vpop.f32.mrf.mxu0
        %v4112 = vadd.f32 0.0, %v4111
        %v4113 = vpop.f32.mrf.mxu0
        %v4114 = vpop.f32.mrf.mxu0
        %v4115 = vadd.f32 0.0, %v4114
        %v4116 = vpop.f32.mrf.mxu0
        %4117 = vmatprep.mubr.bf16.mxu0 0
        %4118 = vmatmul.mubr.bf16.gmra.mxu0 %v2006
        %v4119 = vpop.f32.mrf.mxu0
        %v4120 = vadd.f32 0.0, %v4119
        %v4121 = vpop.f32.mrf.mxu0
        %v4122 = vpop.f32.mrf.mxu0
        %v4123 = vadd.f32 0.0, %v4122
        %v4124 = vpop.f32.mrf.mxu0
        %4125 = vmatprep.mubr.bf16.mxu0 0
        %4126 = vmatmul.mubr.bf16.gmra.mxu0 %v2007
        %v4127 = vpop.f32.mrf.mxu0
        %v4128 = vadd.f32 0.0, %v4127
        %v4129 = vpop.f32.mrf.mxu0
        %v4130 = vpop.f32.mrf.mxu0
        %v4131 = vadd.f32 0.0, %v4130
        %v4132 = vpop.f32.mrf.mxu0
        %4133 = vmatprep.mubr.bf16.mxu0 0
        %4134 = vmatmul.mubr.bf16.gmra.mxu0 %v2008
        %v4135 = vpop.f32.mrf.mxu0
        %v4136 = vadd.f32 0.0, %v4135
        %v4137 = vpop.f32.mrf.mxu0
        %v4138 = vpop.f32.mrf.mxu0
        %v4139 = vadd.f32 0.0, %v4138
        %v4140 = vpop.f32.mrf.mxu0
        %4141 = vmatprep.mubr.bf16.mxu0 0
        %4142 = vmatmul.mubr.bf16.gmra.mxu0 %v2009
        %v4143 = vpop.f32.mrf.mxu0
        %v4144 = vadd.f32 0.0, %v4143
        %v4145 = vpop.f32.mrf.mxu0
        %v4146 = vpop.f32.mrf.mxu0
        %v4147 = vadd.f32 0.0, %v4146
        %v4148 = vpop.f32.mrf.mxu0
        %4149 = vmatprep.mubr.bf16.mxu0 0
        %4150 = vmatmul.mubr.bf16.gmra.mxu0 %v2010
        %v4151 = vpop.f32.mrf.mxu0
        %v4152 = vadd.f32 0.0, %v4151
        %v4153 = vpop.f32.mrf.mxu0
        %v4154 = vpop.f32.mrf.mxu0
        %v4155 = vadd.f32 0.0, %v4154
        %v4156 = vpop.f32.mrf.mxu0
        %4157 = vmatprep.mubr.bf16.mxu0 0
        %4158 = vmatmul.mubr.bf16.gmra.mxu0 %v2011
        %v4159 = vpop.f32.mrf.mxu0
        %v4160 = vadd.f32 0.0, %v4159
        %v4161 = vpop.f32.mrf.mxu0
        %v4162 = vpop.f32.mrf.mxu0
        %v4163 = vadd.f32 0.0, %v4162
        %v4164 = vpop.f32.mrf.mxu0
        %4165 = vdwg.mxu0
        %v4166 = vadd.f32 %v4029, %v4104
        %v4167 = vadd.f32 %v4030, %v4107
        %v4168 = vadd.f32 %v4031, %v4112
        %v4169 = vadd.f32 %v4032, %v4115
        %v4170 = vadd.f32 %v4033, %v4120
        %v4171 = vadd.f32 %v4034, %v4123
        %v4172 = vadd.f32 %v4035, %v4128
        %v4173 = vadd.f32 %v4036, %v4131
        %v4174 = vadd.f32 %v4037, %v4136
        %v4175 = vadd.f32 %v4038, %v4139
        %v4176 = vadd.f32 %v4039, %v4144
        %v4177 = vadd.f32 %v4040, %v4147
        %v4178 = vadd.f32 %v4041, %v4152
        %v4179 = vadd.f32 %v4042, %v4155
        %v4180 = vadd.f32 %v4043, %v4160
        %v4181 = vadd.f32 %v4044, %v4163
        %4182 = vrot.lane.b32.xlu0 %v3892, 104
        %v4183 = vpop.permute.xlu0 %4182
        %4184 = vrot.lane.b32.xlu0 %v3893, 104
        %v4185 = vpop.permute.xlu0 %4184
        %4186 = vrot.lane.b32.xlu0 %v3894, 104
        %v4187 = vpop.permute.xlu0 %4186
        %4188 = vrot.lane.b32.xlu0 %v3895, 104
        %v4189 = vpop.permute.xlu0 %4188
        %4190 = vrot.lane.b32.xlu0 %v3896, 104
        %v4191 = vpop.permute.xlu0 %4190
        %4192 = vrot.lane.b32.xlu0 %v3897, 104
        %v4193 = vpop.permute.xlu0 %4192
        %4194 = vrot.lane.b32.xlu0 %v3898, 104
        %v4195 = vpop.permute.xlu0 %4194
        %4196 = vrot.lane.b32.xlu0 %v3899, 104
        %v4197 = vpop.permute.xlu0 %4196
        %4206 = vmatprep.subr.bf16.mxu0 0
        %4207 = vmatpush1.bf16.msra.mxu0 %v4197
        %4208 = vmatprep.subr.bf16.mxu0 0
        %4209 = vmatpush1.bf16.msra.mxu0 %v4195
        %4210 = vmatprep.subr.bf16.mxu0 0
        %4211 = vmatpush1.bf16.msra.mxu0 %v4193
        %4212 = vmatprep.subr.bf16.mxu0 0
        %4213 = vmatpush1.bf16.msra.mxu0 %v4191
        %4214 = vmatprep.subr.bf16.mxu0 0
        %4215 = vmatpush1.bf16.msra.mxu0 %v4189
        %4216 = vmatprep.subr.bf16.mxu0 0
        %4217 = vmatpush1.bf16.msra.mxu0 %v4187
        %4218 = vmatprep.subr.bf16.mxu0 0
        %4219 = vmatpush1.bf16.msra.mxu0 %v4185
        %4220 = vmatprep.subr.bf16.mxu0 0
        %4221 = vmatpush1.bf16.msra.mxu0 %v4183
        %4222 = vmatprep.subr.bf16.mxu0 0
        %4223 = vmatpush2.bf16.msra.mxu0 0
        %4224 = vmatprep.subr.bf16.mxu0 0
        %4225 = vmatpush2.bf16.msra.mxu0 0
        %4226 = vmatprep.subr.bf16.mxu0 0
        %4227 = vmatpush2.bf16.msra.mxu0 0
        %4228 = vmatprep.subr.bf16.mxu0 0
        %4229 = vmatpush2.bf16.msra.mxu0 0
        %4230 = vmatprep.subr.bf16.mxu0 0
        %4231 = vmatpush2.bf16.msra.mxu0 0
        %4232 = vmatprep.subr.bf16.mxu0 0
        %4233 = vmatpush2.bf16.msra.mxu0 0
        %4234 = vmatprep.subr.bf16.mxu0 0
        %4235 = vmatpush2.bf16.msra.mxu0 0
        %4236 = vmatprep.subr.bf16.mxu0 0
        %4237 = vmatpush2.bf16.msra.mxu0 0
        %4238 = vmatprep.mubr.bf16.mxu0 0
        %4239 = vmatmul.mubr.bf16.gmra.mxu0 %v2189
        %v4240 = vpop.f32.mrf.mxu0
        %v4241 = vadd.f32 0.0, %v4240
        %v4242 = vpop.f32.mrf.mxu0
        %v4243 = vpop.f32.mrf.mxu0
        %v4244 = vadd.f32 0.0, %v4243
        %v4245 = vpop.f32.mrf.mxu0
        %4246 = vmatprep.mubr.bf16.mxu0 0
        %4247 = vmatmul.mubr.bf16.gmra.mxu0 %v2190
        %v4248 = vpop.f32.mrf.mxu0
        %v4249 = vadd.f32 0.0, %v4248
        %v4250 = vpop.f32.mrf.mxu0
        %v4251 = vpop.f32.mrf.mxu0
        %v4252 = vadd.f32 0.0, %v4251
        %v4253 = vpop.f32.mrf.mxu0
        %4254 = vmatprep.mubr.bf16.mxu0 0
        %4255 = vmatmul.mubr.bf16.gmra.mxu0 %v2191
        %v4256 = vpop.f32.mrf.mxu0
        %v4257 = vadd.f32 0.0, %v4256
        %v4258 = vpop.f32.mrf.mxu0
        %v4259 = vpop.f32.mrf.mxu0
        %v4260 = vadd.f32 0.0, %v4259
        %v4261 = vpop.f32.mrf.mxu0
        %4262 = vmatprep.mubr.bf16.mxu0 0
        %4263 = vmatmul.mubr.bf16.gmra.mxu0 %v2192
        %v4264 = vpop.f32.mrf.mxu0
        %v4265 = vadd.f32 0.0, %v4264
        %v4266 = vpop.f32.mrf.mxu0
        %v4267 = vpop.f32.mrf.mxu0
        %v4268 = vadd.f32 0.0, %v4267
        %v4269 = vpop.f32.mrf.mxu0
        %4270 = vmatprep.mubr.bf16.mxu0 0
        %4271 = vmatmul.mubr.bf16.gmra.mxu0 %v2193
        %v4272 = vpop.f32.mrf.mxu0
        %v4273 = vadd.f32 0.0, %v4272
        %v4274 = vpop.f32.mrf.mxu0
        %v4275 = vpop.f32.mrf.mxu0
        %v4276 = vadd.f32 0.0, %v4275
        %v4277 = vpop.f32.mrf.mxu0
        %4278 = vmatprep.mubr.bf16.mxu0 0
        %4279 = vmatmul.mubr.bf16.gmra.mxu0 %v2194
        %v4280 = vpop.f32.mrf.mxu0
        %v4281 = vadd.f32 0.0, %v4280
        %v4282 = vpop.f32.mrf.mxu0
        %v4283 = vpop.f32.mrf.mxu0
        %v4284 = vadd.f32 0.0, %v4283
        %v4285 = vpop.f32.mrf.mxu0
        %4286 = vmatprep.mubr.bf16.mxu0 0
        %4287 = vmatmul.mubr.bf16.gmra.mxu0 %v2195
        %v4288 = vpop.f32.mrf.mxu0
        %v4289 = vadd.f32 0.0, %v4288
        %v4290 = vpop.f32.mrf.mxu0
        %v4291 = vpop.f32.mrf.mxu0
        %v4292 = vadd.f32 0.0, %v4291
        %v4293 = vpop.f32.mrf.mxu0
        %4294 = vmatprep.mubr.bf16.mxu0 0
        %4295 = vmatmul.mubr.bf16.gmra.mxu0 %v2196
        %v4296 = vpop.f32.mrf.mxu0
        %v4297 = vadd.f32 0.0, %v4296
        %v4298 = vpop.f32.mrf.mxu0
        %v4299 = vpop.f32.mrf.mxu0
        %v4300 = vadd.f32 0.0, %v4299
        %v4301 = vpop.f32.mrf.mxu0
        %4302 = vdwg.mxu0
        %v4303 = vadd.f32 %v4166, %v4241
        %v4304 = vadd.f32 %v4167, %v4244
        %v4305 = vadd.f32 %v4168, %v4249
        %v4306 = vadd.f32 %v4169, %v4252
        %v4307 = vadd.f32 %v4170, %v4257
        %v4308 = vadd.f32 %v4171, %v4260
        %v4309 = vadd.f32 %v4172, %v4265
        %v4310 = vadd.f32 %v4173, %v4268
        %v4311 = vadd.f32 %v4174, %v4273
        %v4312 = vadd.f32 %v4175, %v4276
        %v4313 = vadd.f32 %v4176, %v4281
        %v4314 = vadd.f32 %v4177, %v4284
        %v4315 = vadd.f32 %v4178, %v4289
        %v4316 = vadd.f32 %v4179, %v4292
        %v4317 = vadd.f32 %v4180, %v4297
        %v4318 = vadd.f32 %v4181, %v4300
        %v4319 = vmul.f32 %v4303, %v4303
        %v4320 = vmul.f32 %v4304, %v4304
        %v4321 = vmul.f32 %v4305, %v4305
        %v4322 = vmul.f32 %v4306, %v4306
        %v4323 = vmul.f32 %v4307, %v4307
        %v4324 = vmul.f32 %v4308, %v4308
        %v4325 = vmul.f32 %v4309, %v4309
        %v4326 = vmul.f32 %v4310, %v4310
        %v4327 = vmul.f32 %v4311, %v4311
        %v4328 = vmul.f32 %v4312, %v4312
        %v4329 = vmul.f32 %v4313, %v4313
        %v4330 = vmul.f32 %v4314, %v4314
        %v4331 = vmul.f32 %v4315, %v4315
        %v4332 = vmul.f32 %v4316, %v4316
        %v4333 = vmul.f32 %v4317, %v4317
        %v4334 = vmul.f32 %v4318, %v4318
        %v4335 = vsel %vm702, %v4319, 0.0
        %4336 = vadd.xlane.f32.xlu0 %v4335
        %v4337 = vpop.xlane.xlu0 %4336
        %v4338 = vsel %vm702, %v4320, 0.0
        %4339 = vadd.xlane.f32.xlu0 %v4338
        %v4340 = vpop.xlane.xlu0 %4339
        %v4341 = vsel %vm702, %v4321, 0.0
        %4342 = vadd.xlane.f32.xlu0 %v4341
        %v4343 = vpop.xlane.xlu0 %4342
        %v4344 = vsel %vm702, %v4322, 0.0
        %4345 = vadd.xlane.f32.xlu0 %v4344
        %v4346 = vpop.xlane.xlu0 %4345
        %v4347 = vsel %vm702, %v4323, 0.0
        %4348 = vadd.xlane.f32.xlu0 %v4347
        %v4349 = vpop.xlane.xlu0 %4348
        %v4350 = vsel %vm702, %v4324, 0.0
        %4351 = vadd.xlane.f32.xlu0 %v4350
        %v4352 = vpop.xlane.xlu0 %4351
        %v4353 = vsel %vm702, %v4325, 0.0
        %4354 = vadd.xlane.f32.xlu0 %v4353
        %v4355 = vpop.xlane.xlu0 %4354
        %v4356 = vsel %vm702, %v4326, 0.0
        %4357 = vadd.xlane.f32.xlu0 %v4356
        %v4358 = vpop.xlane.xlu0 %4357
        %v4359 = vsel %vm702, %v4327, 0.0
        %4360 = vadd.xlane.f32.xlu0 %v4359
        %v4361 = vpop.xlane.xlu0 %4360
        %v4362 = vsel %vm702, %v4328, 0.0
        %4363 = vadd.xlane.f32.xlu0 %v4362
        %v4364 = vpop.xlane.xlu0 %4363
        %v4365 = vsel %vm702, %v4329, 0.0
        %4366 = vadd.xlane.f32.xlu0 %v4365
        %v4367 = vpop.xlane.xlu0 %4366
        %v4368 = vsel %vm702, %v4330, 0.0
        %4369 = vadd.xlane.f32.xlu0 %v4368
        %v4370 = vpop.xlane.xlu0 %4369
        %v4371 = vsel %vm702, %v4331, 0.0
        %4372 = vadd.xlane.f32.xlu0 %v4371
        %v4373 = vpop.xlane.xlu0 %4372
        %v4374 = vsel %vm702, %v4332, 0.0
        %4375 = vadd.xlane.f32.xlu0 %v4374
        %v4376 = vpop.xlane.xlu0 %4375
        %v4377 = vsel %vm702, %v4333, 0.0
        %4378 = vadd.xlane.f32.xlu0 %v4377
        %v4379 = vpop.xlane.xlu0 %4378
        %v4380 = vsel %vm702, %v4334, 0.0
        %4381 = vadd.xlane.f32.xlu0 %v4380
        %v4382 = vpop.xlane.xlu0 %4381
        %v4383 = vmax.f32 %v4337, 1e-15
        %v4384 = vmax.f32 %v4340, 1e-15
        %v4385 = vmax.f32 %v4343, 1e-15
        %v4386 = vmax.f32 %v4346, 1e-15
        %v4387 = vmax.f32 %v4349, 1e-15
        %v4388 = vmax.f32 %v4352, 1e-15
        %v4389 = vmax.f32 %v4355, 1e-15
        %v4390 = vmax.f32 %v4358, 1e-15
        %v4391 = vmax.f32 %v4361, 1e-15
        %v4392 = vmax.f32 %v4364, 1e-15
        %v4393 = vmax.f32 %v4367, 1e-15
        %v4394 = vmax.f32 %v4370, 1e-15
        %v4395 = vmax.f32 %v4373, 1e-15
        %v4396 = vmax.f32 %v4376, 1e-15
        %v4397 = vmax.f32 %v4379, 1e-15
        %v4398 = vmax.f32 %v4382, 1e-15
        %v4399 = vrsqrt.pop %v4383
        %v4400 = vrsqrt.pop %v4384
        %v4401 = vrsqrt.pop %v4385
        %v4402 = vrsqrt.pop %v4386
        %v4403 = vrsqrt.pop %v4387
        %v4404 = vrsqrt.pop %v4388
        %v4405 = vrsqrt.pop %v4389
        %v4406 = vrsqrt.pop %v4390
        %v4407 = vrsqrt.pop %v4391
        %v4408 = vrsqrt.pop %v4392
        %v4409 = vrsqrt.pop %v4393
        %v4410 = vrsqrt.pop %v4394
        %v4411 = vrsqrt.pop %v4395
        %v4412 = vrsqrt.pop %v4396
        %v4413 = vrsqrt.pop %v4397
        %v4414 = vrsqrt.pop %v4398
        %v4415 = vmul.f32 %v4303, %v4399
        %v4416 = vmul.f32 %v4304, %v4400
        %v4417 = vmul.f32 %v4305, %v4401
        %v4418 = vmul.f32 %v4306, %v4402
        %v4419 = vmul.f32 %v4307, %v4403
        %v4420 = vmul.f32 %v4308, %v4404
        %v4421 = vmul.f32 %v4309, %v4405
        %v4422 = vmul.f32 %v4310, %v4406
        %v4423 = vmul.f32 %v4311, %v4407
        %v4424 = vmul.f32 %v4312, %v4408
        %v4425 = vmul.f32 %v4313, %v4409
        %v4426 = vmul.f32 %v4314, %v4410
        %v4427 = vmul.f32 %v4315, %v4411
        %v4428 = vmul.f32 %v4316, %v4412
        %v4429 = vmul.f32 %v4317, %v4413
        %v4430 = vmul.f32 %v4318, %v4414
        %v4431 = vmul.f32 %v4415, %v4415
        %v4432 = vmul.f32 %v4416, %v4416
        %v4433 = vmul.f32 %v4417, %v4417
        %v4434 = vmul.f32 %v4418, %v4418
        %v4435 = vmul.f32 %v4419, %v4419
        %v4436 = vmul.f32 %v4420, %v4420
        %v4437 = vmul.f32 %v4421, %v4421
        %v4438 = vmul.f32 %v4422, %v4422
        %v4439 = vmul.f32 %v4423, %v4423
        %v4440 = vmul.f32 %v4424, %v4424
        %v4441 = vmul.f32 %v4425, %v4425
        %v4442 = vmul.f32 %v4426, %v4426
        %v4443 = vmul.f32 %v4427, %v4427
        %v4444 = vmul.f32 %v4428, %v4428
        %v4445 = vmul.f32 %v4429, %v4429
        %v4446 = vmul.f32 %v4430, %v4430
        %v4447 = vsel %vm702, %v4431, 0.0
        %4448 = vadd.xlane.f32.xlu0 %v4447
        %v4449 = vpop.xlane.xlu0 %4448
        %v4450 = vsel %vm702, %v4432, 0.0
        %4451 = vadd.xlane.f32.xlu0 %v4450
        %v4452 = vpop.xlane.xlu0 %4451
        %v4453 = vsel %vm702, %v4433, 0.0
        %4454 = vadd.xlane.f32.xlu0 %v4453
        %v4455 = vpop.xlane.xlu0 %4454
        %v4456 = vsel %vm702, %v4434, 0.0
        %4457 = vadd.xlane.f32.xlu0 %v4456
        %v4458 = vpop.xlane.xlu0 %4457
        %v4459 = vsel %vm702, %v4435, 0.0
        %4460 = vadd.xlane.f32.xlu0 %v4459
        %v4461 = vpop.xlane.xlu0 %4460
        %v4462 = vsel %vm702, %v4436, 0.0
        %4463 = vadd.xlane.f32.xlu0 %v4462
        %v4464 = vpop.xlane.xlu0 %4463
        %v4465 = vsel %vm702, %v4437, 0.0
        %4466 = vadd.xlane.f32.xlu0 %v4465
        %v4467 = vpop.xlane.xlu0 %4466
        %v4468 = vsel %vm702, %v4438, 0.0
        %4469 = vadd.xlane.f32.xlu0 %v4468
        %v4470 = vpop.xlane.xlu0 %4469
        %v4471 = vsel %vm702, %v4439, 0.0
        %4472 = vadd.xlane.f32.xlu0 %v4471
        %v4473 = vpop.xlane.xlu0 %4472
        %v4474 = vsel %vm702, %v4440, 0.0
        %4475 = vadd.xlane.f32.xlu0 %v4474
        %v4476 = vpop.xlane.xlu0 %4475
        %v4477 = vsel %vm702, %v4441, 0.0
        %4478 = vadd.xlane.f32.xlu0 %v4477
        %v4479 = vpop.xlane.xlu0 %4478
        %v4480 = vsel %vm702, %v4442, 0.0
        %4481 = vadd.xlane.f32.xlu0 %v4480
        %v4482 = vpop.xlane.xlu0 %4481
        %v4483 = vsel %vm702, %v4443, 0.0
        %4484 = vadd.xlane.f32.xlu0 %v4483
        %v4485 = vpop.xlane.xlu0 %4484
        %v4486 = vsel %vm702, %v4444, 0.0
        %4487 = vadd.xlane.f32.xlu0 %v4486
        %v4488 = vpop.xlane.xlu0 %4487
        %v4489 = vsel %vm702, %v4445, 0.0
        %4490 = vadd.xlane.f32.xlu0 %v4489
        %v4491 = vpop.xlane.xlu0 %4490
        %v4492 = vsel %vm702, %v4446, 0.0
        %4493 = vadd.xlane.f32.xlu0 %v4492
        %v4494 = vpop.xlane.xlu0 %4493
        %v4495 = vmax.f32 %v4449, 1e-15
        %v4496 = vmax.f32 %v4452, 1e-15
        %v4497 = vmax.f32 %v4455, 1e-15
        %v4498 = vmax.f32 %v4458, 1e-15
        %v4499 = vmax.f32 %v4461, 1e-15
        %v4500 = vmax.f32 %v4464, 1e-15
        %v4501 = vmax.f32 %v4467, 1e-15
        %v4502 = vmax.f32 %v4470, 1e-15
        %v4503 = vmax.f32 %v4473, 1e-15
        %v4504 = vmax.f32 %v4476, 1e-15
        %v4505 = vmax.f32 %v4479, 1e-15
        %v4506 = vmax.f32 %v4482, 1e-15
        %v4507 = vmax.f32 %v4485, 1e-15
        %v4508 = vmax.f32 %v4488, 1e-15
        %v4509 = vmax.f32 %v4491, 1e-15
        %v4510 = vmax.f32 %v4494, 1e-15
        %v4511 = vrsqrt.pop %v4495
        %v4512 = vrsqrt.pop %v4496
        %v4513 = vrsqrt.pop %v4497
        %v4514 = vrsqrt.pop %v4498
        %v4515 = vrsqrt.pop %v4499
        %v4516 = vrsqrt.pop %v4500
        %v4517 = vrsqrt.pop %v4501
        %v4518 = vrsqrt.pop %v4502
        %v4519 = vrsqrt.pop %v4503
        %v4520 = vrsqrt.pop %v4504
        %v4521 = vrsqrt.pop %v4505
        %v4522 = vrsqrt.pop %v4506
        %v4523 = vrsqrt.pop %v4507
        %v4524 = vrsqrt.pop %v4508
        %v4525 = vrsqrt.pop %v4509
        %v4526 = vrsqrt.pop %v4510
        %v4527 = vmul.f32 %v4415, %v4511
        %v4528 = vmul.f32 %v4416, %v4512
        %v4529 = vmul.f32 %v4417, %v4513
        %v4530 = vmul.f32 %v4418, %v4514
        %v4531 = vmul.f32 %v4419, %v4515
        %v4532 = vmul.f32 %v4420, %v4516
        %v4533 = vmul.f32 %v4421, %v4517
        %v4534 = vmul.f32 %v4422, %v4518
        %v4535 = vmul.f32 %v4423, %v4519
        %v4536 = vmul.f32 %v4424, %v4520
        %v4537 = vmul.f32 %v4425, %v4521
        %v4538 = vmul.f32 %v4426, %v4522
        %v4539 = vmul.f32 %v4427, %v4523
        %v4540 = vmul.f32 %v4428, %v4524
        %v4541 = vmul.f32 %v4429, %v4525
        %v4542 = vmul.f32 %v4430, %v4526
        %4543 = vst.msk [vmem:[%s458] sm:$0xff] %vm702, %v4527
        %4544 = vst.msk [vmem:[%s458 + $0x8] sm:$0xff] %vm702, %v4528
        %4545 = vst.msk [vmem:[%s458 + $0x10] sm:$0xff] %vm702, %v4529
        %4546 = vst.msk [vmem:[%s458 + $0x18] sm:$0xff] %vm702, %v4530
        %4547 = vst.msk [vmem:[%s458 + $0x20] sm:$0xff] %vm702, %v4531
        %4548 = vst.msk [vmem:[%s458 + $0x28] sm:$0xff] %vm702, %v4532
        %4549 = vst.msk [vmem:[%s458 + $0x30] sm:$0xff] %vm702, %v4533
        %4550 = vst.msk [vmem:[%s458 + $0x38] sm:$0xff] %vm702, %v4534
        %4551 = vst.msk [vmem:[%s458 + $0x40] sm:$0xff] %vm702, %v4535
        %4552 = vst.msk [vmem:[%s458 + $0x48] sm:$0xff] %vm702, %v4536
        %4553 = vst.msk [vmem:[%s458 + $0x50] sm:$0xff] %vm702, %v4537
        %4554 = vst.msk [vmem:[%s458 + $0x58] sm:$0xff] %vm702, %v4538
        %4555 = vst.msk [vmem:[%s458 + $0x60] sm:$0xff] %vm702, %v4539
        %4556 = vst.msk [vmem:[%s458 + $0x68] sm:$0xff] %vm702, %v4540
        %4557 = vst.msk [vmem:[%s458 + $0x70] sm:$0xff] %vm702, %v4541
        %4558 = vst.msk [vmem:[%s458 + $0x78] sm:$0xff] %vm702, %v4542
        %s4559 = smul.u32 16, %s23
        %p4560 = scmp.lt.s32.totalorder %s4559, 31
        %s4561 = scalar_select %p4560, %s4559, 31
        %s4562 = smul.addr %s4561, 8
        %s4563 = scalar_lea.vmem %s9, %s4562
        // Predicated region
        $region61: #{gnn_forward.1} parent=55 // pred_check
          %p4564 = pneg %p260
        $region62: #{gnn_forward.1} parent=55 // pred_check_branch
          %4566 = sbr.rel (%p4564) target = $region64
        $region63: #{gnn_forward.1} parent=55 // pred_region
          %s4567 = smul.u32 16, %s23
        $region64: #{gnn_forward.1} parent=55 // pred_fallthru
          _
      $region56: #{gnn_forward.1} parent=5 // pred_fallthru
        _
      %p4568 = scmp.le.s32.totalorder 2, %s18
      // Predicated region
      $region65: #{gnn_forward.1} parent=5 // pred_check
        %p4569 = pneg %p4568
      $region66: #{gnn_forward.1} parent=5 // pred_check_branch
        %4571 = sbr.rel (%p4569) target = $region68
      $region67: #{gnn_forward.1} parent=5 // pred_region
        %s4572 = ssub.s32 %s18, 2
        // Predicated region
        $region69: #{gnn_forward.1} parent=67 // pred_check
          %p4573 = pneg %p266
        $region70: #{gnn_forward.1} parent=67 // pred_check_branch
          %4575 = sbr.rel (%p4573) target = $region72
        $region71: #{gnn_forward.1} parent=67 // pred_region
          %s4576 = smul.u32 16, %s24
          %p4577 = scmp.lt.s32.totalorder %s4576, 31
          %s4578 = scalar_select %p4577, %s4576, 31
          %s4579 = smul.addr %s4578, 8
          %s4580 = scalar_lea.vmem %s9, %s4579
        $region72: #{gnn_forward.1} parent=67 // pred_fallthru
          _
      $region68: #{gnn_forward.1} parent=5 // pred_fallthru
        _
    $region6: #{gnn_forward.1} parent=1 // loop_footer
      %s22 = sadd.s32 1, %s18
    $region7: #{gnn_forward.1} parent=1 // loop_footer_branch
      %17 = sbr.rel target = $region3
    $region8: #{gnn_forward.1} parent=1 // loop_exit
      _
    %4581 = vsyncpa [#allocation3], 1
    %s4582 = scalar_lea.sflag [#allocation3], 1
    %4583 = vsyncpa %s4582, 1

</llo_original>
